<compile_context>
chip_gen: v5e
topology: v5e:2x2
jax: 0.10.0
libtpu: 0.0.40
codegen_flags: <defaults>
</compile_context>

<pallas_src>
import jax
import jax.numpy as jnp
from jax import lax
from jax.experimental import pallas as pl
from jax.experimental.pallas import tpu as pltpu

N_CLASSES = 10
_LANE = 128
_K1, _S1, _P1 = 64, 8, 28      # conv1 kernel / stride / padding
_L1 = 64                       # conv1 output length for a 512-sample input
_KDW = 7                       # depthwise kernel size


def _rup(c, m=_LANE):
    return ((c + m - 1) // m) * m


# ------------------------------------------------------------------ kernel ---

def _mm_bias(x, w_ref, b_ref, relu):
    """Pointwise conv / linear (+folded BN) on the MXU, optional ReLU."""
    y = jnp.dot(x, w_ref[...], preferred_element_type=jnp.float32) + b_ref[...]
    return jnp.maximum(y, 0.0) if relu else y


def _dwconv_bias_relu(x, w_ref, b_ref):
    """Depthwise 'same' conv (K=7, stride 1) along rows of x:(L, C) + BN + ReLU.

    Taps are realized with pltpu.roll (XLU) plus (L,1) iota edge masks — no
    padded copies, no unaligned sublane slices.  Padded channel lanes have zero
    weights/biases, so they stay exactly zero.
    """
    L, C = x.shape
    w = w_ref[...]                                      # (7, C)
    row = lax.broadcasted_iota(jnp.int32, (L, 1), 0)    # hoisted once per call
    acc = jnp.zeros((L, C), jnp.float32)
    for k in range(_KDW):
        s = k - (_KDW // 2)                             # shift in [-3, 3]
        if s == 0:
            shifted = x
        else:
            shifted = pltpu.roll(x, (-s) % L, axis=0)           # shifted[i] = x[i+s]
            edge = jnp.logical_and(row + s >= 0, row + s < L)   # 'same' zero padding
            shifted = shifted * edge.astype(jnp.float32)
        acc = acc + shifted * w[k:k + 1, :]
    return jnp.maximum(acc + b_ref[...], 0.0)


def _maxpool2(x):
    """MaxPool1d(kernel=2, stride=2) along rows: pairwise max, then keep even
    rows via a constant 0/1 selection matmul (MXU) — avoids strided sublane
    access.  Wrap-around row from the roll is never selected (L is even)."""
    L, C = x.shape
    m = jnp.maximum(x, pltpu.roll(x, L - 1, axis=0))    # m[i] = max(x[i], x[i+1 mod L])
    ri = lax.broadcasted_iota(jnp.int32, (L // 2, L), 0)
    ci = lax.broadcasted_iota(jnp.int32, (L // 2, L), 1)
    sel = (ci == 2 * ri).astype(jnp.float32)            # sel[i, 2i] = 1
    return jnp.dot(sel, m, preferred_element_type=jnp.float32)


def _fused_kernel(x_ref, *refs):
    # refs = 30 parameter refs (order fixed in lnrnet_v2_forward) + output ref.
    o_ref = refs[-1]
    pr = refs[:-1]
    c1w, c1b = pr[0], pr[1]
    blk = pr[2:26]               # 3 blocks x (dw1 w,b, pw1 w,b, dw2 w,b, pw2 w,b)
    l1w, l1b, l2w, l2b = pr[26], pr[27], pr[28], pr[29]

    # conv1: Conv1d(1,16,k=64,s=8,p=28)+BN+ReLU.  x_ref[0] is the padded signal
    # folded to (71, 8) with row m holding padded samples 8m..8m+7, so the
    # strided 64-tap conv is a sum of 8 matmuls over statically shifted windows
    # (in-kernel im2col, fully unrolled at trace time).
    xr = x_ref[0]                                       # (71, 8)
    y = jnp.zeros((_L1, c1w.shape[1]), jnp.float32)
    for jb in range(_K1 // _S1):
        y = y + jnp.dot(xr[jb:jb + _L1, :], c1w[_S1 * jb:_S1 * (jb + 1), :],
                        preferred_element_type=jnp.float32)
    y = jnp.maximum(y + c1b[...], 0.0)                  # (64, 128)

    y = _maxpool2(y)                                    # (32, 128)

    # ResBlocks (residual=False, cbam=False): SeparableConv1D x2, pool after b1/b2.
    for i, pool in enumerate((True, True, False)):
        d1w, d1b, p1w, p1b, d2w, d2b, p2w, p2b = blk[8 * i:8 * (i + 1)]
        y = _dwconv_bias_relu(y, d1w, d1b)
        y = _mm_bias(y, p1w, p1b, relu=True)
        y = _dwconv_bias_relu(y, d2w, d2b)
        y = _mm_bias(y, p2w, p2b, relu=True)
        if pool:
            y = _maxpool2(y)

    # head: mean over length -> lin1(+bn1)+ReLU -> lin2 (128-lane padded output).
    mean = jnp.mean(y, axis=0, keepdims=True)           # (1, 256)
    h = _mm_bias(mean, l1w, l1b, relu=True)             # (1, 128)
    out = _mm_bias(h, l2w, l2b, relu=False)             # (1, 128) — lanes >= 10 are 0
    o_ref[0] = out                                      # unmasked lane-dense store


# ----------------------------------------------------------------- wrapper ---

_PARAM_ORDER = ['conv1_w', 'conv1_b']
for _blk in ('b1', 'b2', 'b5'):
    for _lyr in ('l1_dw', 'l1_pw', 'l2_dw', 'l2_pw'):
        _PARAM_ORDER += [f'{_blk}{_lyr}_w', f'{_blk}{_lyr}_b']
_PARAM_ORDER += ['lin1_w', 'lin1_b', 'lin2_w', 'lin2_b']


def lnrnet_v2_forward(x, params):
    """x: (B, 1, L) float32 (NCL, as in the PyTorch module).  Dropout == identity."""
    B, _, L = x.shape
    assert L == 512, "kernel is specialized for the module's nominal 512-sample input"
    # Fold the strided conv1 input: 'same' pad, then group samples by stride so
    # the kernel can build the 64-tap windows with static slices (no XLA gather,
    # no HBM im2col tensor).
    xp = jnp.pad(x[:, 0, :], ((0, 0), (_P1, _P1)))
    xp = xp.reshape(B, (L + 2 * _P1) // _S1, _S1)       # (B, 71, 8)

    plist = [params[k] for k in _PARAM_ORDER]

    def const_spec(a):
        zeros = (0,) * a.ndim
        return pl.BlockSpec(a.shape, lambda b, _z=zeros: _z)   # whole array, resident

    out = pl.pallas_call(
        _fused_kernel,
        out_shape=jax.ShapeDtypeStruct((B, 1, _LANE), jnp.float32),
        grid=(B,),
        in_specs=[pl.BlockSpec((1,) + xp.shape[1:], lambda b: (b, 0, 0))]
                 + [const_spec(a) for a in plist],
        out_specs=pl.BlockSpec((1, 1, _LANE), lambda b: (b, 0, 0)),
        compiler_params=pltpu.CompilerParams(dimension_semantics=("parallel",)),
    )(xp, *plist)
    return out[:, 0, :N_CLASSES]


# -------------------------------------------- deterministic parameter init ---

def _fold_bn(w, b, gamma, beta, mean, var, eps=1e-5):
    scale = gamma / jnp.sqrt(var + eps)
    return w * scale, (b - mean) * scale + beta


def init_params(key):
    params = {}
    state = {'key': key}

    def nxt():
        state['key'], sub = jax.random.split(state['key'])
        return sub

    def bn_stats(c):
        gamma = 1.0 + 0.1 * jax.random.normal(nxt(), (c,))
        beta = 0.1 * jax.random.normal(nxt(), (c,))
        mean = 0.1 * jax.random.normal(nxt(), (c,))
        var = jax.random.uniform(nxt(), (c,), minval=0.5, maxval=1.5)
        return gamma, beta, mean, var

    def put(name, w, b, rows_p, cols_p):
        # Zero-pad to lane-dense shapes; padded lanes carry exact zeros so the
        # network's math is unchanged.
        w = jnp.pad(w, ((0, rows_p - w.shape[0]), (0, cols_p - w.shape[1])))
        b = jnp.pad(b, (0, cols_p - b.shape[0]))
        params[name + '_w'] = w.astype(jnp.float32)
        params[name + '_b'] = b.reshape(1, -1).astype(jnp.float32)

    def conv_bn(name, w_shape, rows_p, cols_p):
        cout = w_shape[1]
        w = 0.1 * jax.random.normal(nxt(), w_shape)
        b = 0.05 * jax.random.normal(nxt(), (cout,))
        wf, bf = _fold_bn(w, b, *bn_stats(cout))
        put(name, wf, bf, rows_p, cols_p)

    # conv1 weight laid out (K, Cout) = (64, 16) for the stride-folded matmuls.
    conv_bn('conv1', (64, 16), 64, _rup(16))

    dims = {'b1': (16, 32, 64), 'b2': (64, 96, 128), 'b5': (128, 160, 192)}
    for nm, (cin, cmid, cout) in dims.items():
        conv_bn(f'{nm}l1_dw', (_KDW, cin), _KDW, _rup(cin))        # depthwise (K, C)
        conv_bn(f'{nm}l1_pw', (cin, cmid), _rup(cin), _rup(cmid))  # pointwise (Cin, Cout)
        conv_bn(f'{nm}l2_dw', (_KDW, cmid), _KDW, _rup(cmid))
        conv_bn(f'{nm}l2_pw', (cmid, cout), _rup(cmid), _rup(cout))

    # lin1 (192 -> 100) with bn1 folded; lin2 (100 -> n_classes) plain.
    # lin2's output columns are padded to 128 lanes (zeros) so the kernel's
    # final store is lane-dense; the wrapper slices the first n_classes lanes.
    conv_bn('lin1', (192, 100), _rup(192), _rup(100))
    w2 = 0.1 * jax.random.normal(nxt(), (100, N_CLASSES))
    b2 = 0.05 * jax.random.normal(nxt(), (N_CLASSES,))
    put('lin2', w2, b2, _rup(100), _LANE)
    return params


if __name__ == "__main__":
    key = jax.random.PRNGKey(0)
    pkey, xkey = jax.random.split(key)
    params = init_params(pkey)

    # Input consistent with the module: (batch=2, channels=1, length=512) NCL.
    x = jax.random.normal(xkey, (2, 1, 512), dtype=jnp.float32)

    out = jax.jit(lnrnet_v2_forward)(x, params)
    out = jax.block_until_ready(out)
    assert out.shape == (2, N_CLASSES) and out.dtype == jnp.float32
    print("KERNEL_OK")
</pallas_src>

<mosaic_0001>
module attributes {stable_mosaic.version = 11 : i64} {
  func.func @_fused_kernel(%arg0: i32, %arg1: memref<1x71x8xf32, #tpu.memory_space<vmem>>, %arg2: memref<64x128xf32, #tpu.memory_space<vmem>>, %arg3: memref<1x128xf32, #tpu.memory_space<vmem>>, %arg4: memref<7x128xf32, #tpu.memory_space<vmem>>, %arg5: memref<1x128xf32, #tpu.memory_space<vmem>>, %arg6: memref<128x128xf32, #tpu.memory_space<vmem>>, %arg7: memref<1x128xf32, #tpu.memory_space<vmem>>, %arg8: memref<7x128xf32, #tpu.memory_space<vmem>>, %arg9: memref<1x128xf32, #tpu.memory_space<vmem>>, %arg10: memref<128x128xf32, #tpu.memory_space<vmem>>, %arg11: memref<1x128xf32, #tpu.memory_space<vmem>>, %arg12: memref<7x128xf32, #tpu.memory_space<vmem>>, %arg13: memref<1x128xf32, #tpu.memory_space<vmem>>, %arg14: memref<128x128xf32, #tpu.memory_space<vmem>>, %arg15: memref<1x128xf32, #tpu.memory_space<vmem>>, %arg16: memref<7x128xf32, #tpu.memory_space<vmem>>, %arg17: memref<1x128xf32, #tpu.memory_space<vmem>>, %arg18: memref<128x128xf32, #tpu.memory_space<vmem>>, %arg19: memref<1x128xf32, #tpu.memory_space<vmem>>, %arg20: memref<7x128xf32, #tpu.memory_space<vmem>>, %arg21: memref<1x128xf32, #tpu.memory_space<vmem>>, %arg22: memref<128x256xf32, #tpu.memory_space<vmem>>, %arg23: memref<1x256xf32, #tpu.memory_space<vmem>>, %arg24: memref<7x256xf32, #tpu.memory_space<vmem>>, %arg25: memref<1x256xf32, #tpu.memory_space<vmem>>, %arg26: memref<256x256xf32, #tpu.memory_space<vmem>>, %arg27: memref<1x256xf32, #tpu.memory_space<vmem>>, %arg28: memref<256x128xf32, #tpu.memory_space<vmem>>, %arg29: memref<1x128xf32, #tpu.memory_space<vmem>>, %arg30: memref<128x128xf32, #tpu.memory_space<vmem>>, %arg31: memref<1x128xf32, #tpu.memory_space<vmem>>, %arg32: memref<1x1x128xf32, #tpu.memory_space<vmem>>) attributes {dimension_semantics = [#tpu.dimension_semantics<parallel>], iteration_bounds = array<i64: 2>, scalar_prefetch = 0 : i64, scratch_operands = 0 : i64, tpu.core_type = #tpu.core_type<tc>, window_params = [{transform_indices = @transform_0, window_bounds = array<i64: 1, 71, 8>}, {pipeline_mode = #tpu.pipeline_mode<synchronous>, transform_indices = @transform_1, window_bounds = array<i64: 64, 128>}, {pipeline_mode = #tpu.pipeline_mode<synchronous>, transform_indices = @transform_2, window_bounds = array<i64: 1, 128>}, {pipeline_mode = #tpu.pipeline_mode<synchronous>, transform_indices = @transform_3, window_bounds = array<i64: 7, 128>}, {pipeline_mode = #tpu.pipeline_mode<synchronous>, transform_indices = @transform_4, window_bounds = array<i64: 1, 128>}, {pipeline_mode = #tpu.pipeline_mode<synchronous>, transform_indices = @transform_5, window_bounds = array<i64: 128, 128>}, {pipeline_mode = #tpu.pipeline_mode<synchronous>, transform_indices = @transform_6, window_bounds = array<i64: 1, 128>}, {pipeline_mode = #tpu.pipeline_mode<synchronous>, transform_indices = @transform_7, window_bounds = array<i64: 7, 128>}, {pipeline_mode = #tpu.pipeline_mode<synchronous>, transform_indices = @transform_8, window_bounds = array<i64: 1, 128>}, {pipeline_mode = #tpu.pipeline_mode<synchronous>, transform_indices = @transform_9, window_bounds = array<i64: 128, 128>}, {pipeline_mode = #tpu.pipeline_mode<synchronous>, transform_indices = @transform_10, window_bounds = array<i64: 1, 128>}, {pipeline_mode = #tpu.pipeline_mode<synchronous>, transform_indices = @transform_11, window_bounds = array<i64: 7, 128>}, {pipeline_mode = #tpu.pipeline_mode<synchronous>, transform_indices = @transform_12, window_bounds = array<i64: 1, 128>}, {pipeline_mode = #tpu.pipeline_mode<synchronous>, transform_indices = @transform_13, window_bounds = array<i64: 128, 128>}, {pipeline_mode = #tpu.pipeline_mode<synchronous>, transform_indices = @transform_14, window_bounds = array<i64: 1, 128>}, {pipeline_mode = #tpu.pipeline_mode<synchronous>, transform_indices = @transform_15, window_bounds = array<i64: 7, 128>}, {pipeline_mode = #tpu.pipeline_mode<synchronous>, transform_indices = @transform_16, window_bounds = array<i64: 1, 128>}, {pipeline_mode = #tpu.pipeline_mode<synchronous>, transform_indices = @transform_17, window_bounds = array<i64: 128, 128>}, {pipeline_mode = #tpu.pipeline_mode<synchronous>, transform_indices = @transform_18, window_bounds = array<i64: 1, 128>}, {pipeline_mode = #tpu.pipeline_mode<synchronous>, transform_indices = @transform_19, window_bounds = array<i64: 7, 128>}, {pipeline_mode = #tpu.pipeline_mode<synchronous>, transform_indices = @transform_20, window_bounds = array<i64: 1, 128>}, {pipeline_mode = #tpu.pipeline_mode<synchronous>, transform_indices = @transform_21, window_bounds = array<i64: 128, 256>}, {pipeline_mode = #tpu.pipeline_mode<synchronous>, transform_indices = @transform_22, window_bounds = array<i64: 1, 256>}, {pipeline_mode = #tpu.pipeline_mode<synchronous>, transform_indices = @transform_23, window_bounds = array<i64: 7, 256>}, {pipeline_mode = #tpu.pipeline_mode<synchronous>, transform_indices = @transform_24, window_bounds = array<i64: 1, 256>}, {pipeline_mode = #tpu.pipeline_mode<synchronous>, transform_indices = @transform_25, window_bounds = array<i64: 256, 256>}, {pipeline_mode = #tpu.pipeline_mode<synchronous>, transform_indices = @transform_26, window_bounds = array<i64: 1, 256>}, {pipeline_mode = #tpu.pipeline_mode<synchronous>, transform_indices = @transform_27, window_bounds = array<i64: 256, 128>}, {pipeline_mode = #tpu.pipeline_mode<synchronous>, transform_indices = @transform_28, window_bounds = array<i64: 1, 128>}, {pipeline_mode = #tpu.pipeline_mode<synchronous>, transform_indices = @transform_29, window_bounds = array<i64: 128, 128>}, {pipeline_mode = #tpu.pipeline_mode<synchronous>, transform_indices = @transform_30, window_bounds = array<i64: 1, 128>}, {transform_indices = @transform_31, window_bounds = array<i64: 1, 1, 128>}]} {
    %c0 = arith.constant 0 : index
    %c0_0 = arith.constant 0 : index
    %c0_1 = arith.constant 0 : index
    %0 = vector.load %arg1[%c0, %c0_0, %c0_1] : memref<1x71x8xf32, #tpu.memory_space<vmem>>, vector<1x71x8xf32>
    %1 = vector.shape_cast %0 : vector<1x71x8xf32> to vector<71x8xf32>
    %cst = arith.constant 0.000000e+00 : f32
    %2 = vector.broadcast %cst : f32 to vector<64x128xf32>
    %3 = vector.extract_strided_slice %1 {offsets = [0, 0], sizes = [64, 8], strides = [1, 1]} : vector<71x8xf32> to vector<64x8xf32>
    %c0_2 = arith.constant 0 : index
    %c0_3 = arith.constant 0 : index
    %4 = vector.load %arg2[%c0_2, %c0_3] : memref<64x128xf32, #tpu.memory_space<vmem>>, vector<8x128xf32>
    %cst_4 = arith.constant dense<0.000000e+00> : vector<64x128xf32>
    %5 = tpu.matmul %3, %4, %cst_4 {dimension_numbers = #tpu.dot_dimension_numbers<[1], [0], [0], [1], [0, 0, 1, 1], [], []>} : vector<64x8xf32>, vector<8x128xf32>, vector<64x128xf32> -> vector<64x128xf32>
    %6 = arith.addf %2, %5 : vector<64x128xf32>
    %7 = vector.extract_strided_slice %1 {offsets = [1, 0], sizes = [64, 8], strides = [1, 1]} : vector<71x8xf32> to vector<64x8xf32>
    %c8 = arith.constant 8 : index
    %c0_5 = arith.constant 0 : index
    %8 = vector.load %arg2[%c8, %c0_5] : memref<64x128xf32, #tpu.memory_space<vmem>>, vector<8x128xf32>
    %cst_6 = arith.constant dense<0.000000e+00> : vector<64x128xf32>
    %9 = tpu.matmul %7, %8, %cst_6 {dimension_numbers = #tpu.dot_dimension_numbers<[1], [0], [0], [1], [0, 0, 1, 1], [], []>} : vector<64x8xf32>, vector<8x128xf32>, vector<64x128xf32> -> vector<64x128xf32>
    %10 = arith.addf %6, %9 : vector<64x128xf32>
    %11 = vector.extract_strided_slice %1 {offsets = [2, 0], sizes = [64, 8], strides = [1, 1]} : vector<71x8xf32> to vector<64x8xf32>
    %c16 = arith.constant 16 : index
    %c0_7 = arith.constant 0 : index
    %12 = vector.load %arg2[%c16, %c0_7] : memref<64x128xf32, #tpu.memory_space<vmem>>, vector<8x128xf32>
    %cst_8 = arith.constant dense<0.000000e+00> : vector<64x128xf32>
    %13 = tpu.matmul %11, %12, %cst_8 {dimension_numbers = #tpu.dot_dimension_numbers<[1], [0], [0], [1], [0, 0, 1, 1], [], []>} : vector<64x8xf32>, vector<8x128xf32>, vector<64x128xf32> -> vector<64x128xf32>
    %14 = arith.addf %10, %13 : vector<64x128xf32>
    %15 = vector.extract_strided_slice %1 {offsets = [3, 0], sizes = [64, 8], strides = [1, 1]} : vector<71x8xf32> to vector<64x8xf32>
    %c24 = arith.constant 24 : index
    %c0_9 = arith.constant 0 : index
    %16 = vector.load %arg2[%c24, %c0_9] : memref<64x128xf32, #tpu.memory_space<vmem>>, vector<8x128xf32>
    %cst_10 = arith.constant dense<0.000000e+00> : vector<64x128xf32>
    %17 = tpu.matmul %15, %16, %cst_10 {dimension_numbers = #tpu.dot_dimension_numbers<[1], [0], [0], [1], [0, 0, 1, 1], [], []>} : vector<64x8xf32>, vector<8x128xf32>, vector<64x128xf32> -> vector<64x128xf32>
    %18 = arith.addf %14, %17 : vector<64x128xf32>
    %19 = vector.extract_strided_slice %1 {offsets = [4, 0], sizes = [64, 8], strides = [1, 1]} : vector<71x8xf32> to vector<64x8xf32>
    %c32 = arith.constant 32 : index
    %c0_11 = arith.constant 0 : index
    %20 = vector.load %arg2[%c32, %c0_11] : memref<64x128xf32, #tpu.memory_space<vmem>>, vector<8x128xf32>
    %cst_12 = arith.constant dense<0.000000e+00> : vector<64x128xf32>
    %21 = tpu.matmul %19, %20, %cst_12 {dimension_numbers = #tpu.dot_dimension_numbers<[1], [0], [0], [1], [0, 0, 1, 1], [], []>} : vector<64x8xf32>, vector<8x128xf32>, vector<64x128xf32> -> vector<64x128xf32>
    %22 = arith.addf %18, %21 : vector<64x128xf32>
    %23 = vector.extract_strided_slice %1 {offsets = [5, 0], sizes = [64, 8], strides = [1, 1]} : vector<71x8xf32> to vector<64x8xf32>
    %c40 = arith.constant 40 : index
    %c0_13 = arith.constant 0 : index
    %24 = vector.load %arg2[%c40, %c0_13] : memref<64x128xf32, #tpu.memory_space<vmem>>, vector<8x128xf32>
    %cst_14 = arith.constant dense<0.000000e+00> : vector<64x128xf32>
    %25 = tpu.matmul %23, %24, %cst_14 {dimension_numbers = #tpu.dot_dimension_numbers<[1], [0], [0], [1], [0, 0, 1, 1], [], []>} : vector<64x8xf32>, vector<8x128xf32>, vector<64x128xf32> -> vector<64x128xf32>
    %26 = arith.addf %22, %25 : vector<64x128xf32>
    %27 = vector.extract_strided_slice %1 {offsets = [6, 0], sizes = [64, 8], strides = [1, 1]} : vector<71x8xf32> to vector<64x8xf32>
    %c48 = arith.constant 48 : index
    %c0_15 = arith.constant 0 : index
    %28 = vector.load %arg2[%c48, %c0_15] : memref<64x128xf32, #tpu.memory_space<vmem>>, vector<8x128xf32>
    %cst_16 = arith.constant dense<0.000000e+00> : vector<64x128xf32>
    %29 = tpu.matmul %27, %28, %cst_16 {dimension_numbers = #tpu.dot_dimension_numbers<[1], [0], [0], [1], [0, 0, 1, 1], [], []>} : vector<64x8xf32>, vector<8x128xf32>, vector<64x128xf32> -> vector<64x128xf32>
    %30 = arith.addf %26, %29 : vector<64x128xf32>
    %31 = vector.extract_strided_slice %1 {offsets = [7, 0], sizes = [64, 8], strides = [1, 1]} : vector<71x8xf32> to vector<64x8xf32>
    %c56 = arith.constant 56 : index
    %c0_17 = arith.constant 0 : index
    %32 = vector.load %arg2[%c56, %c0_17] : memref<64x128xf32, #tpu.memory_space<vmem>>, vector<8x128xf32>
    %cst_18 = arith.constant dense<0.000000e+00> : vector<64x128xf32>
    %33 = tpu.matmul %31, %32, %cst_18 {dimension_numbers = #tpu.dot_dimension_numbers<[1], [0], [0], [1], [0, 0, 1, 1], [], []>} : vector<64x8xf32>, vector<8x128xf32>, vector<64x128xf32> -> vector<64x128xf32>
    %34 = arith.addf %30, %33 : vector<64x128xf32>
    %c0_19 = arith.constant 0 : index
    %c0_20 = arith.constant 0 : index
    %35 = vector.load %arg3[%c0_19, %c0_20] : memref<1x128xf32, #tpu.memory_space<vmem>>, vector<1x128xf32>
    %36 = vector.broadcast %35 : vector<1x128xf32> to vector<64x128xf32>
    %37 = arith.addf %34, %36 : vector<64x128xf32>
    %cst_21 = arith.constant 0.000000e+00 : f32
    %38 = vector.broadcast %cst_21 : f32 to vector<64x128xf32>
    %39 = arith.maximumf %37, %38 : vector<64x128xf32>
    %c63_i32 = arith.constant 63 : i32
    %40 = tpu.dynamic_rotate %39 by %c63_i32 dim 0 : vector<64x128xf32>, i32 -> vector<64x128xf32>
    %41 = arith.maximumf %39, %40 : vector<64x128xf32>
    %42 = tpu.iota {dimensions = array<i32: 0>} : vector<32x64xi32>
    %43 = tpu.iota {dimensions = array<i32: 1>} : vector<32x64xi32>
    %c2_i32 = arith.constant 2 : i32
    %44 = vector.broadcast %c2_i32 : i32 to vector<32x64xi32>
    %45 = arith.muli %44, %42 : vector<32x64xi32>
    %46 = arith.cmpi eq, %43, %45 : vector<32x64xi32>
    %47 = arith.extui %46 : vector<32x64xi1> to vector<32x64xi32>
    %48 = arith.sitofp %47 : vector<32x64xi32> to vector<32x64xf32>
    %cst_22 = arith.constant dense<0.000000e+00> : vector<32x128xf32>
    %49 = tpu.matmul %48, %41, %cst_22 {dimension_numbers = #tpu.dot_dimension_numbers<[1], [0], [0], [1], [0, 0, 1, 1], [], []>} : vector<32x64xf32>, vector<64x128xf32>, vector<32x128xf32> -> vector<32x128xf32>
    %c0_23 = arith.constant 0 : index
    %c0_24 = arith.constant 0 : index
    %50 = vector.load %arg4[%c0_23, %c0_24] : memref<7x128xf32, #tpu.memory_space<vmem>>, vector<7x128xf32>
    %51 = tpu.iota {dimensions = array<i32: 0>} : vector<32x1xi32>
    %cst_25 = arith.constant 0.000000e+00 : f32
    %52 = vector.broadcast %cst_25 : f32 to vector<32x128xf32>
    %c3_i32 = arith.constant 3 : i32
    %53 = tpu.dynamic_rotate %49 by %c3_i32 dim 0 : vector<32x128xf32>, i32 -> vector<32x128xf32>
    %c-3_i32 = arith.constant -3 : i32
    %54 = vector.broadcast %c-3_i32 : i32 to vector<32x1xi32>
    %55 = arith.addi %51, %54 : vector<32x1xi32>
    %c0_i32 = arith.constant 0 : i32
    %56 = vector.broadcast %c0_i32 : i32 to vector<32x1xi32>
    %57 = arith.cmpi sge, %55, %56 : vector<32x1xi32>
    %c-3_i32_26 = arith.constant -3 : i32
    %58 = vector.broadcast %c-3_i32_26 : i32 to vector<32x1xi32>
    %59 = arith.addi %51, %58 : vector<32x1xi32>
    %c32_i32 = arith.constant 32 : i32
    %60 = vector.broadcast %c32_i32 : i32 to vector<32x1xi32>
    %61 = arith.cmpi slt, %59, %60 : vector<32x1xi32>
    %62 = arith.andi %57, %61 : vector<32x1xi1>
    %63 = arith.extui %62 : vector<32x1xi1> to vector<32x1xi32>
    %64 = arith.sitofp %63 : vector<32x1xi32> to vector<32x1xf32>
    %65 = vector.broadcast %64 : vector<32x1xf32> to vector<32x128xf32>
    %66 = arith.mulf %53, %65 : vector<32x128xf32>
    %67 = vector.extract_strided_slice %50 {offsets = [0, 0], sizes = [1, 128], strides = [1, 1]} : vector<7x128xf32> to vector<1x128xf32>
    %68 = vector.broadcast %67 : vector<1x128xf32> to vector<32x128xf32>
    %69 = arith.mulf %66, %68 : vector<32x128xf32>
    %70 = arith.addf %52, %69 : vector<32x128xf32>
    %c2_i32_27 = arith.constant 2 : i32
    %71 = tpu.dynamic_rotate %49 by %c2_i32_27 dim 0 : vector<32x128xf32>, i32 -> vector<32x128xf32>
    %c-2_i32 = arith.constant -2 : i32
    %72 = vector.broadcast %c-2_i32 : i32 to vector<32x1xi32>
    %73 = arith.addi %51, %72 : vector<32x1xi32>
    %c0_i32_28 = arith.constant 0 : i32
    %74 = vector.broadcast %c0_i32_28 : i32 to vector<32x1xi32>
    %75 = arith.cmpi sge, %73, %74 : vector<32x1xi32>
    %c-2_i32_29 = arith.constant -2 : i32
    %76 = vector.broadcast %c-2_i32_29 : i32 to vector<32x1xi32>
    %77 = arith.addi %51, %76 : vector<32x1xi32>
    %c32_i32_30 = arith.constant 32 : i32
    %78 = vector.broadcast %c32_i32_30 : i32 to vector<32x1xi32>
    %79 = arith.cmpi slt, %77, %78 : vector<32x1xi32>
    %80 = arith.andi %75, %79 : vector<32x1xi1>
    %81 = arith.extui %80 : vector<32x1xi1> to vector<32x1xi32>
    %82 = arith.sitofp %81 : vector<32x1xi32> to vector<32x1xf32>
    %83 = vector.broadcast %82 : vector<32x1xf32> to vector<32x128xf32>
    %84 = arith.mulf %71, %83 : vector<32x128xf32>
    %85 = vector.extract_strided_slice %50 {offsets = [1, 0], sizes = [1, 128], strides = [1, 1]} : vector<7x128xf32> to vector<1x128xf32>
    %86 = vector.broadcast %85 : vector<1x128xf32> to vector<32x128xf32>
    %87 = arith.mulf %84, %86 : vector<32x128xf32>
    %88 = arith.addf %70, %87 : vector<32x128xf32>
    %c1_i32 = arith.constant 1 : i32
    %89 = tpu.dynamic_rotate %49 by %c1_i32 dim 0 : vector<32x128xf32>, i32 -> vector<32x128xf32>
    %c-1_i32 = arith.constant -1 : i32
    %90 = vector.broadcast %c-1_i32 : i32 to vector<32x1xi32>
    %91 = arith.addi %51, %90 : vector<32x1xi32>
    %c0_i32_31 = arith.constant 0 : i32
    %92 = vector.broadcast %c0_i32_31 : i32 to vector<32x1xi32>
    %93 = arith.cmpi sge, %91, %92 : vector<32x1xi32>
    %c-1_i32_32 = arith.constant -1 : i32
    %94 = vector.broadcast %c-1_i32_32 : i32 to vector<32x1xi32>
    %95 = arith.addi %51, %94 : vector<32x1xi32>
    %c32_i32_33 = arith.constant 32 : i32
    %96 = vector.broadcast %c32_i32_33 : i32 to vector<32x1xi32>
    %97 = arith.cmpi slt, %95, %96 : vector<32x1xi32>
    %98 = arith.andi %93, %97 : vector<32x1xi1>
    %99 = arith.extui %98 : vector<32x1xi1> to vector<32x1xi32>
    %100 = arith.sitofp %99 : vector<32x1xi32> to vector<32x1xf32>
    %101 = vector.broadcast %100 : vector<32x1xf32> to vector<32x128xf32>
    %102 = arith.mulf %89, %101 : vector<32x128xf32>
    %103 = vector.extract_strided_slice %50 {offsets = [2, 0], sizes = [1, 128], strides = [1, 1]} : vector<7x128xf32> to vector<1x128xf32>
    %104 = vector.broadcast %103 : vector<1x128xf32> to vector<32x128xf32>
    %105 = arith.mulf %102, %104 : vector<32x128xf32>
    %106 = arith.addf %88, %105 : vector<32x128xf32>
    %107 = vector.extract_strided_slice %50 {offsets = [3, 0], sizes = [1, 128], strides = [1, 1]} : vector<7x128xf32> to vector<1x128xf32>
    %108 = vector.broadcast %107 : vector<1x128xf32> to vector<32x128xf32>
    %109 = arith.mulf %49, %108 : vector<32x128xf32>
    %110 = arith.addf %106, %109 : vector<32x128xf32>
    %c31_i32 = arith.constant 31 : i32
    %111 = tpu.dynamic_rotate %49 by %c31_i32 dim 0 : vector<32x128xf32>, i32 -> vector<32x128xf32>
    %c1_i32_34 = arith.constant 1 : i32
    %112 = vector.broadcast %c1_i32_34 : i32 to vector<32x1xi32>
    %113 = arith.addi %51, %112 : vector<32x1xi32>
    %c0_i32_35 = arith.constant 0 : i32
    %114 = vector.broadcast %c0_i32_35 : i32 to vector<32x1xi32>
    %115 = arith.cmpi sge, %113, %114 : vector<32x1xi32>
    %c1_i32_36 = arith.constant 1 : i32
    %116 = vector.broadcast %c1_i32_36 : i32 to vector<32x1xi32>
    %117 = arith.addi %51, %116 : vector<32x1xi32>
    %c32_i32_37 = arith.constant 32 : i32
    %118 = vector.broadcast %c32_i32_37 : i32 to vector<32x1xi32>
    %119 = arith.cmpi slt, %117, %118 : vector<32x1xi32>
    %120 = arith.andi %115, %119 : vector<32x1xi1>
    %121 = arith.extui %120 : vector<32x1xi1> to vector<32x1xi32>
    %122 = arith.sitofp %121 : vector<32x1xi32> to vector<32x1xf32>
    %123 = vector.broadcast %122 : vector<32x1xf32> to vector<32x128xf32>
    %124 = arith.mulf %111, %123 : vector<32x128xf32>
    %125 = vector.extract_strided_slice %50 {offsets = [4, 0], sizes = [1, 128], strides = [1, 1]} : vector<7x128xf32> to vector<1x128xf32>
    %126 = vector.broadcast %125 : vector<1x128xf32> to vector<32x128xf32>
    %127 = arith.mulf %124, %126 : vector<32x128xf32>
    %128 = arith.addf %110, %127 : vector<32x128xf32>
    %c30_i32 = arith.constant 30 : i32
    %129 = tpu.dynamic_rotate %49 by %c30_i32 dim 0 : vector<32x128xf32>, i32 -> vector<32x128xf32>
    %c2_i32_38 = arith.constant 2 : i32
    %130 = vector.broadcast %c2_i32_38 : i32 to vector<32x1xi32>
    %131 = arith.addi %51, %130 : vector<32x1xi32>
    %c0_i32_39 = arith.constant 0 : i32
    %132 = vector.broadcast %c0_i32_39 : i32 to vector<32x1xi32>
    %133 = arith.cmpi sge, %131, %132 : vector<32x1xi32>
    %c2_i32_40 = arith.constant 2 : i32
    %134 = vector.broadcast %c2_i32_40 : i32 to vector<32x1xi32>
    %135 = arith.addi %51, %134 : vector<32x1xi32>
    %c32_i32_41 = arith.constant 32 : i32
    %136 = vector.broadcast %c32_i32_41 : i32 to vector<32x1xi32>
    %137 = arith.cmpi slt, %135, %136 : vector<32x1xi32>
    %138 = arith.andi %133, %137 : vector<32x1xi1>
    %139 = arith.extui %138 : vector<32x1xi1> to vector<32x1xi32>
    %140 = arith.sitofp %139 : vector<32x1xi32> to vector<32x1xf32>
    %141 = vector.broadcast %140 : vector<32x1xf32> to vector<32x128xf32>
    %142 = arith.mulf %129, %141 : vector<32x128xf32>
    %143 = vector.extract_strided_slice %50 {offsets = [5, 0], sizes = [1, 128], strides = [1, 1]} : vector<7x128xf32> to vector<1x128xf32>
    %144 = vector.broadcast %143 : vector<1x128xf32> to vector<32x128xf32>
    %145 = arith.mulf %142, %144 : vector<32x128xf32>
    %146 = arith.addf %128, %145 : vector<32x128xf32>
    %c29_i32 = arith.constant 29 : i32
    %147 = tpu.dynamic_rotate %49 by %c29_i32 dim 0 : vector<32x128xf32>, i32 -> vector<32x128xf32>
    %c3_i32_42 = arith.constant 3 : i32
    %148 = vector.broadcast %c3_i32_42 : i32 to vector<32x1xi32>
    %149 = arith.addi %51, %148 : vector<32x1xi32>
    %c0_i32_43 = arith.constant 0 : i32
    %150 = vector.broadcast %c0_i32_43 : i32 to vector<32x1xi32>
    %151 = arith.cmpi sge, %149, %150 : vector<32x1xi32>
    %c3_i32_44 = arith.constant 3 : i32
    %152 = vector.broadcast %c3_i32_44 : i32 to vector<32x1xi32>
    %153 = arith.addi %51, %152 : vector<32x1xi32>
    %c32_i32_45 = arith.constant 32 : i32
    %154 = vector.broadcast %c32_i32_45 : i32 to vector<32x1xi32>
    %155 = arith.cmpi slt, %153, %154 : vector<32x1xi32>
    %156 = arith.andi %151, %155 : vector<32x1xi1>
    %157 = arith.extui %156 : vector<32x1xi1> to vector<32x1xi32>
    %158 = arith.sitofp %157 : vector<32x1xi32> to vector<32x1xf32>
    %159 = vector.broadcast %158 : vector<32x1xf32> to vector<32x128xf32>
    %160 = arith.mulf %147, %159 : vector<32x128xf32>
    %161 = vector.extract_strided_slice %50 {offsets = [6, 0], sizes = [1, 128], strides = [1, 1]} : vector<7x128xf32> to vector<1x128xf32>
    %162 = vector.broadcast %161 : vector<1x128xf32> to vector<32x128xf32>
    %163 = arith.mulf %160, %162 : vector<32x128xf32>
    %164 = arith.addf %146, %163 : vector<32x128xf32>
    %c0_46 = arith.constant 0 : index
    %c0_47 = arith.constant 0 : index
    %165 = vector.load %arg5[%c0_46, %c0_47] : memref<1x128xf32, #tpu.memory_space<vmem>>, vector<1x128xf32>
    %166 = vector.broadcast %165 : vector<1x128xf32> to vector<32x128xf32>
    %167 = arith.addf %164, %166 : vector<32x128xf32>
    %cst_48 = arith.constant 0.000000e+00 : f32
    %168 = vector.broadcast %cst_48 : f32 to vector<32x128xf32>
    %169 = arith.maximumf %167, %168 : vector<32x128xf32>
    %c0_49 = arith.constant 0 : index
    %c0_50 = arith.constant 0 : index
    %170 = vector.load %arg6[%c0_49, %c0_50] : memref<128x128xf32, #tpu.memory_space<vmem>>, vector<128x128xf32>
    %cst_51 = arith.constant dense<0.000000e+00> : vector<32x128xf32>
    %171 = tpu.matmul %169, %170, %cst_51 {dimension_numbers = #tpu.dot_dimension_numbers<[1], [0], [0], [1], [0, 0, 1, 1], [], []>} : vector<32x128xf32>, vector<128x128xf32>, vector<32x128xf32> -> vector<32x128xf32>
    %c0_52 = arith.constant 0 : index
    %c0_53 = arith.constant 0 : index
    %172 = vector.load %arg7[%c0_52, %c0_53] : memref<1x128xf32, #tpu.memory_space<vmem>>, vector<1x128xf32>
    %173 = vector.broadcast %172 : vector<1x128xf32> to vector<32x128xf32>
    %174 = arith.addf %171, %173 : vector<32x128xf32>
    %cst_54 = arith.constant 0.000000e+00 : f32
    %175 = vector.broadcast %cst_54 : f32 to vector<32x128xf32>
    %176 = arith.maximumf %174, %175 : vector<32x128xf32>
    %c0_55 = arith.constant 0 : index
    %c0_56 = arith.constant 0 : index
    %177 = vector.load %arg8[%c0_55, %c0_56] : memref<7x128xf32, #tpu.memory_space<vmem>>, vector<7x128xf32>
    %178 = tpu.iota {dimensions = array<i32: 0>} : vector<32x1xi32>
    %cst_57 = arith.constant 0.000000e+00 : f32
    %179 = vector.broadcast %cst_57 : f32 to vector<32x128xf32>
    %c3_i32_58 = arith.constant 3 : i32
    %180 = tpu.dynamic_rotate %176 by %c3_i32_58 dim 0 : vector<32x128xf32>, i32 -> vector<32x128xf32>
    %c-3_i32_59 = arith.constant -3 : i32
    %181 = vector.broadcast %c-3_i32_59 : i32 to vector<32x1xi32>
    %182 = arith.addi %178, %181 : vector<32x1xi32>
    %c0_i32_60 = arith.constant 0 : i32
    %183 = vector.broadcast %c0_i32_60 : i32 to vector<32x1xi32>
    %184 = arith.cmpi sge, %182, %183 : vector<32x1xi32>
    %c-3_i32_61 = arith.constant -3 : i32
    %185 = vector.broadcast %c-3_i32_61 : i32 to vector<32x1xi32>
    %186 = arith.addi %178, %185 : vector<32x1xi32>
    %c32_i32_62 = arith.constant 32 : i32
    %187 = vector.broadcast %c32_i32_62 : i32 to vector<32x1xi32>
    %188 = arith.cmpi slt, %186, %187 : vector<32x1xi32>
    %189 = arith.andi %184, %188 : vector<32x1xi1>
    %190 = arith.extui %189 : vector<32x1xi1> to vector<32x1xi32>
    %191 = arith.sitofp %190 : vector<32x1xi32> to vector<32x1xf32>
    %192 = vector.broadcast %191 : vector<32x1xf32> to vector<32x128xf32>
    %193 = arith.mulf %180, %192 : vector<32x128xf32>
    %194 = vector.extract_strided_slice %177 {offsets = [0, 0], sizes = [1, 128], strides = [1, 1]} : vector<7x128xf32> to vector<1x128xf32>
    %195 = vector.broadcast %194 : vector<1x128xf32> to vector<32x128xf32>
    %196 = arith.mulf %193, %195 : vector<32x128xf32>
    %197 = arith.addf %179, %196 : vector<32x128xf32>
    %c2_i32_63 = arith.constant 2 : i32
    %198 = tpu.dynamic_rotate %176 by %c2_i32_63 dim 0 : vector<32x128xf32>, i32 -> vector<32x128xf32>
    %c-2_i32_64 = arith.constant -2 : i32
    %199 = vector.broadcast %c-2_i32_64 : i32 to vector<32x1xi32>
    %200 = arith.addi %178, %199 : vector<32x1xi32>
    %c0_i32_65 = arith.constant 0 : i32
    %201 = vector.broadcast %c0_i32_65 : i32 to vector<32x1xi32>
    %202 = arith.cmpi sge, %200, %201 : vector<32x1xi32>
    %c-2_i32_66 = arith.constant -2 : i32
    %203 = vector.broadcast %c-2_i32_66 : i32 to vector<32x1xi32>
    %204 = arith.addi %178, %203 : vector<32x1xi32>
    %c32_i32_67 = arith.constant 32 : i32
    %205 = vector.broadcast %c32_i32_67 : i32 to vector<32x1xi32>
    %206 = arith.cmpi slt, %204, %205 : vector<32x1xi32>
    %207 = arith.andi %202, %206 : vector<32x1xi1>
    %208 = arith.extui %207 : vector<32x1xi1> to vector<32x1xi32>
    %209 = arith.sitofp %208 : vector<32x1xi32> to vector<32x1xf32>
    %210 = vector.broadcast %209 : vector<32x1xf32> to vector<32x128xf32>
    %211 = arith.mulf %198, %210 : vector<32x128xf32>
    %212 = vector.extract_strided_slice %177 {offsets = [1, 0], sizes = [1, 128], strides = [1, 1]} : vector<7x128xf32> to vector<1x128xf32>
    %213 = vector.broadcast %212 : vector<1x128xf32> to vector<32x128xf32>
    %214 = arith.mulf %211, %213 : vector<32x128xf32>
    %215 = arith.addf %197, %214 : vector<32x128xf32>
    %c1_i32_68 = arith.constant 1 : i32
    %216 = tpu.dynamic_rotate %176 by %c1_i32_68 dim 0 : vector<32x128xf32>, i32 -> vector<32x128xf32>
    %c-1_i32_69 = arith.constant -1 : i32
    %217 = vector.broadcast %c-1_i32_69 : i32 to vector<32x1xi32>
    %218 = arith.addi %178, %217 : vector<32x1xi32>
    %c0_i32_70 = arith.constant 0 : i32
    %219 = vector.broadcast %c0_i32_70 : i32 to vector<32x1xi32>
    %220 = arith.cmpi sge, %218, %219 : vector<32x1xi32>
    %c-1_i32_71 = arith.constant -1 : i32
    %221 = vector.broadcast %c-1_i32_71 : i32 to vector<32x1xi32>
    %222 = arith.addi %178, %221 : vector<32x1xi32>
    %c32_i32_72 = arith.constant 32 : i32
    %223 = vector.broadcast %c32_i32_72 : i32 to vector<32x1xi32>
    %224 = arith.cmpi slt, %222, %223 : vector<32x1xi32>
    %225 = arith.andi %220, %224 : vector<32x1xi1>
    %226 = arith.extui %225 : vector<32x1xi1> to vector<32x1xi32>
    %227 = arith.sitofp %226 : vector<32x1xi32> to vector<32x1xf32>
    %228 = vector.broadcast %227 : vector<32x1xf32> to vector<32x128xf32>
    %229 = arith.mulf %216, %228 : vector<32x128xf32>
    %230 = vector.extract_strided_slice %177 {offsets = [2, 0], sizes = [1, 128], strides = [1, 1]} : vector<7x128xf32> to vector<1x128xf32>
    %231 = vector.broadcast %230 : vector<1x128xf32> to vector<32x128xf32>
    %232 = arith.mulf %229, %231 : vector<32x128xf32>
    %233 = arith.addf %215, %232 : vector<32x128xf32>
    %234 = vector.extract_strided_slice %177 {offsets = [3, 0], sizes = [1, 128], strides = [1, 1]} : vector<7x128xf32> to vector<1x128xf32>
    %235 = vector.broadcast %234 : vector<1x128xf32> to vector<32x128xf32>
    %236 = arith.mulf %176, %235 : vector<32x128xf32>
    %237 = arith.addf %233, %236 : vector<32x128xf32>
    %c31_i32_73 = arith.constant 31 : i32
    %238 = tpu.dynamic_rotate %176 by %c31_i32_73 dim 0 : vector<32x128xf32>, i32 -> vector<32x128xf32>
    %c1_i32_74 = arith.constant 1 : i32
    %239 = vector.broadcast %c1_i32_74 : i32 to vector<32x1xi32>
    %240 = arith.addi %178, %239 : vector<32x1xi32>
    %c0_i32_75 = arith.constant 0 : i32
    %241 = vector.broadcast %c0_i32_75 : i32 to vector<32x1xi32>
    %242 = arith.cmpi sge, %240, %241 : vector<32x1xi32>
    %c1_i32_76 = arith.constant 1 : i32
    %243 = vector.broadcast %c1_i32_76 : i32 to vector<32x1xi32>
    %244 = arith.addi %178, %243 : vector<32x1xi32>
    %c32_i32_77 = arith.constant 32 : i32
    %245 = vector.broadcast %c32_i32_77 : i32 to vector<32x1xi32>
    %246 = arith.cmpi slt, %244, %245 : vector<32x1xi32>
    %247 = arith.andi %242, %246 : vector<32x1xi1>
    %248 = arith.extui %247 : vector<32x1xi1> to vector<32x1xi32>
    %249 = arith.sitofp %248 : vector<32x1xi32> to vector<32x1xf32>
    %250 = vector.broadcast %249 : vector<32x1xf32> to vector<32x128xf32>
    %251 = arith.mulf %238, %250 : vector<32x128xf32>
    %252 = vector.extract_strided_slice %177 {offsets = [4, 0], sizes = [1, 128], strides = [1, 1]} : vector<7x128xf32> to vector<1x128xf32>
    %253 = vector.broadcast %252 : vector<1x128xf32> to vector<32x128xf32>
    %254 = arith.mulf %251, %253 : vector<32x128xf32>
    %255 = arith.addf %237, %254 : vector<32x128xf32>
    %c30_i32_78 = arith.constant 30 : i32
    %256 = tpu.dynamic_rotate %176 by %c30_i32_78 dim 0 : vector<32x128xf32>, i32 -> vector<32x128xf32>
    %c2_i32_79 = arith.constant 2 : i32
    %257 = vector.broadcast %c2_i32_79 : i32 to vector<32x1xi32>
    %258 = arith.addi %178, %257 : vector<32x1xi32>
    %c0_i32_80 = arith.constant 0 : i32
    %259 = vector.broadcast %c0_i32_80 : i32 to vector<32x1xi32>
    %260 = arith.cmpi sge, %258, %259 : vector<32x1xi32>
    %c2_i32_81 = arith.constant 2 : i32
    %261 = vector.broadcast %c2_i32_81 : i32 to vector<32x1xi32>
    %262 = arith.addi %178, %261 : vector<32x1xi32>
    %c32_i32_82 = arith.constant 32 : i32
    %263 = vector.broadcast %c32_i32_82 : i32 to vector<32x1xi32>
    %264 = arith.cmpi slt, %262, %263 : vector<32x1xi32>
    %265 = arith.andi %260, %264 : vector<32x1xi1>
    %266 = arith.extui %265 : vector<32x1xi1> to vector<32x1xi32>
    %267 = arith.sitofp %266 : vector<32x1xi32> to vector<32x1xf32>
    %268 = vector.broadcast %267 : vector<32x1xf32> to vector<32x128xf32>
    %269 = arith.mulf %256, %268 : vector<32x128xf32>
    %270 = vector.extract_strided_slice %177 {offsets = [5, 0], sizes = [1, 128], strides = [1, 1]} : vector<7x128xf32> to vector<1x128xf32>
    %271 = vector.broadcast %270 : vector<1x128xf32> to vector<32x128xf32>
    %272 = arith.mulf %269, %271 : vector<32x128xf32>
    %273 = arith.addf %255, %272 : vector<32x128xf32>
    %c29_i32_83 = arith.constant 29 : i32
    %274 = tpu.dynamic_rotate %176 by %c29_i32_83 dim 0 : vector<32x128xf32>, i32 -> vector<32x128xf32>
    %c3_i32_84 = arith.constant 3 : i32
    %275 = vector.broadcast %c3_i32_84 : i32 to vector<32x1xi32>
    %276 = arith.addi %178, %275 : vector<32x1xi32>
    %c0_i32_85 = arith.constant 0 : i32
    %277 = vector.broadcast %c0_i32_85 : i32 to vector<32x1xi32>
    %278 = arith.cmpi sge, %276, %277 : vector<32x1xi32>
    %c3_i32_86 = arith.constant 3 : i32
    %279 = vector.broadcast %c3_i32_86 : i32 to vector<32x1xi32>
    %280 = arith.addi %178, %279 : vector<32x1xi32>
    %c32_i32_87 = arith.constant 32 : i32
    %281 = vector.broadcast %c32_i32_87 : i32 to vector<32x1xi32>
    %282 = arith.cmpi slt, %280, %281 : vector<32x1xi32>
    %283 = arith.andi %278, %282 : vector<32x1xi1>
    %284 = arith.extui %283 : vector<32x1xi1> to vector<32x1xi32>
    %285 = arith.sitofp %284 : vector<32x1xi32> to vector<32x1xf32>
    %286 = vector.broadcast %285 : vector<32x1xf32> to vector<32x128xf32>
    %287 = arith.mulf %274, %286 : vector<32x128xf32>
    %288 = vector.extract_strided_slice %177 {offsets = [6, 0], sizes = [1, 128], strides = [1, 1]} : vector<7x128xf32> to vector<1x128xf32>
    %289 = vector.broadcast %288 : vector<1x128xf32> to vector<32x128xf32>
    %290 = arith.mulf %287, %289 : vector<32x128xf32>
    %291 = arith.addf %273, %290 : vector<32x128xf32>
    %c0_88 = arith.constant 0 : index
    %c0_89 = arith.constant 0 : index
    %292 = vector.load %arg9[%c0_88, %c0_89] : memref<1x128xf32, #tpu.memory_space<vmem>>, vector<1x128xf32>
    %293 = vector.broadcast %292 : vector<1x128xf32> to vector<32x128xf32>
    %294 = arith.addf %291, %293 : vector<32x128xf32>
    %cst_90 = arith.constant 0.000000e+00 : f32
    %295 = vector.broadcast %cst_90 : f32 to vector<32x128xf32>
    %296 = arith.maximumf %294, %295 : vector<32x128xf32>
    %c0_91 = arith.constant 0 : index
    %c0_92 = arith.constant 0 : index
    %297 = vector.load %arg10[%c0_91, %c0_92] : memref<128x128xf32, #tpu.memory_space<vmem>>, vector<128x128xf32>
    %cst_93 = arith.constant dense<0.000000e+00> : vector<32x128xf32>
    %298 = tpu.matmul %296, %297, %cst_93 {dimension_numbers = #tpu.dot_dimension_numbers<[1], [0], [0], [1], [0, 0, 1, 1], [], []>} : vector<32x128xf32>, vector<128x128xf32>, vector<32x128xf32> -> vector<32x128xf32>
    %c0_94 = arith.constant 0 : index
    %c0_95 = arith.constant 0 : index
    %299 = vector.load %arg11[%c0_94, %c0_95] : memref<1x128xf32, #tpu.memory_space<vmem>>, vector<1x128xf32>
    %300 = vector.broadcast %299 : vector<1x128xf32> to vector<32x128xf32>
    %301 = arith.addf %298, %300 : vector<32x128xf32>
    %cst_96 = arith.constant 0.000000e+00 : f32
    %302 = vector.broadcast %cst_96 : f32 to vector<32x128xf32>
    %303 = arith.maximumf %301, %302 : vector<32x128xf32>
    %c31_i32_97 = arith.constant 31 : i32
    %304 = tpu.dynamic_rotate %303 by %c31_i32_97 dim 0 : vector<32x128xf32>, i32 -> vector<32x128xf32>
    %305 = arith.maximumf %303, %304 : vector<32x128xf32>
    %306 = tpu.iota {dimensions = array<i32: 0>} : vector<16x32xi32>
    %307 = tpu.iota {dimensions = array<i32: 1>} : vector<16x32xi32>
    %c2_i32_98 = arith.constant 2 : i32
    %308 = vector.broadcast %c2_i32_98 : i32 to vector<16x32xi32>
    %309 = arith.muli %308, %306 : vector<16x32xi32>
    %310 = arith.cmpi eq, %307, %309 : vector<16x32xi32>
    %311 = arith.extui %310 : vector<16x32xi1> to vector<16x32xi32>
    %312 = arith.sitofp %311 : vector<16x32xi32> to vector<16x32xf32>
    %cst_99 = arith.constant dense<0.000000e+00> : vector<16x128xf32>
    %313 = tpu.matmul %312, %305, %cst_99 {dimension_numbers = #tpu.dot_dimension_numbers<[1], [0], [0], [1], [0, 0, 1, 1], [], []>} : vector<16x32xf32>, vector<32x128xf32>, vector<16x128xf32> -> vector<16x128xf32>
    %c0_100 = arith.constant 0 : index
    %c0_101 = arith.constant 0 : index
    %314 = vector.load %arg12[%c0_100, %c0_101] : memref<7x128xf32, #tpu.memory_space<vmem>>, vector<7x128xf32>
    %315 = tpu.iota {dimensions = array<i32: 0>} : vector<16x1xi32>
    %cst_102 = arith.constant 0.000000e+00 : f32
    %316 = vector.broadcast %cst_102 : f32 to vector<16x128xf32>
    %c3_i32_103 = arith.constant 3 : i32
    %317 = tpu.dynamic_rotate %313 by %c3_i32_103 dim 0 : vector<16x128xf32>, i32 -> vector<16x128xf32>
    %c-3_i32_104 = arith.constant -3 : i32
    %318 = vector.broadcast %c-3_i32_104 : i32 to vector<16x1xi32>
    %319 = arith.addi %315, %318 : vector<16x1xi32>
    %c0_i32_105 = arith.constant 0 : i32
    %320 = vector.broadcast %c0_i32_105 : i32 to vector<16x1xi32>
    %321 = arith.cmpi sge, %319, %320 : vector<16x1xi32>
    %c-3_i32_106 = arith.constant -3 : i32
    %322 = vector.broadcast %c-3_i32_106 : i32 to vector<16x1xi32>
    %323 = arith.addi %315, %322 : vector<16x1xi32>
    %c16_i32 = arith.constant 16 : i32
    %324 = vector.broadcast %c16_i32 : i32 to vector<16x1xi32>
    %325 = arith.cmpi slt, %323, %324 : vector<16x1xi32>
    %326 = arith.andi %321, %325 : vector<16x1xi1>
    %327 = arith.extui %326 : vector<16x1xi1> to vector<16x1xi32>
    %328 = arith.sitofp %327 : vector<16x1xi32> to vector<16x1xf32>
    %329 = vector.broadcast %328 : vector<16x1xf32> to vector<16x128xf32>
    %330 = arith.mulf %317, %329 : vector<16x128xf32>
    %331 = vector.extract_strided_slice %314 {offsets = [0, 0], sizes = [1, 128], strides = [1, 1]} : vector<7x128xf32> to vector<1x128xf32>
    %332 = vector.broadcast %331 : vector<1x128xf32> to vector<16x128xf32>
    %333 = arith.mulf %330, %332 : vector<16x128xf32>
    %334 = arith.addf %316, %333 : vector<16x128xf32>
    %c2_i32_107 = arith.constant 2 : i32
    %335 = tpu.dynamic_rotate %313 by %c2_i32_107 dim 0 : vector<16x128xf32>, i32 -> vector<16x128xf32>
    %c-2_i32_108 = arith.constant -2 : i32
    %336 = vector.broadcast %c-2_i32_108 : i32 to vector<16x1xi32>
    %337 = arith.addi %315, %336 : vector<16x1xi32>
    %c0_i32_109 = arith.constant 0 : i32
    %338 = vector.broadcast %c0_i32_109 : i32 to vector<16x1xi32>
    %339 = arith.cmpi sge, %337, %338 : vector<16x1xi32>
    %c-2_i32_110 = arith.constant -2 : i32
    %340 = vector.broadcast %c-2_i32_110 : i32 to vector<16x1xi32>
    %341 = arith.addi %315, %340 : vector<16x1xi32>
    %c16_i32_111 = arith.constant 16 : i32
    %342 = vector.broadcast %c16_i32_111 : i32 to vector<16x1xi32>
    %343 = arith.cmpi slt, %341, %342 : vector<16x1xi32>
    %344 = arith.andi %339, %343 : vector<16x1xi1>
    %345 = arith.extui %344 : vector<16x1xi1> to vector<16x1xi32>
    %346 = arith.sitofp %345 : vector<16x1xi32> to vector<16x1xf32>
    %347 = vector.broadcast %346 : vector<16x1xf32> to vector<16x128xf32>
    %348 = arith.mulf %335, %347 : vector<16x128xf32>
    %349 = vector.extract_strided_slice %314 {offsets = [1, 0], sizes = [1, 128], strides = [1, 1]} : vector<7x128xf32> to vector<1x128xf32>
    %350 = vector.broadcast %349 : vector<1x128xf32> to vector<16x128xf32>
    %351 = arith.mulf %348, %350 : vector<16x128xf32>
    %352 = arith.addf %334, %351 : vector<16x128xf32>
    %c1_i32_112 = arith.constant 1 : i32
    %353 = tpu.dynamic_rotate %313 by %c1_i32_112 dim 0 : vector<16x128xf32>, i32 -> vector<16x128xf32>
    %c-1_i32_113 = arith.constant -1 : i32
    %354 = vector.broadcast %c-1_i32_113 : i32 to vector<16x1xi32>
    %355 = arith.addi %315, %354 : vector<16x1xi32>
    %c0_i32_114 = arith.constant 0 : i32
    %356 = vector.broadcast %c0_i32_114 : i32 to vector<16x1xi32>
    %357 = arith.cmpi sge, %355, %356 : vector<16x1xi32>
    %c-1_i32_115 = arith.constant -1 : i32
    %358 = vector.broadcast %c-1_i32_115 : i32 to vector<16x1xi32>
    %359 = arith.addi %315, %358 : vector<16x1xi32>
    %c16_i32_116 = arith.constant 16 : i32
    %360 = vector.broadcast %c16_i32_116 : i32 to vector<16x1xi32>
    %361 = arith.cmpi slt, %359, %360 : vector<16x1xi32>
    %362 = arith.andi %357, %361 : vector<16x1xi1>
    %363 = arith.extui %362 : vector<16x1xi1> to vector<16x1xi32>
    %364 = arith.sitofp %363 : vector<16x1xi32> to vector<16x1xf32>
    %365 = vector.broadcast %364 : vector<16x1xf32> to vector<16x128xf32>
    %366 = arith.mulf %353, %365 : vector<16x128xf32>
    %367 = vector.extract_strided_slice %314 {offsets = [2, 0], sizes = [1, 128], strides = [1, 1]} : vector<7x128xf32> to vector<1x128xf32>
    %368 = vector.broadcast %367 : vector<1x128xf32> to vector<16x128xf32>
    %369 = arith.mulf %366, %368 : vector<16x128xf32>
    %370 = arith.addf %352, %369 : vector<16x128xf32>
    %371 = vector.extract_strided_slice %314 {offsets = [3, 0], sizes = [1, 128], strides = [1, 1]} : vector<7x128xf32> to vector<1x128xf32>
    %372 = vector.broadcast %371 : vector<1x128xf32> to vector<16x128xf32>
    %373 = arith.mulf %313, %372 : vector<16x128xf32>
    %374 = arith.addf %370, %373 : vector<16x128xf32>
    %c15_i32 = arith.constant 15 : i32
    %375 = tpu.dynamic_rotate %313 by %c15_i32 dim 0 : vector<16x128xf32>, i32 -> vector<16x128xf32>
    %c1_i32_117 = arith.constant 1 : i32
    %376 = vector.broadcast %c1_i32_117 : i32 to vector<16x1xi32>
    %377 = arith.addi %315, %376 : vector<16x1xi32>
    %c0_i32_118 = arith.constant 0 : i32
    %378 = vector.broadcast %c0_i32_118 : i32 to vector<16x1xi32>
    %379 = arith.cmpi sge, %377, %378 : vector<16x1xi32>
    %c1_i32_119 = arith.constant 1 : i32
    %380 = vector.broadcast %c1_i32_119 : i32 to vector<16x1xi32>
    %381 = arith.addi %315, %380 : vector<16x1xi32>
    %c16_i32_120 = arith.constant 16 : i32
    %382 = vector.broadcast %c16_i32_120 : i32 to vector<16x1xi32>
    %383 = arith.cmpi slt, %381, %382 : vector<16x1xi32>
    %384 = arith.andi %379, %383 : vector<16x1xi1>
    %385 = arith.extui %384 : vector<16x1xi1> to vector<16x1xi32>
    %386 = arith.sitofp %385 : vector<16x1xi32> to vector<16x1xf32>
    %387 = vector.broadcast %386 : vector<16x1xf32> to vector<16x128xf32>
    %388 = arith.mulf %375, %387 : vector<16x128xf32>
    %389 = vector.extract_strided_slice %314 {offsets = [4, 0], sizes = [1, 128], strides = [1, 1]} : vector<7x128xf32> to vector<1x128xf32>
    %390 = vector.broadcast %389 : vector<1x128xf32> to vector<16x128xf32>
    %391 = arith.mulf %388, %390 : vector<16x128xf32>
    %392 = arith.addf %374, %391 : vector<16x128xf32>
    %c14_i32 = arith.constant 14 : i32
    %393 = tpu.dynamic_rotate %313 by %c14_i32 dim 0 : vector<16x128xf32>, i32 -> vector<16x128xf32>
    %c2_i32_121 = arith.constant 2 : i32
    %394 = vector.broadcast %c2_i32_121 : i32 to vector<16x1xi32>
    %395 = arith.addi %315, %394 : vector<16x1xi32>
    %c0_i32_122 = arith.constant 0 : i32
    %396 = vector.broadcast %c0_i32_122 : i32 to vector<16x1xi32>
    %397 = arith.cmpi sge, %395, %396 : vector<16x1xi32>
    %c2_i32_123 = arith.constant 2 : i32
    %398 = vector.broadcast %c2_i32_123 : i32 to vector<16x1xi32>
    %399 = arith.addi %315, %398 : vector<16x1xi32>
    %c16_i32_124 = arith.constant 16 : i32
    %400 = vector.broadcast %c16_i32_124 : i32 to vector<16x1xi32>
    %401 = arith.cmpi slt, %399, %400 : vector<16x1xi32>
    %402 = arith.andi %397, %401 : vector<16x1xi1>
    %403 = arith.extui %402 : vector<16x1xi1> to vector<16x1xi32>
    %404 = arith.sitofp %403 : vector<16x1xi32> to vector<16x1xf32>
    %405 = vector.broadcast %404 : vector<16x1xf32> to vector<16x128xf32>
    %406 = arith.mulf %393, %405 : vector<16x128xf32>
    %407 = vector.extract_strided_slice %314 {offsets = [5, 0], sizes = [1, 128], strides = [1, 1]} : vector<7x128xf32> to vector<1x128xf32>
    %408 = vector.broadcast %407 : vector<1x128xf32> to vector<16x128xf32>
    %409 = arith.mulf %406, %408 : vector<16x128xf32>
    %410 = arith.addf %392, %409 : vector<16x128xf32>
    %c13_i32 = arith.constant 13 : i32
    %411 = tpu.dynamic_rotate %313 by %c13_i32 dim 0 : vector<16x128xf32>, i32 -> vector<16x128xf32>
    %c3_i32_125 = arith.constant 3 : i32
    %412 = vector.broadcast %c3_i32_125 : i32 to vector<16x1xi32>
    %413 = arith.addi %315, %412 : vector<16x1xi32>
    %c0_i32_126 = arith.constant 0 : i32
    %414 = vector.broadcast %c0_i32_126 : i32 to vector<16x1xi32>
    %415 = arith.cmpi sge, %413, %414 : vector<16x1xi32>
    %c3_i32_127 = arith.constant 3 : i32
    %416 = vector.broadcast %c3_i32_127 : i32 to vector<16x1xi32>
    %417 = arith.addi %315, %416 : vector<16x1xi32>
    %c16_i32_128 = arith.constant 16 : i32
    %418 = vector.broadcast %c16_i32_128 : i32 to vector<16x1xi32>
    %419 = arith.cmpi slt, %417, %418 : vector<16x1xi32>
    %420 = arith.andi %415, %419 : vector<16x1xi1>
    %421 = arith.extui %420 : vector<16x1xi1> to vector<16x1xi32>
    %422 = arith.sitofp %421 : vector<16x1xi32> to vector<16x1xf32>
    %423 = vector.broadcast %422 : vector<16x1xf32> to vector<16x128xf32>
    %424 = arith.mulf %411, %423 : vector<16x128xf32>
    %425 = vector.extract_strided_slice %314 {offsets = [6, 0], sizes = [1, 128], strides = [1, 1]} : vector<7x128xf32> to vector<1x128xf32>
    %426 = vector.broadcast %425 : vector<1x128xf32> to vector<16x128xf32>
    %427 = arith.mulf %424, %426 : vector<16x128xf32>
    %428 = arith.addf %410, %427 : vector<16x128xf32>
    %c0_129 = arith.constant 0 : index
    %c0_130 = arith.constant 0 : index
    %429 = vector.load %arg13[%c0_129, %c0_130] : memref<1x128xf32, #tpu.memory_space<vmem>>, vector<1x128xf32>
    %430 = vector.broadcast %429 : vector<1x128xf32> to vector<16x128xf32>
    %431 = arith.addf %428, %430 : vector<16x128xf32>
    %cst_131 = arith.constant 0.000000e+00 : f32
    %432 = vector.broadcast %cst_131 : f32 to vector<16x128xf32>
    %433 = arith.maximumf %431, %432 : vector<16x128xf32>
    %c0_132 = arith.constant 0 : index
    %c0_133 = arith.constant 0 : index
    %434 = vector.load %arg14[%c0_132, %c0_133] : memref<128x128xf32, #tpu.memory_space<vmem>>, vector<128x128xf32>
    %cst_134 = arith.constant dense<0.000000e+00> : vector<16x128xf32>
    %435 = tpu.matmul %433, %434, %cst_134 {dimension_numbers = #tpu.dot_dimension_numbers<[1], [0], [0], [1], [0, 0, 1, 1], [], []>} : vector<16x128xf32>, vector<128x128xf32>, vector<16x128xf32> -> vector<16x128xf32>
    %c0_135 = arith.constant 0 : index
    %c0_136 = arith.constant 0 : index
    %436 = vector.load %arg15[%c0_135, %c0_136] : memref<1x128xf32, #tpu.memory_space<vmem>>, vector<1x128xf32>
    %437 = vector.broadcast %436 : vector<1x128xf32> to vector<16x128xf32>
    %438 = arith.addf %435, %437 : vector<16x128xf32>
    %cst_137 = arith.constant 0.000000e+00 : f32
    %439 = vector.broadcast %cst_137 : f32 to vector<16x128xf32>
    %440 = arith.maximumf %438, %439 : vector<16x128xf32>
    %c0_138 = arith.constant 0 : index
    %c0_139 = arith.constant 0 : index
    %441 = vector.load %arg16[%c0_138, %c0_139] : memref<7x128xf32, #tpu.memory_space<vmem>>, vector<7x128xf32>
    %442 = tpu.iota {dimensions = array<i32: 0>} : vector<16x1xi32>
    %cst_140 = arith.constant 0.000000e+00 : f32
    %443 = vector.broadcast %cst_140 : f32 to vector<16x128xf32>
    %c3_i32_141 = arith.constant 3 : i32
    %444 = tpu.dynamic_rotate %440 by %c3_i32_141 dim 0 : vector<16x128xf32>, i32 -> vector<16x128xf32>
    %c-3_i32_142 = arith.constant -3 : i32
    %445 = vector.broadcast %c-3_i32_142 : i32 to vector<16x1xi32>
    %446 = arith.addi %442, %445 : vector<16x1xi32>
    %c0_i32_143 = arith.constant 0 : i32
    %447 = vector.broadcast %c0_i32_143 : i32 to vector<16x1xi32>
    %448 = arith.cmpi sge, %446, %447 : vector<16x1xi32>
    %c-3_i32_144 = arith.constant -3 : i32
    %449 = vector.broadcast %c-3_i32_144 : i32 to vector<16x1xi32>
    %450 = arith.addi %442, %449 : vector<16x1xi32>
    %c16_i32_145 = arith.constant 16 : i32
    %451 = vector.broadcast %c16_i32_145 : i32 to vector<16x1xi32>
    %452 = arith.cmpi slt, %450, %451 : vector<16x1xi32>
    %453 = arith.andi %448, %452 : vector<16x1xi1>
    %454 = arith.extui %453 : vector<16x1xi1> to vector<16x1xi32>
    %455 = arith.sitofp %454 : vector<16x1xi32> to vector<16x1xf32>
    %456 = vector.broadcast %455 : vector<16x1xf32> to vector<16x128xf32>
    %457 = arith.mulf %444, %456 : vector<16x128xf32>
    %458 = vector.extract_strided_slice %441 {offsets = [0, 0], sizes = [1, 128], strides = [1, 1]} : vector<7x128xf32> to vector<1x128xf32>
    %459 = vector.broadcast %458 : vector<1x128xf32> to vector<16x128xf32>
    %460 = arith.mulf %457, %459 : vector<16x128xf32>
    %461 = arith.addf %443, %460 : vector<16x128xf32>
    %c2_i32_146 = arith.constant 2 : i32
    %462 = tpu.dynamic_rotate %440 by %c2_i32_146 dim 0 : vector<16x128xf32>, i32 -> vector<16x128xf32>
    %c-2_i32_147 = arith.constant -2 : i32
    %463 = vector.broadcast %c-2_i32_147 : i32 to vector<16x1xi32>
    %464 = arith.addi %442, %463 : vector<16x1xi32>
    %c0_i32_148 = arith.constant 0 : i32
    %465 = vector.broadcast %c0_i32_148 : i32 to vector<16x1xi32>
    %466 = arith.cmpi sge, %464, %465 : vector<16x1xi32>
    %c-2_i32_149 = arith.constant -2 : i32
    %467 = vector.broadcast %c-2_i32_149 : i32 to vector<16x1xi32>
    %468 = arith.addi %442, %467 : vector<16x1xi32>
    %c16_i32_150 = arith.constant 16 : i32
    %469 = vector.broadcast %c16_i32_150 : i32 to vector<16x1xi32>
    %470 = arith.cmpi slt, %468, %469 : vector<16x1xi32>
    %471 = arith.andi %466, %470 : vector<16x1xi1>
    %472 = arith.extui %471 : vector<16x1xi1> to vector<16x1xi32>
    %473 = arith.sitofp %472 : vector<16x1xi32> to vector<16x1xf32>
    %474 = vector.broadcast %473 : vector<16x1xf32> to vector<16x128xf32>
    %475 = arith.mulf %462, %474 : vector<16x128xf32>
    %476 = vector.extract_strided_slice %441 {offsets = [1, 0], sizes = [1, 128], strides = [1, 1]} : vector<7x128xf32> to vector<1x128xf32>
    %477 = vector.broadcast %476 : vector<1x128xf32> to vector<16x128xf32>
    %478 = arith.mulf %475, %477 : vector<16x128xf32>
    %479 = arith.addf %461, %478 : vector<16x128xf32>
    %c1_i32_151 = arith.constant 1 : i32
    %480 = tpu.dynamic_rotate %440 by %c1_i32_151 dim 0 : vector<16x128xf32>, i32 -> vector<16x128xf32>
    %c-1_i32_152 = arith.constant -1 : i32
    %481 = vector.broadcast %c-1_i32_152 : i32 to vector<16x1xi32>
    %482 = arith.addi %442, %481 : vector<16x1xi32>
    %c0_i32_153 = arith.constant 0 : i32
    %483 = vector.broadcast %c0_i32_153 : i32 to vector<16x1xi32>
    %484 = arith.cmpi sge, %482, %483 : vector<16x1xi32>
    %c-1_i32_154 = arith.constant -1 : i32
    %485 = vector.broadcast %c-1_i32_154 : i32 to vector<16x1xi32>
    %486 = arith.addi %442, %485 : vector<16x1xi32>
    %c16_i32_155 = arith.constant 16 : i32
    %487 = vector.broadcast %c16_i32_155 : i32 to vector<16x1xi32>
    %488 = arith.cmpi slt, %486, %487 : vector<16x1xi32>
    %489 = arith.andi %484, %488 : vector<16x1xi1>
    %490 = arith.extui %489 : vector<16x1xi1> to vector<16x1xi32>
    %491 = arith.sitofp %490 : vector<16x1xi32> to vector<16x1xf32>
    %492 = vector.broadcast %491 : vector<16x1xf32> to vector<16x128xf32>
    %493 = arith.mulf %480, %492 : vector<16x128xf32>
    %494 = vector.extract_strided_slice %441 {offsets = [2, 0], sizes = [1, 128], strides = [1, 1]} : vector<7x128xf32> to vector<1x128xf32>
    %495 = vector.broadcast %494 : vector<1x128xf32> to vector<16x128xf32>
    %496 = arith.mulf %493, %495 : vector<16x128xf32>
    %497 = arith.addf %479, %496 : vector<16x128xf32>
    %498 = vector.extract_strided_slice %441 {offsets = [3, 0], sizes = [1, 128], strides = [1, 1]} : vector<7x128xf32> to vector<1x128xf32>
    %499 = vector.broadcast %498 : vector<1x128xf32> to vector<16x128xf32>
    %500 = arith.mulf %440, %499 : vector<16x128xf32>
    %501 = arith.addf %497, %500 : vector<16x128xf32>
    %c15_i32_156 = arith.constant 15 : i32
    %502 = tpu.dynamic_rotate %440 by %c15_i32_156 dim 0 : vector<16x128xf32>, i32 -> vector<16x128xf32>
    %c1_i32_157 = arith.constant 1 : i32
    %503 = vector.broadcast %c1_i32_157 : i32 to vector<16x1xi32>
    %504 = arith.addi %442, %503 : vector<16x1xi32>
    %c0_i32_158 = arith.constant 0 : i32
    %505 = vector.broadcast %c0_i32_158 : i32 to vector<16x1xi32>
    %506 = arith.cmpi sge, %504, %505 : vector<16x1xi32>
    %c1_i32_159 = arith.constant 1 : i32
    %507 = vector.broadcast %c1_i32_159 : i32 to vector<16x1xi32>
    %508 = arith.addi %442, %507 : vector<16x1xi32>
    %c16_i32_160 = arith.constant 16 : i32
    %509 = vector.broadcast %c16_i32_160 : i32 to vector<16x1xi32>
    %510 = arith.cmpi slt, %508, %509 : vector<16x1xi32>
    %511 = arith.andi %506, %510 : vector<16x1xi1>
    %512 = arith.extui %511 : vector<16x1xi1> to vector<16x1xi32>
    %513 = arith.sitofp %512 : vector<16x1xi32> to vector<16x1xf32>
    %514 = vector.broadcast %513 : vector<16x1xf32> to vector<16x128xf32>
    %515 = arith.mulf %502, %514 : vector<16x128xf32>
    %516 = vector.extract_strided_slice %441 {offsets = [4, 0], sizes = [1, 128], strides = [1, 1]} : vector<7x128xf32> to vector<1x128xf32>
    %517 = vector.broadcast %516 : vector<1x128xf32> to vector<16x128xf32>
    %518 = arith.mulf %515, %517 : vector<16x128xf32>
    %519 = arith.addf %501, %518 : vector<16x128xf32>
    %c14_i32_161 = arith.constant 14 : i32
    %520 = tpu.dynamic_rotate %440 by %c14_i32_161 dim 0 : vector<16x128xf32>, i32 -> vector<16x128xf32>
    %c2_i32_162 = arith.constant 2 : i32
    %521 = vector.broadcast %c2_i32_162 : i32 to vector<16x1xi32>
    %522 = arith.addi %442, %521 : vector<16x1xi32>
    %c0_i32_163 = arith.constant 0 : i32
    %523 = vector.broadcast %c0_i32_163 : i32 to vector<16x1xi32>
    %524 = arith.cmpi sge, %522, %523 : vector<16x1xi32>
    %c2_i32_164 = arith.constant 2 : i32
    %525 = vector.broadcast %c2_i32_164 : i32 to vector<16x1xi32>
    %526 = arith.addi %442, %525 : vector<16x1xi32>
    %c16_i32_165 = arith.constant 16 : i32
    %527 = vector.broadcast %c16_i32_165 : i32 to vector<16x1xi32>
    %528 = arith.cmpi slt, %526, %527 : vector<16x1xi32>
    %529 = arith.andi %524, %528 : vector<16x1xi1>
    %530 = arith.extui %529 : vector<16x1xi1> to vector<16x1xi32>
    %531 = arith.sitofp %530 : vector<16x1xi32> to vector<16x1xf32>
    %532 = vector.broadcast %531 : vector<16x1xf32> to vector<16x128xf32>
    %533 = arith.mulf %520, %532 : vector<16x128xf32>
    %534 = vector.extract_strided_slice %441 {offsets = [5, 0], sizes = [1, 128], strides = [1, 1]} : vector<7x128xf32> to vector<1x128xf32>
    %535 = vector.broadcast %534 : vector<1x128xf32> to vector<16x128xf32>
    %536 = arith.mulf %533, %535 : vector<16x128xf32>
    %537 = arith.addf %519, %536 : vector<16x128xf32>
    %c13_i32_166 = arith.constant 13 : i32
    %538 = tpu.dynamic_rotate %440 by %c13_i32_166 dim 0 : vector<16x128xf32>, i32 -> vector<16x128xf32>
    %c3_i32_167 = arith.constant 3 : i32
    %539 = vector.broadcast %c3_i32_167 : i32 to vector<16x1xi32>
    %540 = arith.addi %442, %539 : vector<16x1xi32>
    %c0_i32_168 = arith.constant 0 : i32
    %541 = vector.broadcast %c0_i32_168 : i32 to vector<16x1xi32>
    %542 = arith.cmpi sge, %540, %541 : vector<16x1xi32>
    %c3_i32_169 = arith.constant 3 : i32
    %543 = vector.broadcast %c3_i32_169 : i32 to vector<16x1xi32>
    %544 = arith.addi %442, %543 : vector<16x1xi32>
    %c16_i32_170 = arith.constant 16 : i32
    %545 = vector.broadcast %c16_i32_170 : i32 to vector<16x1xi32>
    %546 = arith.cmpi slt, %544, %545 : vector<16x1xi32>
    %547 = arith.andi %542, %546 : vector<16x1xi1>
    %548 = arith.extui %547 : vector<16x1xi1> to vector<16x1xi32>
    %549 = arith.sitofp %548 : vector<16x1xi32> to vector<16x1xf32>
    %550 = vector.broadcast %549 : vector<16x1xf32> to vector<16x128xf32>
    %551 = arith.mulf %538, %550 : vector<16x128xf32>
    %552 = vector.extract_strided_slice %441 {offsets = [6, 0], sizes = [1, 128], strides = [1, 1]} : vector<7x128xf32> to vector<1x128xf32>
    %553 = vector.broadcast %552 : vector<1x128xf32> to vector<16x128xf32>
    %554 = arith.mulf %551, %553 : vector<16x128xf32>
    %555 = arith.addf %537, %554 : vector<16x128xf32>
    %c0_171 = arith.constant 0 : index
    %c0_172 = arith.constant 0 : index
    %556 = vector.load %arg17[%c0_171, %c0_172] : memref<1x128xf32, #tpu.memory_space<vmem>>, vector<1x128xf32>
    %557 = vector.broadcast %556 : vector<1x128xf32> to vector<16x128xf32>
    %558 = arith.addf %555, %557 : vector<16x128xf32>
    %cst_173 = arith.constant 0.000000e+00 : f32
    %559 = vector.broadcast %cst_173 : f32 to vector<16x128xf32>
    %560 = arith.maximumf %558, %559 : vector<16x128xf32>
    %c0_174 = arith.constant 0 : index
    %c0_175 = arith.constant 0 : index
    %561 = vector.load %arg18[%c0_174, %c0_175] : memref<128x128xf32, #tpu.memory_space<vmem>>, vector<128x128xf32>
    %cst_176 = arith.constant dense<0.000000e+00> : vector<16x128xf32>
    %562 = tpu.matmul %560, %561, %cst_176 {dimension_numbers = #tpu.dot_dimension_numbers<[1], [0], [0], [1], [0, 0, 1, 1], [], []>} : vector<16x128xf32>, vector<128x128xf32>, vector<16x128xf32> -> vector<16x128xf32>
    %c0_177 = arith.constant 0 : index
    %c0_178 = arith.constant 0 : index
    %563 = vector.load %arg19[%c0_177, %c0_178] : memref<1x128xf32, #tpu.memory_space<vmem>>, vector<1x128xf32>
    %564 = vector.broadcast %563 : vector<1x128xf32> to vector<16x128xf32>
    %565 = arith.addf %562, %564 : vector<16x128xf32>
    %cst_179 = arith.constant 0.000000e+00 : f32
    %566 = vector.broadcast %cst_179 : f32 to vector<16x128xf32>
    %567 = arith.maximumf %565, %566 : vector<16x128xf32>
    %c15_i32_180 = arith.constant 15 : i32
    %568 = tpu.dynamic_rotate %567 by %c15_i32_180 dim 0 : vector<16x128xf32>, i32 -> vector<16x128xf32>
    %569 = arith.maximumf %567, %568 : vector<16x128xf32>
    %570 = tpu.iota {dimensions = array<i32: 0>} : vector<8x16xi32>
    %571 = tpu.iota {dimensions = array<i32: 1>} : vector<8x16xi32>
    %c2_i32_181 = arith.constant 2 : i32
    %572 = vector.broadcast %c2_i32_181 : i32 to vector<8x16xi32>
    %573 = arith.muli %572, %570 : vector<8x16xi32>
    %574 = arith.cmpi eq, %571, %573 : vector<8x16xi32>
    %575 = arith.extui %574 : vector<8x16xi1> to vector<8x16xi32>
    %576 = arith.sitofp %575 : vector<8x16xi32> to vector<8x16xf32>
    %cst_182 = arith.constant dense<0.000000e+00> : vector<8x128xf32>
    %577 = tpu.matmul %576, %569, %cst_182 {dimension_numbers = #tpu.dot_dimension_numbers<[1], [0], [0], [1], [0, 0, 1, 1], [], []>} : vector<8x16xf32>, vector<16x128xf32>, vector<8x128xf32> -> vector<8x128xf32>
    %c0_183 = arith.constant 0 : index
    %c0_184 = arith.constant 0 : index
    %578 = vector.load %arg20[%c0_183, %c0_184] : memref<7x128xf32, #tpu.memory_space<vmem>>, vector<7x128xf32>
    %579 = tpu.iota {dimensions = array<i32: 0>} : vector<8x1xi32>
    %cst_185 = arith.constant 0.000000e+00 : f32
    %580 = vector.broadcast %cst_185 : f32 to vector<8x128xf32>
    %c3_i32_186 = arith.constant 3 : i32
    %581 = tpu.dynamic_rotate %577 by %c3_i32_186 dim 0 : vector<8x128xf32>, i32 -> vector<8x128xf32>
    %c-3_i32_187 = arith.constant -3 : i32
    %582 = vector.broadcast %c-3_i32_187 : i32 to vector<8x1xi32>
    %583 = arith.addi %579, %582 : vector<8x1xi32>
    %c0_i32_188 = arith.constant 0 : i32
    %584 = vector.broadcast %c0_i32_188 : i32 to vector<8x1xi32>
    %585 = arith.cmpi sge, %583, %584 : vector<8x1xi32>
    %c-3_i32_189 = arith.constant -3 : i32
    %586 = vector.broadcast %c-3_i32_189 : i32 to vector<8x1xi32>
    %587 = arith.addi %579, %586 : vector<8x1xi32>
    %c8_i32 = arith.constant 8 : i32
    %588 = vector.broadcast %c8_i32 : i32 to vector<8x1xi32>
    %589 = arith.cmpi slt, %587, %588 : vector<8x1xi32>
    %590 = arith.andi %585, %589 : vector<8x1xi1>
    %591 = arith.extui %590 : vector<8x1xi1> to vector<8x1xi32>
    %592 = arith.sitofp %591 : vector<8x1xi32> to vector<8x1xf32>
    %593 = vector.broadcast %592 : vector<8x1xf32> to vector<8x128xf32>
    %594 = arith.mulf %581, %593 : vector<8x128xf32>
    %595 = vector.extract_strided_slice %578 {offsets = [0, 0], sizes = [1, 128], strides = [1, 1]} : vector<7x128xf32> to vector<1x128xf32>
    %596 = vector.broadcast %595 : vector<1x128xf32> to vector<8x128xf32>
    %597 = arith.mulf %594, %596 : vector<8x128xf32>
    %598 = arith.addf %580, %597 : vector<8x128xf32>
    %c2_i32_190 = arith.constant 2 : i32
    %599 = tpu.dynamic_rotate %577 by %c2_i32_190 dim 0 : vector<8x128xf32>, i32 -> vector<8x128xf32>
    %c-2_i32_191 = arith.constant -2 : i32
    %600 = vector.broadcast %c-2_i32_191 : i32 to vector<8x1xi32>
    %601 = arith.addi %579, %600 : vector<8x1xi32>
    %c0_i32_192 = arith.constant 0 : i32
    %602 = vector.broadcast %c0_i32_192 : i32 to vector<8x1xi32>
    %603 = arith.cmpi sge, %601, %602 : vector<8x1xi32>
    %c-2_i32_193 = arith.constant -2 : i32
    %604 = vector.broadcast %c-2_i32_193 : i32 to vector<8x1xi32>
    %605 = arith.addi %579, %604 : vector<8x1xi32>
    %c8_i32_194 = arith.constant 8 : i32
    %606 = vector.broadcast %c8_i32_194 : i32 to vector<8x1xi32>
    %607 = arith.cmpi slt, %605, %606 : vector<8x1xi32>
    %608 = arith.andi %603, %607 : vector<8x1xi1>
    %609 = arith.extui %608 : vector<8x1xi1> to vector<8x1xi32>
    %610 = arith.sitofp %609 : vector<8x1xi32> to vector<8x1xf32>
    %611 = vector.broadcast %610 : vector<8x1xf32> to vector<8x128xf32>
    %612 = arith.mulf %599, %611 : vector<8x128xf32>
    %613 = vector.extract_strided_slice %578 {offsets = [1, 0], sizes = [1, 128], strides = [1, 1]} : vector<7x128xf32> to vector<1x128xf32>
    %614 = vector.broadcast %613 : vector<1x128xf32> to vector<8x128xf32>
    %615 = arith.mulf %612, %614 : vector<8x128xf32>
    %616 = arith.addf %598, %615 : vector<8x128xf32>
    %c1_i32_195 = arith.constant 1 : i32
    %617 = tpu.dynamic_rotate %577 by %c1_i32_195 dim 0 : vector<8x128xf32>, i32 -> vector<8x128xf32>
    %c-1_i32_196 = arith.constant -1 : i32
    %618 = vector.broadcast %c-1_i32_196 : i32 to vector<8x1xi32>
    %619 = arith.addi %579, %618 : vector<8x1xi32>
    %c0_i32_197 = arith.constant 0 : i32
    %620 = vector.broadcast %c0_i32_197 : i32 to vector<8x1xi32>
    %621 = arith.cmpi sge, %619, %620 : vector<8x1xi32>
    %c-1_i32_198 = arith.constant -1 : i32
    %622 = vector.broadcast %c-1_i32_198 : i32 to vector<8x1xi32>
    %623 = arith.addi %579, %622 : vector<8x1xi32>
    %c8_i32_199 = arith.constant 8 : i32
    %624 = vector.broadcast %c8_i32_199 : i32 to vector<8x1xi32>
    %625 = arith.cmpi slt, %623, %624 : vector<8x1xi32>
    %626 = arith.andi %621, %625 : vector<8x1xi1>
    %627 = arith.extui %626 : vector<8x1xi1> to vector<8x1xi32>
    %628 = arith.sitofp %627 : vector<8x1xi32> to vector<8x1xf32>
    %629 = vector.broadcast %628 : vector<8x1xf32> to vector<8x128xf32>
    %630 = arith.mulf %617, %629 : vector<8x128xf32>
    %631 = vector.extract_strided_slice %578 {offsets = [2, 0], sizes = [1, 128], strides = [1, 1]} : vector<7x128xf32> to vector<1x128xf32>
    %632 = vector.broadcast %631 : vector<1x128xf32> to vector<8x128xf32>
    %633 = arith.mulf %630, %632 : vector<8x128xf32>
    %634 = arith.addf %616, %633 : vector<8x128xf32>
    %635 = vector.extract_strided_slice %578 {offsets = [3, 0], sizes = [1, 128], strides = [1, 1]} : vector<7x128xf32> to vector<1x128xf32>
    %636 = vector.broadcast %635 : vector<1x128xf32> to vector<8x128xf32>
    %637 = arith.mulf %577, %636 : vector<8x128xf32>
    %638 = arith.addf %634, %637 : vector<8x128xf32>
    %c7_i32 = arith.constant 7 : i32
    %639 = tpu.dynamic_rotate %577 by %c7_i32 dim 0 : vector<8x128xf32>, i32 -> vector<8x128xf32>
    %c1_i32_200 = arith.constant 1 : i32
    %640 = vector.broadcast %c1_i32_200 : i32 to vector<8x1xi32>
    %641 = arith.addi %579, %640 : vector<8x1xi32>
    %c0_i32_201 = arith.constant 0 : i32
    %642 = vector.broadcast %c0_i32_201 : i32 to vector<8x1xi32>
    %643 = arith.cmpi sge, %641, %642 : vector<8x1xi32>
    %c1_i32_202 = arith.constant 1 : i32
    %644 = vector.broadcast %c1_i32_202 : i32 to vector<8x1xi32>
    %645 = arith.addi %579, %644 : vector<8x1xi32>
    %c8_i32_203 = arith.constant 8 : i32
    %646 = vector.broadcast %c8_i32_203 : i32 to vector<8x1xi32>
    %647 = arith.cmpi slt, %645, %646 : vector<8x1xi32>
    %648 = arith.andi %643, %647 : vector<8x1xi1>
    %649 = arith.extui %648 : vector<8x1xi1> to vector<8x1xi32>
    %650 = arith.sitofp %649 : vector<8x1xi32> to vector<8x1xf32>
    %651 = vector.broadcast %650 : vector<8x1xf32> to vector<8x128xf32>
    %652 = arith.mulf %639, %651 : vector<8x128xf32>
    %653 = vector.extract_strided_slice %578 {offsets = [4, 0], sizes = [1, 128], strides = [1, 1]} : vector<7x128xf32> to vector<1x128xf32>
    %654 = vector.broadcast %653 : vector<1x128xf32> to vector<8x128xf32>
    %655 = arith.mulf %652, %654 : vector<8x128xf32>
    %656 = arith.addf %638, %655 : vector<8x128xf32>
    %c6_i32 = arith.constant 6 : i32
    %657 = tpu.dynamic_rotate %577 by %c6_i32 dim 0 : vector<8x128xf32>, i32 -> vector<8x128xf32>
    %c2_i32_204 = arith.constant 2 : i32
    %658 = vector.broadcast %c2_i32_204 : i32 to vector<8x1xi32>
    %659 = arith.addi %579, %658 : vector<8x1xi32>
    %c0_i32_205 = arith.constant 0 : i32
    %660 = vector.broadcast %c0_i32_205 : i32 to vector<8x1xi32>
    %661 = arith.cmpi sge, %659, %660 : vector<8x1xi32>
    %c2_i32_206 = arith.constant 2 : i32
    %662 = vector.broadcast %c2_i32_206 : i32 to vector<8x1xi32>
    %663 = arith.addi %579, %662 : vector<8x1xi32>
    %c8_i32_207 = arith.constant 8 : i32
    %664 = vector.broadcast %c8_i32_207 : i32 to vector<8x1xi32>
    %665 = arith.cmpi slt, %663, %664 : vector<8x1xi32>
    %666 = arith.andi %661, %665 : vector<8x1xi1>
    %667 = arith.extui %666 : vector<8x1xi1> to vector<8x1xi32>
    %668 = arith.sitofp %667 : vector<8x1xi32> to vector<8x1xf32>
    %669 = vector.broadcast %668 : vector<8x1xf32> to vector<8x128xf32>
    %670 = arith.mulf %657, %669 : vector<8x128xf32>
    %671 = vector.extract_strided_slice %578 {offsets = [5, 0], sizes = [1, 128], strides = [1, 1]} : vector<7x128xf32> to vector<1x128xf32>
    %672 = vector.broadcast %671 : vector<1x128xf32> to vector<8x128xf32>
    %673 = arith.mulf %670, %672 : vector<8x128xf32>
    %674 = arith.addf %656, %673 : vector<8x128xf32>
    %c5_i32 = arith.constant 5 : i32
    %675 = tpu.dynamic_rotate %577 by %c5_i32 dim 0 : vector<8x128xf32>, i32 -> vector<8x128xf32>
    %c3_i32_208 = arith.constant 3 : i32
    %676 = vector.broadcast %c3_i32_208 : i32 to vector<8x1xi32>
    %677 = arith.addi %579, %676 : vector<8x1xi32>
    %c0_i32_209 = arith.constant 0 : i32
    %678 = vector.broadcast %c0_i32_209 : i32 to vector<8x1xi32>
    %679 = arith.cmpi sge, %677, %678 : vector<8x1xi32>
    %c3_i32_210 = arith.constant 3 : i32
    %680 = vector.broadcast %c3_i32_210 : i32 to vector<8x1xi32>
    %681 = arith.addi %579, %680 : vector<8x1xi32>
    %c8_i32_211 = arith.constant 8 : i32
    %682 = vector.broadcast %c8_i32_211 : i32 to vector<8x1xi32>
    %683 = arith.cmpi slt, %681, %682 : vector<8x1xi32>
    %684 = arith.andi %679, %683 : vector<8x1xi1>
    %685 = arith.extui %684 : vector<8x1xi1> to vector<8x1xi32>
    %686 = arith.sitofp %685 : vector<8x1xi32> to vector<8x1xf32>
    %687 = vector.broadcast %686 : vector<8x1xf32> to vector<8x128xf32>
    %688 = arith.mulf %675, %687 : vector<8x128xf32>
    %689 = vector.extract_strided_slice %578 {offsets = [6, 0], sizes = [1, 128], strides = [1, 1]} : vector<7x128xf32> to vector<1x128xf32>
    %690 = vector.broadcast %689 : vector<1x128xf32> to vector<8x128xf32>
    %691 = arith.mulf %688, %690 : vector<8x128xf32>
    %692 = arith.addf %674, %691 : vector<8x128xf32>
    %c0_212 = arith.constant 0 : index
    %c0_213 = arith.constant 0 : index
    %693 = vector.load %arg21[%c0_212, %c0_213] : memref<1x128xf32, #tpu.memory_space<vmem>>, vector<1x128xf32>
    %694 = vector.broadcast %693 : vector<1x128xf32> to vector<8x128xf32>
    %695 = arith.addf %692, %694 : vector<8x128xf32>
    %cst_214 = arith.constant 0.000000e+00 : f32
    %696 = vector.broadcast %cst_214 : f32 to vector<8x128xf32>
    %697 = arith.maximumf %695, %696 : vector<8x128xf32>
    %c0_215 = arith.constant 0 : index
    %c0_216 = arith.constant 0 : index
    %698 = vector.load %arg22[%c0_215, %c0_216] : memref<128x256xf32, #tpu.memory_space<vmem>>, vector<128x256xf32>
    %cst_217 = arith.constant dense<0.000000e+00> : vector<8x256xf32>
    %699 = tpu.matmul %697, %698, %cst_217 {dimension_numbers = #tpu.dot_dimension_numbers<[1], [0], [0], [1], [0, 0, 1, 1], [], []>} : vector<8x128xf32>, vector<128x256xf32>, vector<8x256xf32> -> vector<8x256xf32>
    %c0_218 = arith.constant 0 : index
    %c0_219 = arith.constant 0 : index
    %700 = vector.load %arg23[%c0_218, %c0_219] : memref<1x256xf32, #tpu.memory_space<vmem>>, vector<1x256xf32>
    %701 = vector.broadcast %700 : vector<1x256xf32> to vector<8x256xf32>
    %702 = arith.addf %699, %701 : vector<8x256xf32>
    %cst_220 = arith.constant 0.000000e+00 : f32
    %703 = vector.broadcast %cst_220 : f32 to vector<8x256xf32>
    %704 = arith.maximumf %702, %703 : vector<8x256xf32>
    %c0_221 = arith.constant 0 : index
    %c0_222 = arith.constant 0 : index
    %705 = vector.load %arg24[%c0_221, %c0_222] : memref<7x256xf32, #tpu.memory_space<vmem>>, vector<7x256xf32>
    %706 = tpu.iota {dimensions = array<i32: 0>} : vector<8x1xi32>
    %cst_223 = arith.constant 0.000000e+00 : f32
    %707 = vector.broadcast %cst_223 : f32 to vector<8x256xf32>
    %c3_i32_224 = arith.constant 3 : i32
    %708 = tpu.dynamic_rotate %704 by %c3_i32_224 dim 0 : vector<8x256xf32>, i32 -> vector<8x256xf32>
    %c-3_i32_225 = arith.constant -3 : i32
    %709 = vector.broadcast %c-3_i32_225 : i32 to vector<8x1xi32>
    %710 = arith.addi %706, %709 : vector<8x1xi32>
    %c0_i32_226 = arith.constant 0 : i32
    %711 = vector.broadcast %c0_i32_226 : i32 to vector<8x1xi32>
    %712 = arith.cmpi sge, %710, %711 : vector<8x1xi32>
    %c-3_i32_227 = arith.constant -3 : i32
    %713 = vector.broadcast %c-3_i32_227 : i32 to vector<8x1xi32>
    %714 = arith.addi %706, %713 : vector<8x1xi32>
    %c8_i32_228 = arith.constant 8 : i32
    %715 = vector.broadcast %c8_i32_228 : i32 to vector<8x1xi32>
    %716 = arith.cmpi slt, %714, %715 : vector<8x1xi32>
    %717 = arith.andi %712, %716 : vector<8x1xi1>
    %718 = arith.extui %717 : vector<8x1xi1> to vector<8x1xi32>
    %719 = arith.sitofp %718 : vector<8x1xi32> to vector<8x1xf32>
    %720 = vector.broadcast %719 : vector<8x1xf32> to vector<8x256xf32>
    %721 = arith.mulf %708, %720 : vector<8x256xf32>
    %722 = vector.extract_strided_slice %705 {offsets = [0, 0], sizes = [1, 256], strides = [1, 1]} : vector<7x256xf32> to vector<1x256xf32>
    %723 = vector.broadcast %722 : vector<1x256xf32> to vector<8x256xf32>
    %724 = arith.mulf %721, %723 : vector<8x256xf32>
    %725 = arith.addf %707, %724 : vector<8x256xf32>
    %c2_i32_229 = arith.constant 2 : i32
    %726 = tpu.dynamic_rotate %704 by %c2_i32_229 dim 0 : vector<8x256xf32>, i32 -> vector<8x256xf32>
    %c-2_i32_230 = arith.constant -2 : i32
    %727 = vector.broadcast %c-2_i32_230 : i32 to vector<8x1xi32>
    %728 = arith.addi %706, %727 : vector<8x1xi32>
    %c0_i32_231 = arith.constant 0 : i32
    %729 = vector.broadcast %c0_i32_231 : i32 to vector<8x1xi32>
    %730 = arith.cmpi sge, %728, %729 : vector<8x1xi32>
    %c-2_i32_232 = arith.constant -2 : i32
    %731 = vector.broadcast %c-2_i32_232 : i32 to vector<8x1xi32>
    %732 = arith.addi %706, %731 : vector<8x1xi32>
    %c8_i32_233 = arith.constant 8 : i32
    %733 = vector.broadcast %c8_i32_233 : i32 to vector<8x1xi32>
    %734 = arith.cmpi slt, %732, %733 : vector<8x1xi32>
    %735 = arith.andi %730, %734 : vector<8x1xi1>
    %736 = arith.extui %735 : vector<8x1xi1> to vector<8x1xi32>
    %737 = arith.sitofp %736 : vector<8x1xi32> to vector<8x1xf32>
    %738 = vector.broadcast %737 : vector<8x1xf32> to vector<8x256xf32>
    %739 = arith.mulf %726, %738 : vector<8x256xf32>
    %740 = vector.extract_strided_slice %705 {offsets = [1, 0], sizes = [1, 256], strides = [1, 1]} : vector<7x256xf32> to vector<1x256xf32>
    %741 = vector.broadcast %740 : vector<1x256xf32> to vector<8x256xf32>
    %742 = arith.mulf %739, %741 : vector<8x256xf32>
    %743 = arith.addf %725, %742 : vector<8x256xf32>
    %c1_i32_234 = arith.constant 1 : i32
    %744 = tpu.dynamic_rotate %704 by %c1_i32_234 dim 0 : vector<8x256xf32>, i32 -> vector<8x256xf32>
    %c-1_i32_235 = arith.constant -1 : i32
    %745 = vector.broadcast %c-1_i32_235 : i32 to vector<8x1xi32>
    %746 = arith.addi %706, %745 : vector<8x1xi32>
    %c0_i32_236 = arith.constant 0 : i32
    %747 = vector.broadcast %c0_i32_236 : i32 to vector<8x1xi32>
    %748 = arith.cmpi sge, %746, %747 : vector<8x1xi32>
    %c-1_i32_237 = arith.constant -1 : i32
    %749 = vector.broadcast %c-1_i32_237 : i32 to vector<8x1xi32>
    %750 = arith.addi %706, %749 : vector<8x1xi32>
    %c8_i32_238 = arith.constant 8 : i32
    %751 = vector.broadcast %c8_i32_238 : i32 to vector<8x1xi32>
    %752 = arith.cmpi slt, %750, %751 : vector<8x1xi32>
    %753 = arith.andi %748, %752 : vector<8x1xi1>
    %754 = arith.extui %753 : vector<8x1xi1> to vector<8x1xi32>
    %755 = arith.sitofp %754 : vector<8x1xi32> to vector<8x1xf32>
    %756 = vector.broadcast %755 : vector<8x1xf32> to vector<8x256xf32>
    %757 = arith.mulf %744, %756 : vector<8x256xf32>
    %758 = vector.extract_strided_slice %705 {offsets = [2, 0], sizes = [1, 256], strides = [1, 1]} : vector<7x256xf32> to vector<1x256xf32>
    %759 = vector.broadcast %758 : vector<1x256xf32> to vector<8x256xf32>
    %760 = arith.mulf %757, %759 : vector<8x256xf32>
    %761 = arith.addf %743, %760 : vector<8x256xf32>
    %762 = vector.extract_strided_slice %705 {offsets = [3, 0], sizes = [1, 256], strides = [1, 1]} : vector<7x256xf32> to vector<1x256xf32>
    %763 = vector.broadcast %762 : vector<1x256xf32> to vector<8x256xf32>
    %764 = arith.mulf %704, %763 : vector<8x256xf32>
    %765 = arith.addf %761, %764 : vector<8x256xf32>
    %c7_i32_239 = arith.constant 7 : i32
    %766 = tpu.dynamic_rotate %704 by %c7_i32_239 dim 0 : vector<8x256xf32>, i32 -> vector<8x256xf32>
    %c1_i32_240 = arith.constant 1 : i32
    %767 = vector.broadcast %c1_i32_240 : i32 to vector<8x1xi32>
    %768 = arith.addi %706, %767 : vector<8x1xi32>
    %c0_i32_241 = arith.constant 0 : i32
    %769 = vector.broadcast %c0_i32_241 : i32 to vector<8x1xi32>
    %770 = arith.cmpi sge, %768, %769 : vector<8x1xi32>
    %c1_i32_242 = arith.constant 1 : i32
    %771 = vector.broadcast %c1_i32_242 : i32 to vector<8x1xi32>
    %772 = arith.addi %706, %771 : vector<8x1xi32>
    %c8_i32_243 = arith.constant 8 : i32
    %773 = vector.broadcast %c8_i32_243 : i32 to vector<8x1xi32>
    %774 = arith.cmpi slt, %772, %773 : vector<8x1xi32>
    %775 = arith.andi %770, %774 : vector<8x1xi1>
    %776 = arith.extui %775 : vector<8x1xi1> to vector<8x1xi32>
    %777 = arith.sitofp %776 : vector<8x1xi32> to vector<8x1xf32>
    %778 = vector.broadcast %777 : vector<8x1xf32> to vector<8x256xf32>
    %779 = arith.mulf %766, %778 : vector<8x256xf32>
    %780 = vector.extract_strided_slice %705 {offsets = [4, 0], sizes = [1, 256], strides = [1, 1]} : vector<7x256xf32> to vector<1x256xf32>
    %781 = vector.broadcast %780 : vector<1x256xf32> to vector<8x256xf32>
    %782 = arith.mulf %779, %781 : vector<8x256xf32>
    %783 = arith.addf %765, %782 : vector<8x256xf32>
    %c6_i32_244 = arith.constant 6 : i32
    %784 = tpu.dynamic_rotate %704 by %c6_i32_244 dim 0 : vector<8x256xf32>, i32 -> vector<8x256xf32>
    %c2_i32_245 = arith.constant 2 : i32
    %785 = vector.broadcast %c2_i32_245 : i32 to vector<8x1xi32>
    %786 = arith.addi %706, %785 : vector<8x1xi32>
    %c0_i32_246 = arith.constant 0 : i32
    %787 = vector.broadcast %c0_i32_246 : i32 to vector<8x1xi32>
    %788 = arith.cmpi sge, %786, %787 : vector<8x1xi32>
    %c2_i32_247 = arith.constant 2 : i32
    %789 = vector.broadcast %c2_i32_247 : i32 to vector<8x1xi32>
    %790 = arith.addi %706, %789 : vector<8x1xi32>
    %c8_i32_248 = arith.constant 8 : i32
    %791 = vector.broadcast %c8_i32_248 : i32 to vector<8x1xi32>
    %792 = arith.cmpi slt, %790, %791 : vector<8x1xi32>
    %793 = arith.andi %788, %792 : vector<8x1xi1>
    %794 = arith.extui %793 : vector<8x1xi1> to vector<8x1xi32>
    %795 = arith.sitofp %794 : vector<8x1xi32> to vector<8x1xf32>
    %796 = vector.broadcast %795 : vector<8x1xf32> to vector<8x256xf32>
    %797 = arith.mulf %784, %796 : vector<8x256xf32>
    %798 = vector.extract_strided_slice %705 {offsets = [5, 0], sizes = [1, 256], strides = [1, 1]} : vector<7x256xf32> to vector<1x256xf32>
    %799 = vector.broadcast %798 : vector<1x256xf32> to vector<8x256xf32>
    %800 = arith.mulf %797, %799 : vector<8x256xf32>
    %801 = arith.addf %783, %800 : vector<8x256xf32>
    %c5_i32_249 = arith.constant 5 : i32
    %802 = tpu.dynamic_rotate %704 by %c5_i32_249 dim 0 : vector<8x256xf32>, i32 -> vector<8x256xf32>
    %c3_i32_250 = arith.constant 3 : i32
    %803 = vector.broadcast %c3_i32_250 : i32 to vector<8x1xi32>
    %804 = arith.addi %706, %803 : vector<8x1xi32>
    %c0_i32_251 = arith.constant 0 : i32
    %805 = vector.broadcast %c0_i32_251 : i32 to vector<8x1xi32>
    %806 = arith.cmpi sge, %804, %805 : vector<8x1xi32>
    %c3_i32_252 = arith.constant 3 : i32
    %807 = vector.broadcast %c3_i32_252 : i32 to vector<8x1xi32>
    %808 = arith.addi %706, %807 : vector<8x1xi32>
    %c8_i32_253 = arith.constant 8 : i32
    %809 = vector.broadcast %c8_i32_253 : i32 to vector<8x1xi32>
    %810 = arith.cmpi slt, %808, %809 : vector<8x1xi32>
    %811 = arith.andi %806, %810 : vector<8x1xi1>
    %812 = arith.extui %811 : vector<8x1xi1> to vector<8x1xi32>
    %813 = arith.sitofp %812 : vector<8x1xi32> to vector<8x1xf32>
    %814 = vector.broadcast %813 : vector<8x1xf32> to vector<8x256xf32>
    %815 = arith.mulf %802, %814 : vector<8x256xf32>
    %816 = vector.extract_strided_slice %705 {offsets = [6, 0], sizes = [1, 256], strides = [1, 1]} : vector<7x256xf32> to vector<1x256xf32>
    %817 = vector.broadcast %816 : vector<1x256xf32> to vector<8x256xf32>
    %818 = arith.mulf %815, %817 : vector<8x256xf32>
    %819 = arith.addf %801, %818 : vector<8x256xf32>
    %c0_254 = arith.constant 0 : index
    %c0_255 = arith.constant 0 : index
    %820 = vector.load %arg25[%c0_254, %c0_255] : memref<1x256xf32, #tpu.memory_space<vmem>>, vector<1x256xf32>
    %821 = vector.broadcast %820 : vector<1x256xf32> to vector<8x256xf32>
    %822 = arith.addf %819, %821 : vector<8x256xf32>
    %cst_256 = arith.constant 0.000000e+00 : f32
    %823 = vector.broadcast %cst_256 : f32 to vector<8x256xf32>
    %824 = arith.maximumf %822, %823 : vector<8x256xf32>
    %c0_257 = arith.constant 0 : index
    %c0_258 = arith.constant 0 : index
    %825 = vector.load %arg26[%c0_257, %c0_258] : memref<256x256xf32, #tpu.memory_space<vmem>>, vector<256x256xf32>
    %cst_259 = arith.constant dense<0.000000e+00> : vector<8x256xf32>
    %826 = tpu.matmul %824, %825, %cst_259 {dimension_numbers = #tpu.dot_dimension_numbers<[1], [0], [0], [1], [0, 0, 1, 1], [], []>} : vector<8x256xf32>, vector<256x256xf32>, vector<8x256xf32> -> vector<8x256xf32>
    %c0_260 = arith.constant 0 : index
    %c0_261 = arith.constant 0 : index
    %827 = vector.load %arg27[%c0_260, %c0_261] : memref<1x256xf32, #tpu.memory_space<vmem>>, vector<1x256xf32>
    %828 = vector.broadcast %827 : vector<1x256xf32> to vector<8x256xf32>
    %829 = arith.addf %826, %828 : vector<8x256xf32>
    %cst_262 = arith.constant 0.000000e+00 : f32
    %830 = vector.broadcast %cst_262 : f32 to vector<8x256xf32>
    %831 = arith.maximumf %829, %830 : vector<8x256xf32>
    %cst_263 = arith.constant dense<0.000000e+00> : vector<256xf32>
    %832 = vector.multi_reduction <add>, %831, %cst_263 [0] : vector<8x256xf32> to vector<256xf32>
    %833 = vector.shape_cast %832 : vector<256xf32> to vector<1x256xf32>
    %cst_264 = arith.constant 8.000000e+00 : f32
    %834 = vector.broadcast %cst_264 : f32 to vector<1x256xf32>
    %835 = arith.divf %833, %834 : vector<1x256xf32>
    %c0_265 = arith.constant 0 : index
    %c0_266 = arith.constant 0 : index
    %836 = vector.load %arg28[%c0_265, %c0_266] : memref<256x128xf32, #tpu.memory_space<vmem>>, vector<256x128xf32>
    %cst_267 = arith.constant dense<0.000000e+00> : vector<1x128xf32>
    %837 = tpu.matmul %835, %836, %cst_267 {dimension_numbers = #tpu.dot_dimension_numbers<[1], [0], [0], [1], [0, 0, 1, 1], [], []>} : vector<1x256xf32>, vector<256x128xf32>, vector<1x128xf32> -> vector<1x128xf32>
    %c0_268 = arith.constant 0 : index
    %c0_269 = arith.constant 0 : index
    %838 = vector.load %arg29[%c0_268, %c0_269] : memref<1x128xf32, #tpu.memory_space<vmem>>, vector<1x128xf32>
    %839 = arith.addf %837, %838 : vector<1x128xf32>
    %cst_270 = arith.constant 0.000000e+00 : f32
    %840 = vector.broadcast %cst_270 : f32 to vector<1x128xf32>
    %841 = arith.maximumf %839, %840 : vector<1x128xf32>
    %c0_271 = arith.constant 0 : index
    %c0_272 = arith.constant 0 : index
    %842 = vector.load %arg30[%c0_271, %c0_272] : memref<128x128xf32, #tpu.memory_space<vmem>>, vector<128x128xf32>
    %cst_273 = arith.constant dense<0.000000e+00> : vector<1x128xf32>
    %843 = tpu.matmul %841, %842, %cst_273 {dimension_numbers = #tpu.dot_dimension_numbers<[1], [0], [0], [1], [0, 0, 1, 1], [], []>} : vector<1x128xf32>, vector<128x128xf32>, vector<1x128xf32> -> vector<1x128xf32>
    %c0_274 = arith.constant 0 : index
    %c0_275 = arith.constant 0 : index
    %844 = vector.load %arg31[%c0_274, %c0_275] : memref<1x128xf32, #tpu.memory_space<vmem>>, vector<1x128xf32>
    %845 = arith.addf %843, %844 : vector<1x128xf32>
    %c0_276 = arith.constant 0 : index
    %c0_277 = arith.constant 0 : index
    %c0_278 = arith.constant 0 : index
    %846 = vector.load %arg32[%c0_276, %c0_277, %c0_278] : memref<1x1x128xf32, #tpu.memory_space<vmem>>, vector<1x1x128xf32>
    %847 = vector.shape_cast %846 : vector<1x1x128xf32> to vector<1x128xf32>
    %848 = vector.shape_cast %845 : vector<1x128xf32> to vector<1x1x128xf32>
    tpu.vector_store %arg32[%c0_276, %c0_277, %c0_278], %848 {strides = array<i32>} : memref<1x1x128xf32, #tpu.memory_space<vmem>>, vector<1x1x128xf32>,
    return
  }
  func.func @transform_0(%arg0: i32) -> (i32, i32, i32) {
    %c0_i32 = arith.constant 0 : i32
    %c0_i32_0 = arith.constant 0 : i32
    %c0_i32_1 = arith.constant 0 : i32
    return %arg0, %c0_i32, %c0_i32_0 : i32, i32, i32
  }
  func.func @transform_1(%arg0: i32) -> (i32, i32) {
    %c0_i32 = arith.constant 0 : i32
    %c0_i32_0 = arith.constant 0 : i32
    %c0_i32_1 = arith.constant 0 : i32
    return %c0_i32, %c0_i32_0 : i32, i32
  }
  func.func @transform_2(%arg0: i32) -> (i32, i32) {
    %c0_i32 = arith.constant 0 : i32
    %c0_i32_0 = arith.constant 0 : i32
    %c0_i32_1 = arith.constant 0 : i32
    return %c0_i32, %c0_i32_0 : i32, i32
  }
  func.func @transform_3(%arg0: i32) -> (i32, i32) {
    %c0_i32 = arith.constant 0 : i32
    %c0_i32_0 = arith.constant 0 : i32
    %c0_i32_1 = arith.constant 0 : i32
    return %c0_i32, %c0_i32_0 : i32, i32
  }
  func.func @transform_4(%arg0: i32) -> (i32, i32) {
    %c0_i32 = arith.constant 0 : i32
    %c0_i32_0 = arith.constant 0 : i32
    %c0_i32_1 = arith.constant 0 : i32
    return %c0_i32, %c0_i32_0 : i32, i32
  }
  func.func @transform_5(%arg0: i32) -> (i32, i32) {
    %c0_i32 = arith.constant 0 : i32
    %c0_i32_0 = arith.constant 0 : i32
    %c0_i32_1 = arith.constant 0 : i32
    return %c0_i32, %c0_i32_0 : i32, i32
  }
  func.func @transform_6(%arg0: i32) -> (i32, i32) {
    %c0_i32 = arith.constant 0 : i32
    %c0_i32_0 = arith.constant 0 : i32
    %c0_i32_1 = arith.constant 0 : i32
    return %c0_i32, %c0_i32_0 : i32, i32
  }
  func.func @transform_7(%arg0: i32) -> (i32, i32) {
    %c0_i32 = arith.constant 0 : i32
    %c0_i32_0 = arith.constant 0 : i32
    %c0_i32_1 = arith.constant 0 : i32
    return %c0_i32, %c0_i32_0 : i32, i32
  }
  func.func @transform_8(%arg0: i32) -> (i32, i32) {
    %c0_i32 = arith.constant 0 : i32
    %c0_i32_0 = arith.constant 0 : i32
    %c0_i32_1 = arith.constant 0 : i32
    return %c0_i32, %c0_i32_0 : i32, i32
  }
  func.func @transform_9(%arg0: i32) -> (i32, i32) {
    %c0_i32 = arith.constant 0 : i32
    %c0_i32_0 = arith.constant 0 : i32
    %c0_i32_1 = arith.constant 0 : i32
    return %c0_i32, %c0_i32_0 : i32, i32
  }
  func.func @transform_10(%arg0: i32) -> (i32, i32) {
    %c0_i32 = arith.constant 0 : i32
    %c0_i32_0 = arith.constant 0 : i32
    %c0_i32_1 = arith.constant 0 : i32
    return %c0_i32, %c0_i32_0 : i32, i32
  }
  func.func @transform_11(%arg0: i32) -> (i32, i32) {
    %c0_i32 = arith.constant 0 : i32
    %c0_i32_0 = arith.constant 0 : i32
    %c0_i32_1 = arith.constant 0 : i32
    return %c0_i32, %c0_i32_0 : i32, i32
  }
  func.func @transform_12(%arg0: i32) -> (i32, i32) {
    %c0_i32 = arith.constant 0 : i32
    %c0_i32_0 = arith.constant 0 : i32
    %c0_i32_1 = arith.constant 0 : i32
    return %c0_i32, %c0_i32_0 : i32, i32
  }
  func.func @transform_13(%arg0: i32) -> (i32, i32) {
    %c0_i32 = arith.constant 0 : i32
    %c0_i32_0 = arith.constant 0 : i32
    %c0_i32_1 = arith.constant 0 : i32
    return %c0_i32, %c0_i32_0 : i32, i32
  }
  func.func @transform_14(%arg0: i32) -> (i32, i32) {
    %c0_i32 = arith.constant 0 : i32
    %c0_i32_0 = arith.constant 0 : i32
    %c0_i32_1 = arith.constant 0 : i32
    return %c0_i32, %c0_i32_0 : i32, i32
  }
  func.func @transform_15(%arg0: i32) -> (i32, i32) {
    %c0_i32 = arith.constant 0 : i32
    %c0_i32_0 = arith.constant 0 : i32
    %c0_i32_1 = arith.constant 0 : i32
    return %c0_i32, %c0_i32_0 : i32, i32
  }
  func.func @transform_16(%arg0: i32) -> (i32, i32) {
    %c0_i32 = arith.constant 0 : i32
    %c0_i32_0 = arith.constant 0 : i32
    %c0_i32_1 = arith.constant 0 : i32
    return %c0_i32, %c0_i32_0 : i32, i32
  }
  func.func @transform_17(%arg0: i32) -> (i32, i32) {
    %c0_i32 = arith.constant 0 : i32
    %c0_i32_0 = arith.constant 0 : i32
    %c0_i32_1 = arith.constant 0 : i32
    return %c0_i32, %c0_i32_0 : i32, i32
  }
  func.func @transform_18(%arg0: i32) -> (i32, i32) {
    %c0_i32 = arith.constant 0 : i32
    %c0_i32_0 = arith.constant 0 : i32
    %c0_i32_1 = arith.constant 0 : i32
    return %c0_i32, %c0_i32_0 : i32, i32
  }
  func.func @transform_19(%arg0: i32) -> (i32, i32) {
    %c0_i32 = arith.constant 0 : i32
    %c0_i32_0 = arith.constant 0 : i32
    %c0_i32_1 = arith.constant 0 : i32
    return %c0_i32, %c0_i32_0 : i32, i32
  }
  func.func @transform_20(%arg0: i32) -> (i32, i32) {
    %c0_i32 = arith.constant 0 : i32
    %c0_i32_0 = arith.constant 0 : i32
    %c0_i32_1 = arith.constant 0 : i32
    return %c0_i32, %c0_i32_0 : i32, i32
  }
  func.func @transform_21(%arg0: i32) -> (i32, i32) {
    %c0_i32 = arith.constant 0 : i32
    %c0_i32_0 = arith.constant 0 : i32
    %c0_i32_1 = arith.constant 0 : i32
    return %c0_i32, %c0_i32_0 : i32, i32
  }
  func.func @transform_22(%arg0: i32) -> (i32, i32) {
    %c0_i32 = arith.constant 0 : i32
    %c0_i32_0 = arith.constant 0 : i32
    %c0_i32_1 = arith.constant 0 : i32
    return %c0_i32, %c0_i32_0 : i32, i32
  }
  func.func @transform_23(%arg0: i32) -> (i32, i32) {
    %c0_i32 = arith.constant 0 : i32
    %c0_i32_0 = arith.constant 0 : i32
    %c0_i32_1 = arith.constant 0 : i32
    return %c0_i32, %c0_i32_0 : i32, i32
  }
  func.func @transform_24(%arg0: i32) -> (i32, i32) {
    %c0_i32 = arith.constant 0 : i32
    %c0_i32_0 = arith.constant 0 : i32
    %c0_i32_1 = arith.constant 0 : i32
    return %c0_i32, %c0_i32_0 : i32, i32
  }
  func.func @transform_25(%arg0: i32) -> (i32, i32) {
    %c0_i32 = arith.constant 0 : i32
    %c0_i32_0 = arith.constant 0 : i32
    %c0_i32_1 = arith.constant 0 : i32
    return %c0_i32, %c0_i32_0 : i32, i32
  }
  func.func @transform_26(%arg0: i32) -> (i32, i32) {
    %c0_i32 = arith.constant 0 : i32
    %c0_i32_0 = arith.constant 0 : i32
    %c0_i32_1 = arith.constant 0 : i32
    return %c0_i32, %c0_i32_0 : i32, i32
  }
  func.func @transform_27(%arg0: i32) -> (i32, i32) {
    %c0_i32 = arith.constant 0 : i32
    %c0_i32_0 = arith.constant 0 : i32
    %c0_i32_1 = arith.constant 0 : i32
    return %c0_i32, %c0_i32_0 : i32, i32
  }
  func.func @transform_28(%arg0: i32) -> (i32, i32) {
    %c0_i32 = arith.constant 0 : i32
    %c0_i32_0 = arith.constant 0 : i32
    %c0_i32_1 = arith.constant 0 : i32
    return %c0_i32, %c0_i32_0 : i32, i32
  }
  func.func @transform_29(%arg0: i32) -> (i32, i32) {
    %c0_i32 = arith.constant 0 : i32
    %c0_i32_0 = arith.constant 0 : i32
    %c0_i32_1 = arith.constant 0 : i32
    return %c0_i32, %c0_i32_0 : i32, i32
  }
  func.func @transform_30(%arg0: i32) -> (i32, i32) {
    %c0_i32 = arith.constant 0 : i32
    %c0_i32_0 = arith.constant 0 : i32
    %c0_i32_1 = arith.constant 0 : i32
    return %c0_i32, %c0_i32_0 : i32, i32
  }
  func.func @transform_31(%arg0: i32) -> (i32, i32, i32) {
    %c0_i32 = arith.constant 0 : i32
    %c0_i32_0 = arith.constant 0 : i32
    %c0_i32_1 = arith.constant 0 : i32
    return %arg0, %c0_i32, %c0_i32_0 : i32, i32, i32
  }
}

</mosaic_0001>

<llo_original>
// kernel: lnrnet_v2_forward.1
$region0: #{lnrnet_v2_forward.1}
  #allocation0 [shape = 'u32[]', space=smem, size = 0x4, offset = 0x4, fixed_abs, tag = 'smem constant byte address 0x4 - core index']
  #allocation1 [shape = 'u32[72,128]{1,0:T(1,128)}', space=vmem, size = 0x9000, scoped, tag = 'internal scratch']
  %s0 = inlined_call_operand.smem [shape: u32[32], index: -1, kind: input, shape index: {}]
  %s1 = sld [smem:[%s0]]
  %s2 = scalar_lea.smem %s0, 1
  %s3 = sld [smem:[%s2]]
  %s4 = scalar_lea.smem %s0, 2
  %s5 = sld [smem:[%s4]]
  %s6 = scalar_lea.smem %s0, 3
  %s7 = sld [smem:[%s6]]
  %s8 = scalar_lea.smem %s0, 4
  %s9 = sld [smem:[%s8]]
  %s10 = scalar_lea.smem %s0, 5
  %s11 = sld [smem:[%s10]]
  %s12 = scalar_lea.smem %s0, 6
  %s13 = sld [smem:[%s12]]
  %s14 = scalar_lea.smem %s0, 7
  %s15 = sld [smem:[%s14]]
  %s16 = scalar_lea.smem %s0, 8
  %s17 = sld [smem:[%s16]]
  %s18 = scalar_lea.smem %s0, 9
  %s19 = sld [smem:[%s18]]
  %s20 = scalar_lea.smem %s0, 10
  %s21 = sld [smem:[%s20]]
  %s22 = scalar_lea.smem %s0, 11
  %s23 = sld [smem:[%s22]]
  %s24 = scalar_lea.smem %s0, 12
  %s25 = sld [smem:[%s24]]
  %s26 = scalar_lea.smem %s0, 13
  %s27 = sld [smem:[%s26]]
  %s28 = scalar_lea.smem %s0, 14
  %s29 = sld [smem:[%s28]]
  %s30 = scalar_lea.smem %s0, 15
  %s31 = sld [smem:[%s30]]
  %s32 = scalar_lea.smem %s0, 16
  %s33 = sld [smem:[%s32]]
  %s34 = scalar_lea.smem %s0, 17
  %s35 = sld [smem:[%s34]]
  %s36 = scalar_lea.smem %s0, 18
  %s37 = sld [smem:[%s36]]
  %s38 = scalar_lea.smem %s0, 19
  %s39 = sld [smem:[%s38]]
  %s40 = scalar_lea.smem %s0, 20
  %s41 = sld [smem:[%s40]]
  %s42 = scalar_lea.smem %s0, 21
  %s43 = sld [smem:[%s42]]
  %s44 = scalar_lea.smem %s0, 22
  %s45 = sld [smem:[%s44]]
  %s46 = scalar_lea.smem %s0, 23
  %s47 = sld [smem:[%s46]]
  %s48 = scalar_lea.smem %s0, 24
  %s49 = sld [smem:[%s48]]
  %s50 = scalar_lea.smem %s0, 25
  %s51 = sld [smem:[%s50]]
  %s52 = scalar_lea.smem %s0, 26
  %s53 = sld [smem:[%s52]]
  %s54 = scalar_lea.smem %s0, 27
  %s55 = sld [smem:[%s54]]
  %s56 = scalar_lea.smem %s0, 28
  %s57 = sld [smem:[%s56]]
  %s58 = scalar_lea.smem %s0, 29
  %s59 = sld [smem:[%s58]]
  %s60 = scalar_lea.smem %s0, 30
  %s61 = sld [smem:[%s60]]
  %s62 = scalar_lea.smem %s0, 31
  %s63 = sld [smem:[%s62]]
  %s64 = sld [smem:[#allocation0]]
  $region253: #{lnrnet_v2_forward.1} parent=0
    _
  %s66 = ssub.s32 1, %s64
  %s67 = scalar_select 0, %s66, %s64
  $region1: #{lnrnet_v2_forward.1} parent=0
    #allocation2 [shape = 'u8[4096]{0}', space=vmem, size = 0x1000, scoped, tag = 'input window, operand 3, single buffered']
    #allocation3 [shape = 's32[2]{0}', space=sflag, size = 0x8, scoped, tag = 'scoped memory for lnrnet_v2_forward.1']
    #allocation4 [shape = 's32[2]{0}', space=sflag, size = 0x8, scoped, tag = 'scoped memory for lnrnet_v2_forward.1']
    #allocation5 [shape = 'u8[512]{0}', space=vmem, size = 0x400, scoped, tag = 'input window, operand 4, single buffered']
    #allocation6 [shape = 's32[1]{0}', space=sflag, size = 0x4, scoped, tag = 'scoped memory for lnrnet_v2_forward.1']
    #allocation7 [shape = 'u8[512]{0}', space=vmem, size = 0x400, scoped, tag = 'input window, operand 6, single buffered']
    #allocation8 [shape = 'u8[4096]{0}', space=vmem, size = 0x1000, scoped, tag = 'input window, operand 7, single buffered']
    #allocation9 [shape = 's32[1]{0}', space=sflag, size = 0x4, scoped, tag = 'scoped memory for lnrnet_v2_forward.1']
    #allocation10 [shape = 'u8[512]{0}', space=vmem, size = 0x400, scoped, tag = 'input window, operand 8, single buffered']
    #allocation11 [shape = 'u8[65536]{0}', space=vmem, size = 0x10000, scoped, tag = 'input window, operand 9, single buffered']
    #allocation12 [shape = 's32[1]{0}', space=sflag, size = 0x4, scoped, tag = 'scoped memory for lnrnet_v2_forward.1']
    #allocation13 [shape = 'u8[512]{0}', space=vmem, size = 0x400, scoped, tag = 'input window, operand 10, single buffered']
    #allocation14 [shape = 'u8[4096]{0}', space=vmem, size = 0x1000, scoped, tag = 'input window, operand 11, single buffered']
    #allocation15 [shape = 's32[1]{0}', space=sflag, size = 0x4, scoped, tag = 'scoped memory for lnrnet_v2_forward.1']
    #allocation16 [shape = 'u8[512]{0}', space=vmem, size = 0x400, scoped, tag = 'input window, operand 12, single buffered']
    #allocation17 [shape = 'u8[65536]{0}', space=vmem, size = 0x10000, scoped, tag = 'input window, operand 13, single buffered']
    #allocation18 [shape = 's32[1]{0}', space=sflag, size = 0x4, scoped, tag = 'scoped memory for lnrnet_v2_forward.1']
    #allocation19 [shape = 'u8[512]{0}', space=vmem, size = 0x400, scoped, tag = 'input window, operand 14, single buffered']
    #allocation20 [shape = 'u8[4096]{0}', space=vmem, size = 0x1000, scoped, tag = 'input window, operand 15, single buffered']
    #allocation21 [shape = 's32[1]{0}', space=sflag, size = 0x4, scoped, tag = 'scoped memory for lnrnet_v2_forward.1']
    #allocation22 [shape = 'u8[512]{0}', space=vmem, size = 0x400, scoped, tag = 'input window, operand 16, single buffered']
    #allocation23 [shape = 'u8[65536]{0}', space=vmem, size = 0x10000, scoped, tag = 'input window, operand 17, single buffered']
    #allocation24 [shape = 's32[1]{0}', space=sflag, size = 0x4, scoped, tag = 'scoped memory for lnrnet_v2_forward.1']
    #allocation25 [shape = 'u8[512]{0}', space=vmem, size = 0x400, scoped, tag = 'input window, operand 18, single buffered']
    #allocation26 [shape = 'u8[4096]{0}', space=vmem, size = 0x1000, scoped, tag = 'input window, operand 19, single buffered']
    #allocation27 [shape = 's32[1]{0}', space=sflag, size = 0x4, scoped, tag = 'scoped memory for lnrnet_v2_forward.1']
    #allocation28 [shape = 'u8[512]{0}', space=vmem, size = 0x400, scoped, tag = 'input window, operand 20, single buffered']
    #allocation29 [shape = 'u8[131072]{0}', space=vmem, size = 0x20000, scoped, tag = 'input window, operand 21, single buffered']
    #allocation30 [shape = 's32[1]{0}', space=sflag, size = 0x4, scoped, tag = 'scoped memory for lnrnet_v2_forward.1']
    #allocation31 [shape = 'u8[1024]{0}', space=vmem, size = 0x400, scoped, tag = 'input window, operand 22, single buffered']
    #allocation32 [shape = 'u8[1024]{0}', space=vmem, size = 0x400, scoped, tag = 'input window, operand 24, single buffered']
    #allocation33 [shape = 's32[1]{0}', space=sflag, size = 0x4, scoped, tag = 'scoped memory for lnrnet_v2_forward.1']
    #allocation34 [shape = 'u8[262144]{0}', space=vmem, size = 0x40000, scoped, tag = 'input window, operand 25, single buffered']
    #allocation35 [shape = 'u8[1024]{0}', space=vmem, size = 0x400, scoped, tag = 'input window, operand 26, single buffered']
    #allocation36 [shape = 's32[1]{0}', space=sflag, size = 0x4, scoped, tag = 'scoped memory for lnrnet_v2_forward.1']
    #allocation37 [shape = 'u8[131072]{0}', space=vmem, size = 0x20000, scoped, tag = 'input window, operand 27, single buffered']
    #allocation38 [shape = 'u8[65536]{0}', space=vmem, size = 0x10000, scoped, tag = 'input window, operand 29, single buffered']
    #allocation39 [shape = 's32[1]{0}', space=sflag, size = 0x4, scoped, tag = 'scoped memory for lnrnet_v2_forward.1']
    #allocation40 [shape = 'u8[1024]{0}', space=vmem, size = 0x400, scoped, tag = 'output window, operand 0']
    %68 = vsyncpa [#allocation3], 0
    %69 = vsyncpa [#allocation6], 0
    %70 = vsyncpa [#allocation9], 0
    %71 = vsyncpa [#allocation12], 0
    %72 = vsyncpa [#allocation15], 0
    %73 = vsyncpa [#allocation18], 0
    %74 = vsyncpa [#allocation21], 0
    %75 = vsyncpa [#allocation24], 0
    %76 = vsyncpa [#allocation27], 0
    %77 = vsyncpa [#allocation30], 0
    %78 = vsyncpa [#allocation33], 0
    %79 = vsyncpa [#allocation36], 0
    %80 = vsyncpa [#allocation39], 0
    %81 = vsyncpa [#allocation4], 0
    %s82 = scalar_lea.sflag [#allocation4], 1
    %83 = vsyncpa %s82, 0
    loop: start=0, step=1, limit=4
    $region2: #{lnrnet_v2_forward.1} parent=1 // loop_pre_header
      _
    $region3: #{lnrnet_v2_forward.1} parent=1 // loop_header
      %s85 = sphi 0, %s89
      %p86 = scmp.ge.s32.totalorder %s85, 4
      %s95 = sphi 0, %s97
      %s98 = sphi 0, %s95
      %s99 = sphi 0, %s98
      %s115 = sphi 0, %s99
      %s119 = sphi 0, %s119
      %s121 = sphi 0, %s119
      %s122 = sphi 0, %s121
      %s136 = sphi 0, %s122
      %s140 = sphi 0, %s140
      %s142 = sphi 0, %s140
      %s143 = sphi 0, %s142
      %s157 = sphi 0, %s143
      %s161 = sphi 0, %s161
      %s163 = sphi 0, %s161
      %s164 = sphi 0, %s163
      %s178 = sphi 0, %s164
      %s182 = sphi 0, %s182
      %s184 = sphi 0, %s182
      %s185 = sphi 0, %s184
      %s199 = sphi 0, %s185
      %s203 = sphi 0, %s203
      %s205 = sphi 0, %s203
      %s206 = sphi 0, %s205
      %s220 = sphi 0, %s206
      %s224 = sphi 0, %s224
      %s226 = sphi 0, %s224
      %s227 = sphi 0, %s226
      %s241 = sphi 0, %s227
      %s245 = sphi 0, %s245
      %s247 = sphi 0, %s245
      %s248 = sphi 0, %s247
      %s262 = sphi 0, %s248
      %s266 = sphi 0, %s266
      %s268 = sphi 0, %s266
      %s269 = sphi 0, %s268
      %s283 = sphi 0, %s269
      %s287 = sphi 0, %s287
      %s289 = sphi 0, %s287
      %s290 = sphi 0, %s289
      %s304 = sphi 0, %s290
      %s308 = sphi 0, %s308
      %s310 = sphi 0, %s308
      %s311 = sphi 0, %s310
      %s325 = sphi 0, %s311
      %s329 = sphi 0, %s329
      %s331 = sphi 0, %s329
      %s332 = sphi 0, %s331
      %s346 = sphi 0, %s332
      %s350 = sphi 0, %s350
      %s352 = sphi 0, %s350
      %s353 = sphi 0, %s352
      %s367 = sphi 0, %s353
      %s371 = sphi 0, %s371
      %s373 = sphi 0, %s371
      %s374 = sphi 0, %s373
      %s388 = sphi 0, %s374
      %s392 = sphi 0, %s392
      %s394 = sphi 0, %s392
      %s395 = sphi 0, %s394
      %s409 = sphi 0, %s395
      %s413 = sphi 0, %s413
      %s415 = sphi 0, %s413
      %s416 = sphi 0, %s415
      %s430 = sphi 0, %s416
      %s434 = sphi 0, %s434
      %s436 = sphi 0, %s434
      %s437 = sphi 0, %s436
      %s451 = sphi 0, %s437
      %s455 = sphi 0, %s455
      %s457 = sphi 0, %s455
      %s458 = sphi 0, %s457
      %s472 = sphi 0, %s458
      %s476 = sphi 0, %s476
      %s478 = sphi 0, %s476
      %s479 = sphi 0, %s478
      %s493 = sphi 0, %s479
      %s497 = sphi 0, %s497
      %s499 = sphi 0, %s497
      %s500 = sphi 0, %s499
      %s514 = sphi 0, %s500
      %s518 = sphi 0, %s518
      %s520 = sphi 0, %s518
      %s521 = sphi 0, %s520
      %s535 = sphi 0, %s521
      %s539 = sphi 0, %s539
      %s541 = sphi 0, %s539
      %s542 = sphi 0, %s541
      %s556 = sphi 0, %s542
      %s560 = sphi 0, %s560
      %s562 = sphi 0, %s560
      %s563 = sphi 0, %s562
      %s577 = sphi 0, %s563
      %s581 = sphi 0, %s581
      %s583 = sphi 0, %s581
      %s584 = sphi 0, %s583
      %s598 = sphi 0, %s584
      %s602 = sphi 0, %s602
      %s604 = sphi 0, %s602
      %s605 = sphi 0, %s604
      %s619 = sphi 0, %s605
      %s623 = sphi 0, %s623
      %s625 = sphi 0, %s623
      %s626 = sphi 0, %s625
      %s640 = sphi 0, %s626
      %s644 = sphi 0, %s644
      %s646 = sphi 0, %s644
      %s647 = sphi 0, %s646
      %s661 = sphi 0, %s647
      %s665 = sphi 0, %s665
      %s667 = sphi 0, %s665
      %s668 = sphi 0, %s667
      %s682 = sphi 0, %s668
      %s686 = sphi 0, %s686
      %s688 = sphi 0, %s686
      %s689 = sphi 0, %s688
      %s703 = sphi 0, %s689
      %s707 = sphi 0, %s707
      %s709 = sphi 0, %s707
      %s710 = sphi 0, %s709
      %s724 = sphi 0, %s710
      %s728 = sphi 0, %s728
      %s730 = sphi 0, %s728
      %s731 = sphi 0, %s730
      %s745 = sphi 0, %s731
      %s751 = sphi 0, %s753
      %s754 = sphi 0, %s751
      %s755 = sphi 0, %s754
      %s771 = sphi 0, %s755
    $region4: #{lnrnet_v2_forward.1} parent=1 // loop_header_branch
      %88 = sbr.rel (%p86) target = $region8
    $region5: #{lnrnet_v2_forward.1} parent=1 // loop_body
      %s90 = ssub.s32 %s85, 1
      %s91 = ssub.s32 %s85, 2
      %s92 = sadd.s32 %s85, 1
      %s93 = ssub.s32 %s85, %s92
      %p94 = scmp.eq.s32.totalorder %s93, 0
      %s96 = sadd.s32 %s95, 1
      %s97 = scalar_select %p94, %s95, %s96
      %p100 = pneg %p94
      %p101 = scmp.eq.s32.totalorder %s85, 1
      %p102 = por %p100, %p101
      %p103 = scmp.ne.s32.totalorder %s95, %s98
      %p104 = scmp.eq.s32.totalorder %s85, 0
      %p105 = por %p103, %p104
      %p106 = scmp.ne.s32.totalorder %s95, %s98
      %p107 = scmp.eq.s32.totalorder %s90, 1
      %p108 = por %p106, %p107
      %p109 = scmp.ne.s32.totalorder %s98, %s99
      %p110 = scmp.eq.s32.totalorder %s90, 0
      %p111 = por %p109, %p110
      %p112 = scmp.ne.s32.totalorder %s98, %s99
      %p113 = scmp.eq.s32.totalorder %s91, 1
      %p114 = por %p112, %p113
      %p116 = scmp.ne.s32.totalorder %s99, %s115
      %p117 = scmp.eq.s32.totalorder %s91, 0
      %p118 = por %p116, %p117
      %s120 = sadd.s32 %s119, 1
      %p123 = scmp.eq.s32.totalorder %s85, 1
      %p124 = scmp.ne.s32.totalorder %s119, %s121
      %p125 = scmp.eq.s32.totalorder %s85, 0
      %p126 = por %p124, %p125
      %p127 = scmp.ne.s32.totalorder %s119, %s121
      %p128 = scmp.eq.s32.totalorder %s90, 1
      %p129 = por %p127, %p128
      %p130 = scmp.ne.s32.totalorder %s121, %s122
      %p131 = scmp.eq.s32.totalorder %s90, 0
      %p132 = por %p130, %p131
      %p133 = scmp.ne.s32.totalorder %s121, %s122
      %p134 = scmp.eq.s32.totalorder %s91, 1
      %p135 = por %p133, %p134
      %p137 = scmp.ne.s32.totalorder %s122, %s136
      %p138 = scmp.eq.s32.totalorder %s91, 0
      %p139 = por %p137, %p138
      %s141 = sadd.s32 %s140, 1
      %p144 = scmp.eq.s32.totalorder %s85, 1
      %p145 = scmp.ne.s32.totalorder %s140, %s142
      %p146 = scmp.eq.s32.totalorder %s85, 0
      %p147 = por %p145, %p146
      %p148 = scmp.ne.s32.totalorder %s140, %s142
      %p149 = scmp.eq.s32.totalorder %s90, 1
      %p150 = por %p148, %p149
      %p151 = scmp.ne.s32.totalorder %s142, %s143
      %p152 = scmp.eq.s32.totalorder %s90, 0
      %p153 = por %p151, %p152
      %p154 = scmp.ne.s32.totalorder %s142, %s143
      %p155 = scmp.eq.s32.totalorder %s91, 1
      %p156 = por %p154, %p155
      %p158 = scmp.ne.s32.totalorder %s143, %s157
      %p159 = scmp.eq.s32.totalorder %s91, 0
      %p160 = por %p158, %p159
      %s162 = sadd.s32 %s161, 1
      %p165 = scmp.eq.s32.totalorder %s85, 1
      %p166 = scmp.ne.s32.totalorder %s161, %s163
      %p167 = scmp.eq.s32.totalorder %s85, 0
      %p168 = por %p166, %p167
      %p169 = scmp.ne.s32.totalorder %s161, %s163
      %p170 = scmp.eq.s32.totalorder %s90, 1
      %p171 = por %p169, %p170
      %p172 = scmp.ne.s32.totalorder %s163, %s164
      %p173 = scmp.eq.s32.totalorder %s90, 0
      %p174 = por %p172, %p173
      %p175 = scmp.ne.s32.totalorder %s163, %s164
      %p176 = scmp.eq.s32.totalorder %s91, 1
      %p177 = por %p175, %p176
      %p179 = scmp.ne.s32.totalorder %s164, %s178
      %p180 = scmp.eq.s32.totalorder %s91, 0
      %p181 = por %p179, %p180
      %s183 = sadd.s32 %s182, 1
      %p186 = scmp.eq.s32.totalorder %s85, 1
      %p187 = scmp.ne.s32.totalorder %s182, %s184
      %p188 = scmp.eq.s32.totalorder %s85, 0
      %p189 = por %p187, %p188
      %p190 = scmp.ne.s32.totalorder %s182, %s184
      %p191 = scmp.eq.s32.totalorder %s90, 1
      %p192 = por %p190, %p191
      %p193 = scmp.ne.s32.totalorder %s184, %s185
      %p194 = scmp.eq.s32.totalorder %s90, 0
      %p195 = por %p193, %p194
      %p196 = scmp.ne.s32.totalorder %s184, %s185
      %p197 = scmp.eq.s32.totalorder %s91, 1
      %p198 = por %p196, %p197
      %p200 = scmp.ne.s32.totalorder %s185, %s199
      %p201 = scmp.eq.s32.totalorder %s91, 0
      %p202 = por %p200, %p201
      %s204 = sadd.s32 %s203, 1
      %p207 = scmp.eq.s32.totalorder %s85, 1
      %p208 = scmp.ne.s32.totalorder %s203, %s205
      %p209 = scmp.eq.s32.totalorder %s85, 0
      %p210 = por %p208, %p209
      %p211 = scmp.ne.s32.totalorder %s203, %s205
      %p212 = scmp.eq.s32.totalorder %s90, 1
      %p213 = por %p211, %p212
      %p214 = scmp.ne.s32.totalorder %s205, %s206
      %p215 = scmp.eq.s32.totalorder %s90, 0
      %p216 = por %p214, %p215
      %p217 = scmp.ne.s32.totalorder %s205, %s206
      %p218 = scmp.eq.s32.totalorder %s91, 1
      %p219 = por %p217, %p218
      %p221 = scmp.ne.s32.totalorder %s206, %s220
      %p222 = scmp.eq.s32.totalorder %s91, 0
      %p223 = por %p221, %p222
      %s225 = sadd.s32 %s224, 1
      %p228 = scmp.eq.s32.totalorder %s85, 1
      %p229 = scmp.ne.s32.totalorder %s224, %s226
      %p230 = scmp.eq.s32.totalorder %s85, 0
      %p231 = por %p229, %p230
      %p232 = scmp.ne.s32.totalorder %s224, %s226
      %p233 = scmp.eq.s32.totalorder %s90, 1
      %p234 = por %p232, %p233
      %p235 = scmp.ne.s32.totalorder %s226, %s227
      %p236 = scmp.eq.s32.totalorder %s90, 0
      %p237 = por %p235, %p236
      %p238 = scmp.ne.s32.totalorder %s226, %s227
      %p239 = scmp.eq.s32.totalorder %s91, 1
      %p240 = por %p238, %p239
      %p242 = scmp.ne.s32.totalorder %s227, %s241
      %p243 = scmp.eq.s32.totalorder %s91, 0
      %p244 = por %p242, %p243
      %s246 = sadd.s32 %s245, 1
      %p249 = scmp.eq.s32.totalorder %s85, 1
      %p250 = scmp.ne.s32.totalorder %s245, %s247
      %p251 = scmp.eq.s32.totalorder %s85, 0
      %p252 = por %p250, %p251
      %p253 = scmp.ne.s32.totalorder %s245, %s247
      %p254 = scmp.eq.s32.totalorder %s90, 1
      %p255 = por %p253, %p254
      %p256 = scmp.ne.s32.totalorder %s247, %s248
      %p257 = scmp.eq.s32.totalorder %s90, 0
      %p258 = por %p256, %p257
      %p259 = scmp.ne.s32.totalorder %s247, %s248
      %p260 = scmp.eq.s32.totalorder %s91, 1
      %p261 = por %p259, %p260
      %p263 = scmp.ne.s32.totalorder %s248, %s262
      %p264 = scmp.eq.s32.totalorder %s91, 0
      %p265 = por %p263, %p264
      %s267 = sadd.s32 %s266, 1
      %p270 = scmp.eq.s32.totalorder %s85, 1
      %p271 = scmp.ne.s32.totalorder %s266, %s268
      %p272 = scmp.eq.s32.totalorder %s85, 0
      %p273 = por %p271, %p272
      %p274 = scmp.ne.s32.totalorder %s266, %s268
      %p275 = scmp.eq.s32.totalorder %s90, 1
      %p276 = por %p274, %p275
      %p277 = scmp.ne.s32.totalorder %s268, %s269
      %p278 = scmp.eq.s32.totalorder %s90, 0
      %p279 = por %p277, %p278
      %p280 = scmp.ne.s32.totalorder %s268, %s269
      %p281 = scmp.eq.s32.totalorder %s91, 1
      %p282 = por %p280, %p281
      %p284 = scmp.ne.s32.totalorder %s269, %s283
      %p285 = scmp.eq.s32.totalorder %s91, 0
      %p286 = por %p284, %p285
      %s288 = sadd.s32 %s287, 1
      %p291 = scmp.eq.s32.totalorder %s85, 1
      %p292 = scmp.ne.s32.totalorder %s287, %s289
      %p293 = scmp.eq.s32.totalorder %s85, 0
      %p294 = por %p292, %p293
      %p295 = scmp.ne.s32.totalorder %s287, %s289
      %p296 = scmp.eq.s32.totalorder %s90, 1
      %p297 = por %p295, %p296
      %p298 = scmp.ne.s32.totalorder %s289, %s290
      %p299 = scmp.eq.s32.totalorder %s90, 0
      %p300 = por %p298, %p299
      %p301 = scmp.ne.s32.totalorder %s289, %s290
      %p302 = scmp.eq.s32.totalorder %s91, 1
      %p303 = por %p301, %p302
      %p305 = scmp.ne.s32.totalorder %s290, %s304
      %p306 = scmp.eq.s32.totalorder %s91, 0
      %p307 = por %p305, %p306
      %s309 = sadd.s32 %s308, 1
      %p312 = scmp.eq.s32.totalorder %s85, 1
      %p313 = scmp.ne.s32.totalorder %s308, %s310
      %p314 = scmp.eq.s32.totalorder %s85, 0
      %p315 = por %p313, %p314
      %p316 = scmp.ne.s32.totalorder %s308, %s310
      %p317 = scmp.eq.s32.totalorder %s90, 1
      %p318 = por %p316, %p317
      %p319 = scmp.ne.s32.totalorder %s310, %s311
      %p320 = scmp.eq.s32.totalorder %s90, 0
      %p321 = por %p319, %p320
      %p322 = scmp.ne.s32.totalorder %s310, %s311
      %p323 = scmp.eq.s32.totalorder %s91, 1
      %p324 = por %p322, %p323
      %p326 = scmp.ne.s32.totalorder %s311, %s325
      %p327 = scmp.eq.s32.totalorder %s91, 0
      %p328 = por %p326, %p327
      %s330 = sadd.s32 %s329, 1
      %p333 = scmp.eq.s32.totalorder %s85, 1
      %p334 = scmp.ne.s32.totalorder %s329, %s331
      %p335 = scmp.eq.s32.totalorder %s85, 0
      %p336 = por %p334, %p335
      %p337 = scmp.ne.s32.totalorder %s329, %s331
      %p338 = scmp.eq.s32.totalorder %s90, 1
      %p339 = por %p337, %p338
      %p340 = scmp.ne.s32.totalorder %s331, %s332
      %p341 = scmp.eq.s32.totalorder %s90, 0
      %p342 = por %p340, %p341
      %p343 = scmp.ne.s32.totalorder %s331, %s332
      %p344 = scmp.eq.s32.totalorder %s91, 1
      %p345 = por %p343, %p344
      %p347 = scmp.ne.s32.totalorder %s332, %s346
      %p348 = scmp.eq.s32.totalorder %s91, 0
      %p349 = por %p347, %p348
      %s351 = sadd.s32 %s350, 1
      %p354 = scmp.eq.s32.totalorder %s85, 1
      %p355 = scmp.ne.s32.totalorder %s350, %s352
      %p356 = scmp.eq.s32.totalorder %s85, 0
      %p357 = por %p355, %p356
      %p358 = scmp.ne.s32.totalorder %s350, %s352
      %p359 = scmp.eq.s32.totalorder %s90, 1
      %p360 = por %p358, %p359
      %p361 = scmp.ne.s32.totalorder %s352, %s353
      %p362 = scmp.eq.s32.totalorder %s90, 0
      %p363 = por %p361, %p362
      %p364 = scmp.ne.s32.totalorder %s352, %s353
      %p365 = scmp.eq.s32.totalorder %s91, 1
      %p366 = por %p364, %p365
      %p368 = scmp.ne.s32.totalorder %s353, %s367
      %p369 = scmp.eq.s32.totalorder %s91, 0
      %p370 = por %p368, %p369
      %s372 = sadd.s32 %s371, 1
      %p375 = scmp.eq.s32.totalorder %s85, 1
      %p376 = scmp.ne.s32.totalorder %s371, %s373
      %p377 = scmp.eq.s32.totalorder %s85, 0
      %p378 = por %p376, %p377
      %p379 = scmp.ne.s32.totalorder %s371, %s373
      %p380 = scmp.eq.s32.totalorder %s90, 1
      %p381 = por %p379, %p380
      %p382 = scmp.ne.s32.totalorder %s373, %s374
      %p383 = scmp.eq.s32.totalorder %s90, 0
      %p384 = por %p382, %p383
      %p385 = scmp.ne.s32.totalorder %s373, %s374
      %p386 = scmp.eq.s32.totalorder %s91, 1
      %p387 = por %p385, %p386
      %p389 = scmp.ne.s32.totalorder %s374, %s388
      %p390 = scmp.eq.s32.totalorder %s91, 0
      %p391 = por %p389, %p390
      %s393 = sadd.s32 %s392, 1
      %p396 = scmp.eq.s32.totalorder %s85, 1
      %p397 = scmp.ne.s32.totalorder %s392, %s394
      %p398 = scmp.eq.s32.totalorder %s85, 0
      %p399 = por %p397, %p398
      %p400 = scmp.ne.s32.totalorder %s392, %s394
      %p401 = scmp.eq.s32.totalorder %s90, 1
      %p402 = por %p400, %p401
      %p403 = scmp.ne.s32.totalorder %s394, %s395
      %p404 = scmp.eq.s32.totalorder %s90, 0
      %p405 = por %p403, %p404
      %p406 = scmp.ne.s32.totalorder %s394, %s395
      %p407 = scmp.eq.s32.totalorder %s91, 1
      %p408 = por %p406, %p407
      %p410 = scmp.ne.s32.totalorder %s395, %s409
      %p411 = scmp.eq.s32.totalorder %s91, 0
      %p412 = por %p410, %p411
      %s414 = sadd.s32 %s413, 1
      %p417 = scmp.eq.s32.totalorder %s85, 1
      %p418 = scmp.ne.s32.totalorder %s413, %s415
      %p419 = scmp.eq.s32.totalorder %s85, 0
      %p420 = por %p418, %p419
      %p421 = scmp.ne.s32.totalorder %s413, %s415
      %p422 = scmp.eq.s32.totalorder %s90, 1
      %p423 = por %p421, %p422
      %p424 = scmp.ne.s32.totalorder %s415, %s416
      %p425 = scmp.eq.s32.totalorder %s90, 0
      %p426 = por %p424, %p425
      %p427 = scmp.ne.s32.totalorder %s415, %s416
      %p428 = scmp.eq.s32.totalorder %s91, 1
      %p429 = por %p427, %p428
      %p431 = scmp.ne.s32.totalorder %s416, %s430
      %p432 = scmp.eq.s32.totalorder %s91, 0
      %p433 = por %p431, %p432
      %s435 = sadd.s32 %s434, 1
      %p438 = scmp.eq.s32.totalorder %s85, 1
      %p439 = scmp.ne.s32.totalorder %s434, %s436
      %p440 = scmp.eq.s32.totalorder %s85, 0
      %p441 = por %p439, %p440
      %p442 = scmp.ne.s32.totalorder %s434, %s436
      %p443 = scmp.eq.s32.totalorder %s90, 1
      %p444 = por %p442, %p443
      %p445 = scmp.ne.s32.totalorder %s436, %s437
      %p446 = scmp.eq.s32.totalorder %s90, 0
      %p447 = por %p445, %p446
      %p448 = scmp.ne.s32.totalorder %s436, %s437
      %p449 = scmp.eq.s32.totalorder %s91, 1
      %p450 = por %p448, %p449
      %p452 = scmp.ne.s32.totalorder %s437, %s451
      %p453 = scmp.eq.s32.totalorder %s91, 0
      %p454 = por %p452, %p453
      %s456 = sadd.s32 %s455, 1
      %p459 = scmp.eq.s32.totalorder %s85, 1
      %p460 = scmp.ne.s32.totalorder %s455, %s457
      %p461 = scmp.eq.s32.totalorder %s85, 0
      %p462 = por %p460, %p461
      %p463 = scmp.ne.s32.totalorder %s455, %s457
      %p464 = scmp.eq.s32.totalorder %s90, 1
      %p465 = por %p463, %p464
      %p466 = scmp.ne.s32.totalorder %s457, %s458
      %p467 = scmp.eq.s32.totalorder %s90, 0
      %p468 = por %p466, %p467
      %p469 = scmp.ne.s32.totalorder %s457, %s458
      %p470 = scmp.eq.s32.totalorder %s91, 1
      %p471 = por %p469, %p470
      %p473 = scmp.ne.s32.totalorder %s458, %s472
      %p474 = scmp.eq.s32.totalorder %s91, 0
      %p475 = por %p473, %p474
      %s477 = sadd.s32 %s476, 1
      %p480 = scmp.eq.s32.totalorder %s85, 1
      %p481 = scmp.ne.s32.totalorder %s476, %s478
      %p482 = scmp.eq.s32.totalorder %s85, 0
      %p483 = por %p481, %p482
      %p484 = scmp.ne.s32.totalorder %s476, %s478
      %p485 = scmp.eq.s32.totalorder %s90, 1
      %p486 = por %p484, %p485
      %p487 = scmp.ne.s32.totalorder %s478, %s479
      %p488 = scmp.eq.s32.totalorder %s90, 0
      %p489 = por %p487, %p488
      %p490 = scmp.ne.s32.totalorder %s478, %s479
      %p491 = scmp.eq.s32.totalorder %s91, 1
      %p492 = por %p490, %p491
      %p494 = scmp.ne.s32.totalorder %s479, %s493
      %p495 = scmp.eq.s32.totalorder %s91, 0
      %p496 = por %p494, %p495
      %s498 = sadd.s32 %s497, 1
      %p501 = scmp.eq.s32.totalorder %s85, 1
      %p502 = scmp.ne.s32.totalorder %s497, %s499
      %p503 = scmp.eq.s32.totalorder %s85, 0
      %p504 = por %p502, %p503
      %p505 = scmp.ne.s32.totalorder %s497, %s499
      %p506 = scmp.eq.s32.totalorder %s90, 1
      %p507 = por %p505, %p506
      %p508 = scmp.ne.s32.totalorder %s499, %s500
      %p509 = scmp.eq.s32.totalorder %s90, 0
      %p510 = por %p508, %p509
      %p511 = scmp.ne.s32.totalorder %s499, %s500
      %p512 = scmp.eq.s32.totalorder %s91, 1
      %p513 = por %p511, %p512
      %p515 = scmp.ne.s32.totalorder %s500, %s514
      %p516 = scmp.eq.s32.totalorder %s91, 0
      %p517 = por %p515, %p516
      %s519 = sadd.s32 %s518, 1
      %p522 = scmp.eq.s32.totalorder %s85, 1
      %p523 = scmp.ne.s32.totalorder %s518, %s520
      %p524 = scmp.eq.s32.totalorder %s85, 0
      %p525 = por %p523, %p524
      %p526 = scmp.ne.s32.totalorder %s518, %s520
      %p527 = scmp.eq.s32.totalorder %s90, 1
      %p528 = por %p526, %p527
      %p529 = scmp.ne.s32.totalorder %s520, %s521
      %p530 = scmp.eq.s32.totalorder %s90, 0
      %p531 = por %p529, %p530
      %p532 = scmp.ne.s32.totalorder %s520, %s521
      %p533 = scmp.eq.s32.totalorder %s91, 1
      %p534 = por %p532, %p533
      %p536 = scmp.ne.s32.totalorder %s521, %s535
      %p537 = scmp.eq.s32.totalorder %s91, 0
      %p538 = por %p536, %p537
      %s540 = sadd.s32 %s539, 1
      %p543 = scmp.eq.s32.totalorder %s85, 1
      %p544 = scmp.ne.s32.totalorder %s539, %s541
      %p545 = scmp.eq.s32.totalorder %s85, 0
      %p546 = por %p544, %p545
      %p547 = scmp.ne.s32.totalorder %s539, %s541
      %p548 = scmp.eq.s32.totalorder %s90, 1
      %p549 = por %p547, %p548
      %p550 = scmp.ne.s32.totalorder %s541, %s542
      %p551 = scmp.eq.s32.totalorder %s90, 0
      %p552 = por %p550, %p551
      %p553 = scmp.ne.s32.totalorder %s541, %s542
      %p554 = scmp.eq.s32.totalorder %s91, 1
      %p555 = por %p553, %p554
      %p557 = scmp.ne.s32.totalorder %s542, %s556
      %p558 = scmp.eq.s32.totalorder %s91, 0
      %p559 = por %p557, %p558
      %s561 = sadd.s32 %s560, 1
      %p564 = scmp.eq.s32.totalorder %s85, 1
      %p565 = scmp.ne.s32.totalorder %s560, %s562
      %p566 = scmp.eq.s32.totalorder %s85, 0
      %p567 = por %p565, %p566
      %p568 = scmp.ne.s32.totalorder %s560, %s562
      %p569 = scmp.eq.s32.totalorder %s90, 1
      %p570 = por %p568, %p569
      %p571 = scmp.ne.s32.totalorder %s562, %s563
      %p572 = scmp.eq.s32.totalorder %s90, 0
      %p573 = por %p571, %p572
      %p574 = scmp.ne.s32.totalorder %s562, %s563
      %p575 = scmp.eq.s32.totalorder %s91, 1
      %p576 = por %p574, %p575
      %p578 = scmp.ne.s32.totalorder %s563, %s577
      %p579 = scmp.eq.s32.totalorder %s91, 0
      %p580 = por %p578, %p579
      %s582 = sadd.s32 %s581, 1
      %p585 = scmp.eq.s32.totalorder %s85, 1
      %p586 = scmp.ne.s32.totalorder %s581, %s583
      %p587 = scmp.eq.s32.totalorder %s85, 0
      %p588 = por %p586, %p587
      %p589 = scmp.ne.s32.totalorder %s581, %s583
      %p590 = scmp.eq.s32.totalorder %s90, 1
      %p591 = por %p589, %p590
      %p592 = scmp.ne.s32.totalorder %s583, %s584
      %p593 = scmp.eq.s32.totalorder %s90, 0
      %p594 = por %p592, %p593
      %p595 = scmp.ne.s32.totalorder %s583, %s584
      %p596 = scmp.eq.s32.totalorder %s91, 1
      %p597 = por %p595, %p596
      %p599 = scmp.ne.s32.totalorder %s584, %s598
      %p600 = scmp.eq.s32.totalorder %s91, 0
      %p601 = por %p599, %p600
      %s603 = sadd.s32 %s602, 1
      %p606 = scmp.eq.s32.totalorder %s85, 1
      %p607 = scmp.ne.s32.totalorder %s602, %s604
      %p608 = scmp.eq.s32.totalorder %s85, 0
      %p609 = por %p607, %p608
      %p610 = scmp.ne.s32.totalorder %s602, %s604
      %p611 = scmp.eq.s32.totalorder %s90, 1
      %p612 = por %p610, %p611
      %p613 = scmp.ne.s32.totalorder %s604, %s605
      %p614 = scmp.eq.s32.totalorder %s90, 0
      %p615 = por %p613, %p614
      %p616 = scmp.ne.s32.totalorder %s604, %s605
      %p617 = scmp.eq.s32.totalorder %s91, 1
      %p618 = por %p616, %p617
      %p620 = scmp.ne.s32.totalorder %s605, %s619
      %p621 = scmp.eq.s32.totalorder %s91, 0
      %p622 = por %p620, %p621
      %s624 = sadd.s32 %s623, 1
      %p627 = scmp.eq.s32.totalorder %s85, 1
      %p628 = scmp.ne.s32.totalorder %s623, %s625
      %p629 = scmp.eq.s32.totalorder %s85, 0
      %p630 = por %p628, %p629
      %p631 = scmp.ne.s32.totalorder %s623, %s625
      %p632 = scmp.eq.s32.totalorder %s90, 1
      %p633 = por %p631, %p632
      %p634 = scmp.ne.s32.totalorder %s625, %s626
      %p635 = scmp.eq.s32.totalorder %s90, 0
      %p636 = por %p634, %p635
      %p637 = scmp.ne.s32.totalorder %s625, %s626
      %p638 = scmp.eq.s32.totalorder %s91, 1
      %p639 = por %p637, %p638
      %p641 = scmp.ne.s32.totalorder %s626, %s640
      %p642 = scmp.eq.s32.totalorder %s91, 0
      %p643 = por %p641, %p642
      %s645 = sadd.s32 %s644, 1
      %p648 = scmp.eq.s32.totalorder %s85, 1
      %p649 = scmp.ne.s32.totalorder %s644, %s646
      %p650 = scmp.eq.s32.totalorder %s85, 0
      %p651 = por %p649, %p650
      %p652 = scmp.ne.s32.totalorder %s644, %s646
      %p653 = scmp.eq.s32.totalorder %s90, 1
      %p654 = por %p652, %p653
      %p655 = scmp.ne.s32.totalorder %s646, %s647
      %p656 = scmp.eq.s32.totalorder %s90, 0
      %p657 = por %p655, %p656
      %p658 = scmp.ne.s32.totalorder %s646, %s647
      %p659 = scmp.eq.s32.totalorder %s91, 1
      %p660 = por %p658, %p659
      %p662 = scmp.ne.s32.totalorder %s647, %s661
      %p663 = scmp.eq.s32.totalorder %s91, 0
      %p664 = por %p662, %p663
      %s666 = sadd.s32 %s665, 1
      %p669 = scmp.eq.s32.totalorder %s85, 1
      %p670 = scmp.ne.s32.totalorder %s665, %s667
      %p671 = scmp.eq.s32.totalorder %s85, 0
      %p672 = por %p670, %p671
      %p673 = scmp.ne.s32.totalorder %s665, %s667
      %p674 = scmp.eq.s32.totalorder %s90, 1
      %p675 = por %p673, %p674
      %p676 = scmp.ne.s32.totalorder %s667, %s668
      %p677 = scmp.eq.s32.totalorder %s90, 0
      %p678 = por %p676, %p677
      %p679 = scmp.ne.s32.totalorder %s667, %s668
      %p680 = scmp.eq.s32.totalorder %s91, 1
      %p681 = por %p679, %p680
      %p683 = scmp.ne.s32.totalorder %s668, %s682
      %p684 = scmp.eq.s32.totalorder %s91, 0
      %p685 = por %p683, %p684
      %s687 = sadd.s32 %s686, 1
      %p690 = scmp.eq.s32.totalorder %s85, 1
      %p691 = scmp.ne.s32.totalorder %s686, %s688
      %p692 = scmp.eq.s32.totalorder %s85, 0
      %p693 = por %p691, %p692
      %p694 = scmp.ne.s32.totalorder %s686, %s688
      %p695 = scmp.eq.s32.totalorder %s90, 1
      %p696 = por %p694, %p695
      %p697 = scmp.ne.s32.totalorder %s688, %s689
      %p698 = scmp.eq.s32.totalorder %s90, 0
      %p699 = por %p697, %p698
      %p700 = scmp.ne.s32.totalorder %s688, %s689
      %p701 = scmp.eq.s32.totalorder %s91, 1
      %p702 = por %p700, %p701
      %p704 = scmp.ne.s32.totalorder %s689, %s703
      %p705 = scmp.eq.s32.totalorder %s91, 0
      %p706 = por %p704, %p705
      %s708 = sadd.s32 %s707, 1
      %p711 = scmp.eq.s32.totalorder %s85, 1
      %p712 = scmp.ne.s32.totalorder %s707, %s709
      %p713 = scmp.eq.s32.totalorder %s85, 0
      %p714 = por %p712, %p713
      %p715 = scmp.ne.s32.totalorder %s707, %s709
      %p716 = scmp.eq.s32.totalorder %s90, 1
      %p717 = por %p715, %p716
      %p718 = scmp.ne.s32.totalorder %s709, %s710
      %p719 = scmp.eq.s32.totalorder %s90, 0
      %p720 = por %p718, %p719
      %p721 = scmp.ne.s32.totalorder %s709, %s710
      %p722 = scmp.eq.s32.totalorder %s91, 1
      %p723 = por %p721, %p722
      %p725 = scmp.ne.s32.totalorder %s710, %s724
      %p726 = scmp.eq.s32.totalorder %s91, 0
      %p727 = por %p725, %p726
      %s729 = sadd.s32 %s728, 1
      %p732 = scmp.eq.s32.totalorder %s85, 1
      %p733 = scmp.ne.s32.totalorder %s728, %s730
      %p734 = scmp.eq.s32.totalorder %s85, 0
      %p735 = por %p733, %p734
      %p736 = scmp.ne.s32.totalorder %s728, %s730
      %p737 = scmp.eq.s32.totalorder %s90, 1
      %p738 = por %p736, %p737
      %p739 = scmp.ne.s32.totalorder %s730, %s731
      %p740 = scmp.eq.s32.totalorder %s90, 0
      %p741 = por %p739, %p740
      %p742 = scmp.ne.s32.totalorder %s730, %s731
      %p743 = scmp.eq.s32.totalorder %s91, 1
      %p744 = por %p742, %p743
      %p746 = scmp.ne.s32.totalorder %s731, %s745
      %p747 = scmp.eq.s32.totalorder %s91, 0
      %p748 = por %p746, %p747
      %s749 = ssub.s32 %s85, %s92
      %p750 = scmp.eq.s32.totalorder %s749, 0
      %s752 = sadd.s32 %s751, 1
      %s753 = scalar_select %p750, %s751, %s752
      %p756 = pneg %p750
      %p757 = scmp.eq.s32.totalorder %s85, 1
      %p758 = por %p756, %p757
      %p759 = scmp.ne.s32.totalorder %s751, %s754
      %p760 = scmp.eq.s32.totalorder %s85, 0
      %p761 = por %p759, %p760
      %p762 = scmp.ne.s32.totalorder %s751, %s754
      %p763 = scmp.eq.s32.totalorder %s90, 1
      %p764 = por %p762, %p763
      %p765 = scmp.ne.s32.totalorder %s754, %s755
      %p766 = scmp.eq.s32.totalorder %s90, 0
      %p767 = por %p765, %p766
      %p768 = scmp.ne.s32.totalorder %s754, %s755
      %p769 = scmp.eq.s32.totalorder %s91, 1
      %p770 = por %p768, %p769
      %p772 = scmp.ne.s32.totalorder %s755, %s771
      %p773 = scmp.eq.s32.totalorder %s91, 0
      %p774 = por %p772, %p773
      %p775 = scmp.le.s32.totalorder 1, %s85
      %p776 = scmp.lt.s32.totalorder %s85, 3
      %p777 = pnand %p775, %p776
      %p778 = pneg %p777
      // Predicated region
      $region9: #{lnrnet_v2_forward.1} parent=5 // pred_check
        _
      $region10: #{lnrnet_v2_forward.1} parent=5 // pred_check_branch
        %780 = sbr.rel (%p777) target = $region12
      $region11: #{lnrnet_v2_forward.1} parent=5 // pred_region
        %s781 = ssub.s32 %s85, 1
        // Predicated region
        $region13: #{lnrnet_v2_forward.1} parent=11 // pred_check
          %p782 = pneg %p132
        $region14: #{lnrnet_v2_forward.1} parent=11 // pred_check_branch
          %784 = sbr.rel (%p782) target = $region16
        $region15: #{lnrnet_v2_forward.1} parent=11 // pred_region
          _
        $region16: #{lnrnet_v2_forward.1} parent=11 // pred_fallthru
          _
        // Predicated region
        $region17: #{lnrnet_v2_forward.1} parent=11 // pred_check
          %p785 = pneg %p153
        $region18: #{lnrnet_v2_forward.1} parent=11 // pred_check_branch
          %787 = sbr.rel (%p785) target = $region20
        $region19: #{lnrnet_v2_forward.1} parent=11 // pred_region
          _
        $region20: #{lnrnet_v2_forward.1} parent=11 // pred_fallthru
          _
        // Predicated region
        $region21: #{lnrnet_v2_forward.1} parent=11 // pred_check
          %p788 = pneg %p174
        $region22: #{lnrnet_v2_forward.1} parent=11 // pred_check_branch
          %790 = sbr.rel (%p788) target = $region24
        $region23: #{lnrnet_v2_forward.1} parent=11 // pred_region
          %792 = vsyncadd [#allocation3], 0
          %s794 = sshll.u32 %s7, 4
          %s795 = int_to_ptr.hbm [resolvable:$true] %s794
          %s796 = sshll.u32 [#allocation2], 4
          %s797 = int_to_ptr.vmem [resolvable:$true] %s796
          %799 = dma.hbm_to_vmem [thread:$0]  %s795, 128, %s797, [#allocation3]
        $region24: #{lnrnet_v2_forward.1} parent=11 // pred_fallthru
          _
        // Predicated region
        $region25: #{lnrnet_v2_forward.1} parent=11 // pred_check
          %p800 = pneg %p195
        $region26: #{lnrnet_v2_forward.1} parent=11 // pred_check_branch
          %802 = sbr.rel (%p800) target = $region28
        $region27: #{lnrnet_v2_forward.1} parent=11 // pred_region
          %804 = vsyncadd [#allocation6], 0
          %s806 = sshll.u32 %s9, 4
          %s807 = int_to_ptr.hbm [resolvable:$true] %s806
          %s808 = sshll.u32 [#allocation5], 4
          %s809 = int_to_ptr.vmem [resolvable:$true] %s808
          %811 = dma.hbm_to_vmem [thread:$0]  %s807, 16, %s809, [#allocation6]
        $region28: #{lnrnet_v2_forward.1} parent=11 // pred_fallthru
          _
        // Predicated region
        $region29: #{lnrnet_v2_forward.1} parent=11 // pred_check
          %p812 = pneg %p216
        $region30: #{lnrnet_v2_forward.1} parent=11 // pred_check_branch
          %814 = sbr.rel (%p812) target = $region32
        $region31: #{lnrnet_v2_forward.1} parent=11 // pred_region
          _
        $region32: #{lnrnet_v2_forward.1} parent=11 // pred_fallthru
          _
        // Predicated region
        $region33: #{lnrnet_v2_forward.1} parent=11 // pred_check
          %p815 = pneg %p237
        $region34: #{lnrnet_v2_forward.1} parent=11 // pred_check_branch
          %817 = sbr.rel (%p815) target = $region36
        $region35: #{lnrnet_v2_forward.1} parent=11 // pred_region
          %819 = vsyncadd [#allocation6], 0
          %s821 = sshll.u32 %s13, 4
          %s822 = int_to_ptr.hbm [resolvable:$true] %s821
          %s823 = sshll.u32 [#allocation7], 4
          %s824 = int_to_ptr.vmem [resolvable:$true] %s823
          %826 = dma.hbm_to_vmem [thread:$0]  %s822, 16, %s824, [#allocation6]
        $region36: #{lnrnet_v2_forward.1} parent=11 // pred_fallthru
          _
        // Predicated region
        $region37: #{lnrnet_v2_forward.1} parent=11 // pred_check
          %p827 = pneg %p258
        $region38: #{lnrnet_v2_forward.1} parent=11 // pred_check_branch
          %829 = sbr.rel (%p827) target = $region40
        $region39: #{lnrnet_v2_forward.1} parent=11 // pred_region
          %831 = vsyncadd [#allocation9], 0
          %s833 = sshll.u32 %s15, 4
          %s834 = int_to_ptr.hbm [resolvable:$true] %s833
          %s835 = sshll.u32 [#allocation8], 4
          %s836 = int_to_ptr.vmem [resolvable:$true] %s835
          %838 = dma.hbm_to_vmem [thread:$0]  %s834, 128, %s836, [#allocation9]
        $region40: #{lnrnet_v2_forward.1} parent=11 // pred_fallthru
          _
        // Predicated region
        $region41: #{lnrnet_v2_forward.1} parent=11 // pred_check
          %p839 = pneg %p279
        $region42: #{lnrnet_v2_forward.1} parent=11 // pred_check_branch
          %841 = sbr.rel (%p839) target = $region44
        $region43: #{lnrnet_v2_forward.1} parent=11 // pred_region
          %843 = vsyncadd [#allocation9], 0
          %s845 = sshll.u32 %s17, 4
          %s846 = int_to_ptr.hbm [resolvable:$true] %s845
          %s847 = sshll.u32 [#allocation10], 4
          %s848 = int_to_ptr.vmem [resolvable:$true] %s847
          %850 = dma.hbm_to_vmem [thread:$0]  %s846, 16, %s848, [#allocation9]
        $region44: #{lnrnet_v2_forward.1} parent=11 // pred_fallthru
          _
        // Predicated region
        $region45: #{lnrnet_v2_forward.1} parent=11 // pred_check
          %p851 = pneg %p300
        $region46: #{lnrnet_v2_forward.1} parent=11 // pred_check_branch
          %853 = sbr.rel (%p851) target = $region48
        $region47: #{lnrnet_v2_forward.1} parent=11 // pred_region
          %855 = vsyncadd [#allocation12], 0
          %s856 = sshll.u32 %s19, 4
          %s857 = int_to_ptr.hbm [resolvable:$true] %s856
          %s858 = sshll.u32 [#allocation11], 4
          %s859 = int_to_ptr.vmem [resolvable:$true] %s858
          %864 = dma.hbm_to_vmem [thread:$0]  %s857, 2048, %s859, [#allocation12], 128, 128, 8
        $region48: #{lnrnet_v2_forward.1} parent=11 // pred_fallthru
          _
        // Predicated region
        $region49: #{lnrnet_v2_forward.1} parent=11 // pred_check
          %p865 = pneg %p321
        $region50: #{lnrnet_v2_forward.1} parent=11 // pred_check_branch
          %867 = sbr.rel (%p865) target = $region52
        $region51: #{lnrnet_v2_forward.1} parent=11 // pred_region
          %869 = vsyncadd [#allocation12], 0
          %s871 = sshll.u32 %s21, 4
          %s872 = int_to_ptr.hbm [resolvable:$true] %s871
          %s873 = sshll.u32 [#allocation13], 4
          %s874 = int_to_ptr.vmem [resolvable:$true] %s873
          %876 = dma.hbm_to_vmem [thread:$0]  %s872, 16, %s874, [#allocation12]
        $region52: #{lnrnet_v2_forward.1} parent=11 // pred_fallthru
          _
        // Predicated region
        $region53: #{lnrnet_v2_forward.1} parent=11 // pred_check
          %p877 = pneg %p342
        $region54: #{lnrnet_v2_forward.1} parent=11 // pred_check_branch
          %879 = sbr.rel (%p877) target = $region56
        $region55: #{lnrnet_v2_forward.1} parent=11 // pred_region
          %881 = vsyncadd [#allocation15], 0
          %s883 = sshll.u32 %s23, 4
          %s884 = int_to_ptr.hbm [resolvable:$true] %s883
          %s885 = sshll.u32 [#allocation14], 4
          %s886 = int_to_ptr.vmem [resolvable:$true] %s885
          %888 = dma.hbm_to_vmem [thread:$0]  %s884, 128, %s886, [#allocation15]
        $region56: #{lnrnet_v2_forward.1} parent=11 // pred_fallthru
          _
        // Predicated region
        $region57: #{lnrnet_v2_forward.1} parent=11 // pred_check
          %p889 = pneg %p363
        $region58: #{lnrnet_v2_forward.1} parent=11 // pred_check_branch
          %891 = sbr.rel (%p889) target = $region60
        $region59: #{lnrnet_v2_forward.1} parent=11 // pred_region
          %893 = vsyncadd [#allocation15], 0
          %s895 = sshll.u32 %s25, 4
          %s896 = int_to_ptr.hbm [resolvable:$true] %s895
          %s897 = sshll.u32 [#allocation16], 4
          %s898 = int_to_ptr.vmem [resolvable:$true] %s897
          %900 = dma.hbm_to_vmem [thread:$0]  %s896, 16, %s898, [#allocation15]
        $region60: #{lnrnet_v2_forward.1} parent=11 // pred_fallthru
          _
        // Predicated region
        $region61: #{lnrnet_v2_forward.1} parent=11 // pred_check
          %p901 = pneg %p384
        $region62: #{lnrnet_v2_forward.1} parent=11 // pred_check_branch
          %903 = sbr.rel (%p901) target = $region64
        $region63: #{lnrnet_v2_forward.1} parent=11 // pred_region
          %905 = vsyncadd [#allocation18], 0
          %s906 = sshll.u32 %s27, 4
          %s907 = int_to_ptr.hbm [resolvable:$true] %s906
          %s908 = sshll.u32 [#allocation17], 4
          %s909 = int_to_ptr.vmem [resolvable:$true] %s908
          %914 = dma.hbm_to_vmem [thread:$0]  %s907, 2048, %s909, [#allocation18], 128, 128, 8
        $region64: #{lnrnet_v2_forward.1} parent=11 // pred_fallthru
          _
        // Predicated region
        $region65: #{lnrnet_v2_forward.1} parent=11 // pred_check
          %p915 = pneg %p405
        $region66: #{lnrnet_v2_forward.1} parent=11 // pred_check_branch
          %917 = sbr.rel (%p915) target = $region68
        $region67: #{lnrnet_v2_forward.1} parent=11 // pred_region
          %919 = vsyncadd [#allocation18], 0
          %s921 = sshll.u32 %s29, 4
          %s922 = int_to_ptr.hbm [resolvable:$true] %s921
          %s923 = sshll.u32 [#allocation19], 4
          %s924 = int_to_ptr.vmem [resolvable:$true] %s923
          %926 = dma.hbm_to_vmem [thread:$0]  %s922, 16, %s924, [#allocation18]
        $region68: #{lnrnet_v2_forward.1} parent=11 // pred_fallthru
          _
        // Predicated region
        $region69: #{lnrnet_v2_forward.1} parent=11 // pred_check
          %p927 = pneg %p426
        $region70: #{lnrnet_v2_forward.1} parent=11 // pred_check_branch
          %929 = sbr.rel (%p927) target = $region72
        $region71: #{lnrnet_v2_forward.1} parent=11 // pred_region
          %931 = vsyncadd [#allocation21], 0
          %s933 = sshll.u32 %s31, 4
          %s934 = int_to_ptr.hbm [resolvable:$true] %s933
          %s935 = sshll.u32 [#allocation20], 4
          %s936 = int_to_ptr.vmem [resolvable:$true] %s935
          %938 = dma.hbm_to_vmem [thread:$0]  %s934, 128, %s936, [#allocation21]
        $region72: #{lnrnet_v2_forward.1} parent=11 // pred_fallthru
          _
        // Predicated region
        $region73: #{lnrnet_v2_forward.1} parent=11 // pred_check
          %p939 = pneg %p447
        $region74: #{lnrnet_v2_forward.1} parent=11 // pred_check_branch
          %941 = sbr.rel (%p939) target = $region76
        $region75: #{lnrnet_v2_forward.1} parent=11 // pred_region
          %943 = vsyncadd [#allocation21], 0
          %s945 = sshll.u32 %s33, 4
          %s946 = int_to_ptr.hbm [resolvable:$true] %s945
          %s947 = sshll.u32 [#allocation22], 4
          %s948 = int_to_ptr.vmem [resolvable:$true] %s947
          %950 = dma.hbm_to_vmem [thread:$0]  %s946, 16, %s948, [#allocation21]
        $region76: #{lnrnet_v2_forward.1} parent=11 // pred_fallthru
          _
        // Predicated region
        $region77: #{lnrnet_v2_forward.1} parent=11 // pred_check
          %p951 = pneg %p468
        $region78: #{lnrnet_v2_forward.1} parent=11 // pred_check_branch
          %953 = sbr.rel (%p951) target = $region80
        $region79: #{lnrnet_v2_forward.1} parent=11 // pred_region
          %955 = vsyncadd [#allocation24], 0
          %s956 = sshll.u32 %s35, 4
          %s957 = int_to_ptr.hbm [resolvable:$true] %s956
          %s958 = sshll.u32 [#allocation23], 4
          %s959 = int_to_ptr.vmem [resolvable:$true] %s958
          %964 = dma.hbm_to_vmem [thread:$0]  %s957, 2048, %s959, [#allocation24], 128, 128, 8
        $region80: #{lnrnet_v2_forward.1} parent=11 // pred_fallthru
          _
        // Predicated region
        $region81: #{lnrnet_v2_forward.1} parent=11 // pred_check
          %p965 = pneg %p489
        $region82: #{lnrnet_v2_forward.1} parent=11 // pred_check_branch
          %967 = sbr.rel (%p965) target = $region84
        $region83: #{lnrnet_v2_forward.1} parent=11 // pred_region
          %969 = vsyncadd [#allocation24], 0
          %s971 = sshll.u32 %s37, 4
          %s972 = int_to_ptr.hbm [resolvable:$true] %s971
          %s973 = sshll.u32 [#allocation25], 4
          %s974 = int_to_ptr.vmem [resolvable:$true] %s973
          %976 = dma.hbm_to_vmem [thread:$0]  %s972, 16, %s974, [#allocation24]
        $region84: #{lnrnet_v2_forward.1} parent=11 // pred_fallthru
          _
        // Predicated region
        $region85: #{lnrnet_v2_forward.1} parent=11 // pred_check
          %p977 = pneg %p510
        $region86: #{lnrnet_v2_forward.1} parent=11 // pred_check_branch
          %979 = sbr.rel (%p977) target = $region88
        $region87: #{lnrnet_v2_forward.1} parent=11 // pred_region
          %981 = vsyncadd [#allocation27], 0
          %s983 = sshll.u32 %s39, 4
          %s984 = int_to_ptr.hbm [resolvable:$true] %s983
          %s985 = sshll.u32 [#allocation26], 4
          %s986 = int_to_ptr.vmem [resolvable:$true] %s985
          %988 = dma.hbm_to_vmem [thread:$0]  %s984, 128, %s986, [#allocation27]
        $region88: #{lnrnet_v2_forward.1} parent=11 // pred_fallthru
          _
        // Predicated region
        $region89: #{lnrnet_v2_forward.1} parent=11 // pred_check
          %p989 = pneg %p531
        $region90: #{lnrnet_v2_forward.1} parent=11 // pred_check_branch
          %991 = sbr.rel (%p989) target = $region92
        $region91: #{lnrnet_v2_forward.1} parent=11 // pred_region
          %993 = vsyncadd [#allocation27], 0
          %s995 = sshll.u32 %s41, 4
          %s996 = int_to_ptr.hbm [resolvable:$true] %s995
          %s997 = sshll.u32 [#allocation28], 4
          %s998 = int_to_ptr.vmem [resolvable:$true] %s997
          %1000 = dma.hbm_to_vmem [thread:$0]  %s996, 16, %s998, [#allocation27]
        $region92: #{lnrnet_v2_forward.1} parent=11 // pred_fallthru
          _
        // Predicated region
        $region93: #{lnrnet_v2_forward.1} parent=11 // pred_check
          %p1001 = pneg %p552
        $region94: #{lnrnet_v2_forward.1} parent=11 // pred_check_branch
          %1003 = sbr.rel (%p1001) target = $region96
        $region95: #{lnrnet_v2_forward.1} parent=11 // pred_region
          %1005 = vsyncadd [#allocation30], 0
          %s1006 = sshll.u32 %s43, 4
          %s1007 = int_to_ptr.hbm [resolvable:$true] %s1006
          %s1008 = sshll.u32 [#allocation29], 4
          %s1009 = int_to_ptr.vmem [resolvable:$true] %s1008
          %1014 = dma.hbm_to_vmem [thread:$0]  %s1007, 4096, %s1009, [#allocation30], 256, 256, 16
        $region96: #{lnrnet_v2_forward.1} parent=11 // pred_fallthru
          _
        // Predicated region
        $region97: #{lnrnet_v2_forward.1} parent=11 // pred_check
          %p1015 = pneg %p573
        $region98: #{lnrnet_v2_forward.1} parent=11 // pred_check_branch
          %1017 = sbr.rel (%p1015) target = $region100
        $region99: #{lnrnet_v2_forward.1} parent=11 // pred_region
          %1019 = vsyncadd [#allocation30], 0
          %s1021 = sshll.u32 %s45, 4
          %s1022 = int_to_ptr.hbm [resolvable:$true] %s1021
          %s1023 = sshll.u32 [#allocation31], 4
          %s1024 = int_to_ptr.vmem [resolvable:$true] %s1023
          %1026 = dma.hbm_to_vmem [thread:$0]  %s1022, 32, %s1024, [#allocation30]
        $region100: #{lnrnet_v2_forward.1} parent=11 // pred_fallthru
          _
        // Predicated region
        $region101: #{lnrnet_v2_forward.1} parent=11 // pred_check
          %p1027 = pneg %p594
        $region102: #{lnrnet_v2_forward.1} parent=11 // pred_check_branch
          %1029 = sbr.rel (%p1027) target = $region104
        $region103: #{lnrnet_v2_forward.1} parent=11 // pred_region
          _
        $region104: #{lnrnet_v2_forward.1} parent=11 // pred_fallthru
          _
        // Predicated region
        $region105: #{lnrnet_v2_forward.1} parent=11 // pred_check
          %p1030 = pneg %p615
        $region106: #{lnrnet_v2_forward.1} parent=11 // pred_check_branch
          %1032 = sbr.rel (%p1030) target = $region108
        $region107: #{lnrnet_v2_forward.1} parent=11 // pred_region
          %1034 = vsyncadd [#allocation33], 0
          %s1036 = sshll.u32 %s49, 4
          %s1037 = int_to_ptr.hbm [resolvable:$true] %s1036
          %s1038 = sshll.u32 [#allocation32], 4
          %s1039 = int_to_ptr.vmem [resolvable:$true] %s1038
          %1041 = dma.hbm_to_vmem [thread:$0]  %s1037, 32, %s1039, [#allocation33]
        $region108: #{lnrnet_v2_forward.1} parent=11 // pred_fallthru
          _
        // Predicated region
        $region109: #{lnrnet_v2_forward.1} parent=11 // pred_check
          %p1042 = pneg %p636
        $region110: #{lnrnet_v2_forward.1} parent=11 // pred_check_branch
          %1044 = sbr.rel (%p1042) target = $region112
        $region111: #{lnrnet_v2_forward.1} parent=11 // pred_region
          %1046 = vsyncadd [#allocation33], 0
          %s1047 = sshll.u32 %s51, 4
          %s1048 = int_to_ptr.hbm [resolvable:$true] %s1047
          %s1049 = sshll.u32 [#allocation34], 4
          %s1050 = int_to_ptr.vmem [resolvable:$true] %s1049
          %1055 = dma.hbm_to_vmem [thread:$0]  %s1048, 8192, %s1050, [#allocation33], 256, 256, 16
        $region112: #{lnrnet_v2_forward.1} parent=11 // pred_fallthru
          _
        // Predicated region
        $region113: #{lnrnet_v2_forward.1} parent=11 // pred_check
          %p1056 = pneg %p657
        $region114: #{lnrnet_v2_forward.1} parent=11 // pred_check_branch
          %1058 = sbr.rel (%p1056) target = $region116
        $region115: #{lnrnet_v2_forward.1} parent=11 // pred_region
          %1060 = vsyncadd [#allocation36], 0
          %s1062 = sshll.u32 %s53, 4
          %s1063 = int_to_ptr.hbm [resolvable:$true] %s1062
          %s1064 = sshll.u32 [#allocation35], 4
          %s1065 = int_to_ptr.vmem [resolvable:$true] %s1064
          %1067 = dma.hbm_to_vmem [thread:$0]  %s1063, 32, %s1065, [#allocation36]
        $region116: #{lnrnet_v2_forward.1} parent=11 // pred_fallthru
          _
        // Predicated region
        $region117: #{lnrnet_v2_forward.1} parent=11 // pred_check
          %p1068 = pneg %p678
        $region118: #{lnrnet_v2_forward.1} parent=11 // pred_check_branch
          %1070 = sbr.rel (%p1068) target = $region120
        $region119: #{lnrnet_v2_forward.1} parent=11 // pred_region
          %1072 = vsyncadd [#allocation36], 0
          %s1073 = sshll.u32 %s55, 4
          %s1074 = int_to_ptr.hbm [resolvable:$true] %s1073
          %s1075 = sshll.u32 [#allocation37], 4
          %s1076 = int_to_ptr.vmem [resolvable:$true] %s1075
          %1081 = dma.hbm_to_vmem [thread:$0]  %s1074, 4096, %s1076, [#allocation36], 128, 128, 8
        $region120: #{lnrnet_v2_forward.1} parent=11 // pred_fallthru
          _
        // Predicated region
        $region121: #{lnrnet_v2_forward.1} parent=11 // pred_check
          %p1082 = pneg %p699
        $region122: #{lnrnet_v2_forward.1} parent=11 // pred_check_branch
          %1084 = sbr.rel (%p1082) target = $region124
        $region123: #{lnrnet_v2_forward.1} parent=11 // pred_region
          _
        $region124: #{lnrnet_v2_forward.1} parent=11 // pred_fallthru
          _
        // Predicated region
        $region125: #{lnrnet_v2_forward.1} parent=11 // pred_check
          %p1085 = pneg %p720
        $region126: #{lnrnet_v2_forward.1} parent=11 // pred_check_branch
          %1087 = sbr.rel (%p1085) target = $region128
        $region127: #{lnrnet_v2_forward.1} parent=11 // pred_region
          %1089 = vsyncadd [#allocation39], 0
          %s1090 = sshll.u32 %s59, 4
          %s1091 = int_to_ptr.hbm [resolvable:$true] %s1090
          %s1092 = sshll.u32 [#allocation38], 4
          %s1093 = int_to_ptr.vmem [resolvable:$true] %s1092
          %1098 = dma.hbm_to_vmem [thread:$0]  %s1091, 2048, %s1093, [#allocation39], 128, 128, 8
        $region128: #{lnrnet_v2_forward.1} parent=11 // pred_fallthru
          _
        // Predicated region
        $region129: #{lnrnet_v2_forward.1} parent=11 // pred_check
          %p1099 = pneg %p741
        $region130: #{lnrnet_v2_forward.1} parent=11 // pred_check_branch
          %1101 = sbr.rel (%p1099) target = $region132
        $region131: #{lnrnet_v2_forward.1} parent=11 // pred_region
          _
        $region132: #{lnrnet_v2_forward.1} parent=11 // pred_fallthru
          _
      $region12: #{lnrnet_v2_forward.1} parent=5 // pred_fallthru
        _
      %p1102 = scmp.lt.s32.totalorder %s85, 2
      // Predicated region
      $region133: #{lnrnet_v2_forward.1} parent=5 // pred_check
        %p1103 = pneg %p1102
      $region134: #{lnrnet_v2_forward.1} parent=5 // pred_check_branch
        %1105 = sbr.rel (%p1103) target = $region136
      $region135: #{lnrnet_v2_forward.1} parent=5 // pred_region
        // Predicated region
        $region137: #{lnrnet_v2_forward.1} parent=135 // pred_check
          %p1106 = pneg %p105
        $region138: #{lnrnet_v2_forward.1} parent=135 // pred_check_branch
          %1108 = sbr.rel (%p1106) target = $region140
        $region139: #{lnrnet_v2_forward.1} parent=135 // pred_region
          %p1109 = scmp.lt.s32.totalorder %s85, 1
          %s1110 = scalar_select %p1109, %s85, 1
          %s1111 = smul.addr %s1110, 9
          %s1112 = smul.addr %s1111, 8
          %s1113 = scalar_lea.vmem %s1, %s1112
        $region140: #{lnrnet_v2_forward.1} parent=135 // pred_fallthru
          _
      $region136: #{lnrnet_v2_forward.1} parent=5 // pred_fallthru
        _
      %p1114 = scmp.le.s32.totalorder 1, %s85
      %p1115 = scmp.lt.s32.totalorder %s85, 3
      %p1116 = pnand %p1114, %p1115
      %p1117 = pneg %p1116
      // Predicated region
      $region141: #{lnrnet_v2_forward.1} parent=5 // pred_check
        _
      $region142: #{lnrnet_v2_forward.1} parent=5 // pred_check_branch
        %1119 = sbr.rel (%p1116) target = $region144
      $region143: #{lnrnet_v2_forward.1} parent=5 // pred_region
        %s1120 = ssub.s32 %s85, 1
        // Predicated region
        $region145: #{lnrnet_v2_forward.1} parent=143 // pred_check
          %p1121 = pneg %p174
        $region146: #{lnrnet_v2_forward.1} parent=143 // pred_check_branch
          %1123 = sbr.rel (%p1121) target = $region148
        $region147: #{lnrnet_v2_forward.1} parent=143 // pred_region
          %1125 = dma.done [#allocation3], 128
        $region148: #{lnrnet_v2_forward.1} parent=143 // pred_fallthru
          _
        // Predicated region
        $region149: #{lnrnet_v2_forward.1} parent=143 // pred_check
          %p1126 = pneg %p195
        $region150: #{lnrnet_v2_forward.1} parent=143 // pred_check_branch
          %1128 = sbr.rel (%p1126) target = $region152
        $region151: #{lnrnet_v2_forward.1} parent=143 // pred_region
          %1130 = dma.done [#allocation6], 16
        $region152: #{lnrnet_v2_forward.1} parent=143 // pred_fallthru
          _
        // Predicated region
        $region153: #{lnrnet_v2_forward.1} parent=143 // pred_check
          %p1131 = pneg %p237
        $region154: #{lnrnet_v2_forward.1} parent=143 // pred_check_branch
          %1133 = sbr.rel (%p1131) target = $region156
        $region155: #{lnrnet_v2_forward.1} parent=143 // pred_region
          %1135 = dma.done [#allocation6], 16
        $region156: #{lnrnet_v2_forward.1} parent=143 // pred_fallthru
          _
        // Predicated region
        $region157: #{lnrnet_v2_forward.1} parent=143 // pred_check
          %p1136 = pneg %p258
        $region158: #{lnrnet_v2_forward.1} parent=143 // pred_check_branch
          %1138 = sbr.rel (%p1136) target = $region160
        $region159: #{lnrnet_v2_forward.1} parent=143 // pred_region
          %1140 = dma.done [#allocation9], 128
        $region160: #{lnrnet_v2_forward.1} parent=143 // pred_fallthru
          _
        // Predicated region
        $region161: #{lnrnet_v2_forward.1} parent=143 // pred_check
          %p1141 = pneg %p279
        $region162: #{lnrnet_v2_forward.1} parent=143 // pred_check_branch
          %1143 = sbr.rel (%p1141) target = $region164
        $region163: #{lnrnet_v2_forward.1} parent=143 // pred_region
          %1145 = dma.done [#allocation9], 16
        $region164: #{lnrnet_v2_forward.1} parent=143 // pred_fallthru
          _
        // Predicated region
        $region165: #{lnrnet_v2_forward.1} parent=143 // pred_check
          %p1146 = pneg %p300
        $region166: #{lnrnet_v2_forward.1} parent=143 // pred_check_branch
          %1148 = sbr.rel (%p1146) target = $region168
        $region167: #{lnrnet_v2_forward.1} parent=143 // pred_region
          %1150 = dma.done [#allocation12], 2048
        $region168: #{lnrnet_v2_forward.1} parent=143 // pred_fallthru
          _
        // Predicated region
        $region169: #{lnrnet_v2_forward.1} parent=143 // pred_check
          %p1151 = pneg %p321
        $region170: #{lnrnet_v2_forward.1} parent=143 // pred_check_branch
          %1153 = sbr.rel (%p1151) target = $region172
        $region171: #{lnrnet_v2_forward.1} parent=143 // pred_region
          %1155 = dma.done [#allocation12], 16
        $region172: #{lnrnet_v2_forward.1} parent=143 // pred_fallthru
          _
        // Predicated region
        $region173: #{lnrnet_v2_forward.1} parent=143 // pred_check
          %p1156 = pneg %p342
        $region174: #{lnrnet_v2_forward.1} parent=143 // pred_check_branch
          %1158 = sbr.rel (%p1156) target = $region176
        $region175: #{lnrnet_v2_forward.1} parent=143 // pred_region
          %1160 = dma.done [#allocation15], 128
        $region176: #{lnrnet_v2_forward.1} parent=143 // pred_fallthru
          _
        // Predicated region
        $region177: #{lnrnet_v2_forward.1} parent=143 // pred_check
          %p1161 = pneg %p363
        $region178: #{lnrnet_v2_forward.1} parent=143 // pred_check_branch
          %1163 = sbr.rel (%p1161) target = $region180
        $region179: #{lnrnet_v2_forward.1} parent=143 // pred_region
          %1165 = dma.done [#allocation15], 16
        $region180: #{lnrnet_v2_forward.1} parent=143 // pred_fallthru
          _
        // Predicated region
        $region181: #{lnrnet_v2_forward.1} parent=143 // pred_check
          %p1166 = pneg %p384
        $region182: #{lnrnet_v2_forward.1} parent=143 // pred_check_branch
          %1168 = sbr.rel (%p1166) target = $region184
        $region183: #{lnrnet_v2_forward.1} parent=143 // pred_region
          %1170 = dma.done [#allocation18], 2048
        $region184: #{lnrnet_v2_forward.1} parent=143 // pred_fallthru
          _
        // Predicated region
        $region185: #{lnrnet_v2_forward.1} parent=143 // pred_check
          %p1171 = pneg %p405
        $region186: #{lnrnet_v2_forward.1} parent=143 // pred_check_branch
          %1173 = sbr.rel (%p1171) target = $region188
        $region187: #{lnrnet_v2_forward.1} parent=143 // pred_region
          %1175 = dma.done [#allocation18], 16
        $region188: #{lnrnet_v2_forward.1} parent=143 // pred_fallthru
          _
        // Predicated region
        $region189: #{lnrnet_v2_forward.1} parent=143 // pred_check
          %p1176 = pneg %p426
        $region190: #{lnrnet_v2_forward.1} parent=143 // pred_check_branch
          %1178 = sbr.rel (%p1176) target = $region192
        $region191: #{lnrnet_v2_forward.1} parent=143 // pred_region
          %1180 = dma.done [#allocation21], 128
        $region192: #{lnrnet_v2_forward.1} parent=143 // pred_fallthru
          _
        // Predicated region
        $region193: #{lnrnet_v2_forward.1} parent=143 // pred_check
          %p1181 = pneg %p447
        $region194: #{lnrnet_v2_forward.1} parent=143 // pred_check_branch
          %1183 = sbr.rel (%p1181) target = $region196
        $region195: #{lnrnet_v2_forward.1} parent=143 // pred_region
          %1185 = dma.done [#allocation21], 16
        $region196: #{lnrnet_v2_forward.1} parent=143 // pred_fallthru
          _
        // Predicated region
        $region197: #{lnrnet_v2_forward.1} parent=143 // pred_check
          %p1186 = pneg %p468
        $region198: #{lnrnet_v2_forward.1} parent=143 // pred_check_branch
          %1188 = sbr.rel (%p1186) target = $region200
        $region199: #{lnrnet_v2_forward.1} parent=143 // pred_region
          %1190 = dma.done [#allocation24], 2048
        $region200: #{lnrnet_v2_forward.1} parent=143 // pred_fallthru
          _
        // Predicated region
        $region201: #{lnrnet_v2_forward.1} parent=143 // pred_check
          %p1191 = pneg %p489
        $region202: #{lnrnet_v2_forward.1} parent=143 // pred_check_branch
          %1193 = sbr.rel (%p1191) target = $region204
        $region203: #{lnrnet_v2_forward.1} parent=143 // pred_region
          %1195 = dma.done [#allocation24], 16
        $region204: #{lnrnet_v2_forward.1} parent=143 // pred_fallthru
          _
        // Predicated region
        $region205: #{lnrnet_v2_forward.1} parent=143 // pred_check
          %p1196 = pneg %p510
        $region206: #{lnrnet_v2_forward.1} parent=143 // pred_check_branch
          %1198 = sbr.rel (%p1196) target = $region208
        $region207: #{lnrnet_v2_forward.1} parent=143 // pred_region
          %1200 = dma.done [#allocation27], 128
        $region208: #{lnrnet_v2_forward.1} parent=143 // pred_fallthru
          _
        // Predicated region
        $region209: #{lnrnet_v2_forward.1} parent=143 // pred_check
          %p1201 = pneg %p531
        $region210: #{lnrnet_v2_forward.1} parent=143 // pred_check_branch
          %1203 = sbr.rel (%p1201) target = $region212
        $region211: #{lnrnet_v2_forward.1} parent=143 // pred_region
          %1205 = dma.done [#allocation27], 16
        $region212: #{lnrnet_v2_forward.1} parent=143 // pred_fallthru
          _
        // Predicated region
        $region213: #{lnrnet_v2_forward.1} parent=143 // pred_check
          %p1206 = pneg %p552
        $region214: #{lnrnet_v2_forward.1} parent=143 // pred_check_branch
          %1208 = sbr.rel (%p1206) target = $region216
        $region215: #{lnrnet_v2_forward.1} parent=143 // pred_region
          %1210 = dma.done [#allocation30], 4096
        $region216: #{lnrnet_v2_forward.1} parent=143 // pred_fallthru
          _
        // Predicated region
        $region217: #{lnrnet_v2_forward.1} parent=143 // pred_check
          %p1211 = pneg %p573
        $region218: #{lnrnet_v2_forward.1} parent=143 // pred_check_branch
          %1213 = sbr.rel (%p1211) target = $region220
        $region219: #{lnrnet_v2_forward.1} parent=143 // pred_region
          %1215 = dma.done [#allocation30], 32
        $region220: #{lnrnet_v2_forward.1} parent=143 // pred_fallthru
          _
        // Predicated region
        $region221: #{lnrnet_v2_forward.1} parent=143 // pred_check
          %p1216 = pneg %p615
        $region222: #{lnrnet_v2_forward.1} parent=143 // pred_check_branch
          %1218 = sbr.rel (%p1216) target = $region224
        $region223: #{lnrnet_v2_forward.1} parent=143 // pred_region
          %1220 = dma.done [#allocation33], 32
        $region224: #{lnrnet_v2_forward.1} parent=143 // pred_fallthru
          _
        // Predicated region
        $region225: #{lnrnet_v2_forward.1} parent=143 // pred_check
          %p1221 = pneg %p636
        $region226: #{lnrnet_v2_forward.1} parent=143 // pred_check_branch
          %1223 = sbr.rel (%p1221) target = $region228
        $region227: #{lnrnet_v2_forward.1} parent=143 // pred_region
          %1225 = dma.done [#allocation33], 8192
        $region228: #{lnrnet_v2_forward.1} parent=143 // pred_fallthru
          _
        // Predicated region
        $region229: #{lnrnet_v2_forward.1} parent=143 // pred_check
          %p1226 = pneg %p657
        $region230: #{lnrnet_v2_forward.1} parent=143 // pred_check_branch
          %1228 = sbr.rel (%p1226) target = $region232
        $region231: #{lnrnet_v2_forward.1} parent=143 // pred_region
          %1230 = dma.done [#allocation36], 32
        $region232: #{lnrnet_v2_forward.1} parent=143 // pred_fallthru
          _
        // Predicated region
        $region233: #{lnrnet_v2_forward.1} parent=143 // pred_check
          %p1231 = pneg %p678
        $region234: #{lnrnet_v2_forward.1} parent=143 // pred_check_branch
          %1233 = sbr.rel (%p1231) target = $region236
        $region235: #{lnrnet_v2_forward.1} parent=143 // pred_region
          %1235 = dma.done [#allocation36], 4096
        $region236: #{lnrnet_v2_forward.1} parent=143 // pred_fallthru
          _
        // Predicated region
        $region237: #{lnrnet_v2_forward.1} parent=143 // pred_check
          %p1236 = pneg %p720
        $region238: #{lnrnet_v2_forward.1} parent=143 // pred_check_branch
          %1238 = sbr.rel (%p1236) target = $region240
        $region239: #{lnrnet_v2_forward.1} parent=143 // pred_region
          %1240 = dma.done [#allocation39], 2048
        $region240: #{lnrnet_v2_forward.1} parent=143 // pred_fallthru
          _
        %p1241 = scmp.lt.s32.totalorder %s90, 1
        %s1242 = scalar_select %p1241, %s90, 1
        %s1243 = smul.addr %s1242, 9
        %s1244 = smul.addr %s1243, 8
        %s1245 = scalar_lea.vmem %s1, %s1244
        %p1246 = pneg %p111
        %p1247 = pneg %p108
        %p1248 = pneg %p132
        %p1249 = pneg %p129
        %p1250 = pneg %p153
        %p1251 = pneg %p150
        %p1252 = pneg %p174
        %p1253 = pneg %p171
        %p1254 = pneg %p195
        %p1255 = pneg %p192
        %p1256 = pneg %p216
        %p1257 = pneg %p213
        %p1258 = pneg %p237
        %p1259 = pneg %p234
        %p1260 = pneg %p258
        %p1261 = pneg %p255
        %p1262 = pneg %p279
        %p1263 = pneg %p276
        %p1264 = pneg %p300
        %p1265 = pneg %p297
        %p1266 = pneg %p321
        %p1267 = pneg %p318
        %p1268 = pneg %p342
        %p1269 = pneg %p339
        %p1270 = pneg %p363
        %p1271 = pneg %p360
        %p1272 = pneg %p384
        %p1273 = pneg %p381
        %p1274 = pneg %p405
        %p1275 = pneg %p402
        %p1276 = pneg %p426
        %p1277 = pneg %p423
        %p1278 = pneg %p447
        %p1279 = pneg %p444
        %p1280 = pneg %p468
        %p1281 = pneg %p465
        %p1282 = pneg %p489
        %p1283 = pneg %p486
        %p1284 = pneg %p510
        %p1285 = pneg %p507
        %p1286 = pneg %p531
        %p1287 = pneg %p528
        %p1288 = pneg %p552
        %p1289 = pneg %p549
        %p1290 = pneg %p573
        %p1291 = pneg %p570
        %p1292 = pneg %p594
        %p1293 = pneg %p591
        %p1294 = pneg %p615
        %p1295 = pneg %p612
        %p1296 = pneg %p636
        %p1297 = pneg %p633
        %p1298 = pneg %p657
        %p1299 = pneg %p654
        %p1300 = pneg %p678
        %p1301 = pneg %p675
        %p1302 = pneg %p699
        %p1303 = pneg %p696
        %p1304 = pneg %p720
        %p1305 = pneg %p717
        %p1306 = pneg %p741
        %p1307 = pneg %p738
        %p1308 = pneg %p767
        %p1309 = pneg %p764
        %s1310 = sand.u32 %s754, 1
        %s1311 = scalar_lea.sflag [#allocation4], %s1310
        %s1312 = sand.u32 %s754, 1
        %s1313 = scalar_lea.vmem [#allocation40], %s1312
        %p1314 = scmp.lt.s32.totalorder %s90, 1
        %s1315 = scalar_select %p1314, %s90, 1
        %s1316 = smul.addr %s1315, 9
        %s1317 = smul.addr %s1316, 8
        %s1318 = scalar_lea.vmem %s1, %s1317
        %v1319 = vld [vmem:[%s1318] sm:$0xff]
        %v1320 = vld [vmem:[%s1318 + $0x8] sm:$0xff]
        %v1321 = vld [vmem:[%s1318 + $0x10] sm:$0xff]
        %v1322 = vld [vmem:[%s1318 + $0x18] sm:$0xff]
        %v1323 = vld [vmem:[%s1318 + $0x20] sm:$0xff]
        %v1324 = vld [vmem:[%s1318 + $0x28] sm:$0xff]
        %v1325 = vld [vmem:[%s1318 + $0x30] sm:$0xff]
        %v1326 = vld [vmem:[%s1318 + $0x38] sm:$0xff]
        %v1327 = vld [vmem:[%s1318 + $0x40] sm:$0x7f]
        %v1328 = vld [vmem:[%s3] sm:$0xff]
        %v1329 = vld [vmem:[%s3 + $0x8] sm:$0xff]
        %vm1339 = vcmask 1046528
        %v1340 = vrot.slane %v1319, 1
        %v1341 = vrot.slane %v1320, 1
        %v1342 = vsel %vm1339, %v1340, %v1341
        %v1343 = vrot.slane %v1321, 1
        %v1344 = vsel %vm1339, %v1341, %v1343
        %v1345 = vrot.slane %v1322, 1
        %v1346 = vsel %vm1339, %v1343, %v1345
        %v1347 = vrot.slane %v1323, 1
        %v1348 = vsel %vm1339, %v1345, %v1347
        %v1349 = vrot.slane %v1324, 1
        %v1350 = vsel %vm1339, %v1347, %v1349
        %v1351 = vrot.slane %v1325, 1
        %v1352 = vsel %vm1339, %v1349, %v1351
        %v1353 = vrot.slane %v1326, 1
        %v1354 = vsel %vm1339, %v1351, %v1353
        %v1355 = vrot.slane %v1327, 1
        %v1356 = vsel %vm1339, %v1353, %v1355
        %vm1357 = vcmask 64512
        %v1358 = vsel %vm1357, %v1342, 0
        %v1360 = vsel %vm1357, %v1344, 0
        %v1362 = vsel %vm1357, %v1346, 0
        %v1364 = vsel %vm1357, %v1348, 0
        %v1366 = vsel %vm1357, %v1350, 0
        %v1368 = vsel %vm1357, %v1352, 0
        %v1370 = vsel %vm1357, %v1354, 0
        %v1372 = vsel %vm1357, %v1356, 0
        %1374 = vmatpush.msra.mxu0 0.0
        %1375 = vmatpush.msra.mxu0 0.0
        %1376 = vmatpush.msra.mxu0 0.0
        %1377 = vmatpush.msra.mxu0 0.0
        %1378 = vmatpush.msra.mxu0 0.0
        %1379 = vmatpush.msra.mxu0 0.0
        %1380 = vmatpush.msra.mxu0 0.0
        %1381 = vmatpush.msra.mxu0 0.0
        %1382 = vmatpush.msra.mxu0 0.0
        %1383 = vmatpush.msra.mxu0 0.0
        %1384 = vmatpush.msra.mxu0 0.0
        %1385 = vmatpush.msra.mxu0 0.0
        %1386 = vmatpush.msra.mxu0 0.0
        %1387 = vmatpush.msra.mxu0 0.0
        %1388 = vmatpush.msra.mxu0 0.0
        %1389 = vmatpush.msra.mxu0 %v1329
        %1390 = vmatmul.f32.gmra.mxu0 %v1358
        %v1391 = vpop.f32.mrf.mxu0
        %v1392 = vadd.f32 0.0, %v1391
        %1393 = vmatmul.f32.gmra.mxu0 %v1360
        %v1394 = vpop.f32.mrf.mxu0
        %v1395 = vadd.f32 0.0, %v1394
        %1396 = vmatmul.f32.gmra.mxu0 %v1362
        %v1397 = vpop.f32.mrf.mxu0
        %v1398 = vadd.f32 0.0, %v1397
        %1399 = vmatmul.f32.gmra.mxu0 %v1364
        %v1400 = vpop.f32.mrf.mxu0
        %v1401 = vadd.f32 0.0, %v1400
        %1402 = vmatmul.f32.gmra.mxu0 %v1366
        %v1403 = vpop.f32.mrf.mxu0
        %v1404 = vadd.f32 0.0, %v1403
        %1405 = vmatmul.f32.gmra.mxu0 %v1368
        %v1406 = vpop.f32.mrf.mxu0
        %v1407 = vadd.f32 0.0, %v1406
        %1408 = vmatmul.f32.gmra.mxu0 %v1370
        %v1409 = vpop.f32.mrf.mxu0
        %v1410 = vadd.f32 0.0, %v1409
        %1411 = vmatmul.f32.gmra.mxu0 %v1372
        %v1412 = vpop.f32.mrf.mxu0
        %v1413 = vadd.f32 0.0, %v1412
        %1414 = vdwg.mxu0
        %v1415 = vsel %vm1357, %v1319, 0
        %v1417 = vsel %vm1357, %v1320, 0
        %v1419 = vsel %vm1357, %v1321, 0
        %v1421 = vsel %vm1357, %v1322, 0
        %v1423 = vsel %vm1357, %v1323, 0
        %v1425 = vsel %vm1357, %v1324, 0
        %v1427 = vsel %vm1357, %v1325, 0
        %v1429 = vsel %vm1357, %v1326, 0
        %1431 = vmatpush.msra.mxu0 0.0
        %1432 = vmatpush.msra.mxu0 0.0
        %1433 = vmatpush.msra.mxu0 0.0
        %1434 = vmatpush.msra.mxu0 0.0
        %1435 = vmatpush.msra.mxu0 0.0
        %1436 = vmatpush.msra.mxu0 0.0
        %1437 = vmatpush.msra.mxu0 0.0
        %1438 = vmatpush.msra.mxu0 0.0
        %1439 = vmatpush.msra.mxu0 0.0
        %1440 = vmatpush.msra.mxu0 0.0
        %1441 = vmatpush.msra.mxu0 0.0
        %1442 = vmatpush.msra.mxu0 0.0
        %1443 = vmatpush.msra.mxu0 0.0
        %1444 = vmatpush.msra.mxu0 0.0
        %1445 = vmatpush.msra.mxu0 0.0
        %1446 = vmatpush.msra.mxu0 %v1328
        %1447 = vmatmul.f32.gmra.mxu0 %v1415
        %v1448 = vpop.f32.mrf.mxu0
        %v1449 = vadd.f32 %v1392, %v1448
        %1450 = vmatmul.f32.gmra.mxu0 %v1417
        %v1451 = vpop.f32.mrf.mxu0
        %v1452 = vadd.f32 %v1395, %v1451
        %1453 = vmatmul.f32.gmra.mxu0 %v1419
        %v1454 = vpop.f32.mrf.mxu0
        %v1455 = vadd.f32 %v1398, %v1454
        %1456 = vmatmul.f32.gmra.mxu0 %v1421
        %v1457 = vpop.f32.mrf.mxu0
        %v1458 = vadd.f32 %v1401, %v1457
        %1459 = vmatmul.f32.gmra.mxu0 %v1423
        %v1460 = vpop.f32.mrf.mxu0
        %v1461 = vadd.f32 %v1404, %v1460
        %1462 = vmatmul.f32.gmra.mxu0 %v1425
        %v1463 = vpop.f32.mrf.mxu0
        %v1464 = vadd.f32 %v1407, %v1463
        %1465 = vmatmul.f32.gmra.mxu0 %v1427
        %v1466 = vpop.f32.mrf.mxu0
        %v1467 = vadd.f32 %v1410, %v1466
        %1468 = vmatmul.f32.gmra.mxu0 %v1429
        %v1469 = vpop.f32.mrf.mxu0
        %v1470 = vadd.f32 %v1413, %v1469
        %1471 = vdwg.mxu0
        %v1472 = vld [vmem:[%s3 + $0x10] sm:$0xff]
        %vm1473 = vcmask 1045504
        %v1474 = vrot.slane %v1319, 2
        %v1475 = vrot.slane %v1320, 2
        %v1476 = vsel %vm1473, %v1474, %v1475
        %v1477 = vrot.slane %v1321, 2
        %v1478 = vsel %vm1473, %v1475, %v1477
        %v1479 = vrot.slane %v1322, 2
        %v1480 = vsel %vm1473, %v1477, %v1479
        %v1481 = vrot.slane %v1323, 2
        %v1482 = vsel %vm1473, %v1479, %v1481
        %v1483 = vrot.slane %v1324, 2
        %v1484 = vsel %vm1473, %v1481, %v1483
        %v1485 = vrot.slane %v1325, 2
        %v1486 = vsel %vm1473, %v1483, %v1485
        %v1487 = vrot.slane %v1326, 2
        %v1488 = vsel %vm1473, %v1485, %v1487
        %v1489 = vrot.slane %v1327, 2
        %v1490 = vsel %vm1473, %v1487, %v1489
        %v1491 = vsel %vm1357, %v1476, 0
        %v1493 = vsel %vm1357, %v1478, 0
        %v1495 = vsel %vm1357, %v1480, 0
        %v1497 = vsel %vm1357, %v1482, 0
        %v1499 = vsel %vm1357, %v1484, 0
        %v1501 = vsel %vm1357, %v1486, 0
        %v1503 = vsel %vm1357, %v1488, 0
        %v1505 = vsel %vm1357, %v1490, 0
        %1507 = vmatpush.msra.mxu0 0.0
        %1508 = vmatpush.msra.mxu0 0.0
        %1509 = vmatpush.msra.mxu0 0.0
        %1510 = vmatpush.msra.mxu0 0.0
        %1511 = vmatpush.msra.mxu0 0.0
        %1512 = vmatpush.msra.mxu0 0.0
        %1513 = vmatpush.msra.mxu0 0.0
        %1514 = vmatpush.msra.mxu0 0.0
        %1515 = vmatpush.msra.mxu0 0.0
        %1516 = vmatpush.msra.mxu0 0.0
        %1517 = vmatpush.msra.mxu0 0.0
        %1518 = vmatpush.msra.mxu0 0.0
        %1519 = vmatpush.msra.mxu0 0.0
        %1520 = vmatpush.msra.mxu0 0.0
        %1521 = vmatpush.msra.mxu0 0.0
        %1522 = vmatpush.msra.mxu0 %v1472
        %1523 = vmatmul.f32.gmra.mxu0 %v1491
        %v1524 = vpop.f32.mrf.mxu0
        %v1525 = vadd.f32 0.0, %v1524
        %1526 = vmatmul.f32.gmra.mxu0 %v1493
        %v1527 = vpop.f32.mrf.mxu0
        %v1528 = vadd.f32 0.0, %v1527
        %1529 = vmatmul.f32.gmra.mxu0 %v1495
        %v1530 = vpop.f32.mrf.mxu0
        %v1531 = vadd.f32 0.0, %v1530
        %1532 = vmatmul.f32.gmra.mxu0 %v1497
        %v1533 = vpop.f32.mrf.mxu0
        %v1534 = vadd.f32 0.0, %v1533
        %1535 = vmatmul.f32.gmra.mxu0 %v1499
        %v1536 = vpop.f32.mrf.mxu0
        %v1537 = vadd.f32 0.0, %v1536
        %1538 = vmatmul.f32.gmra.mxu0 %v1501
        %v1539 = vpop.f32.mrf.mxu0
        %v1540 = vadd.f32 0.0, %v1539
        %1541 = vmatmul.f32.gmra.mxu0 %v1503
        %v1542 = vpop.f32.mrf.mxu0
        %v1543 = vadd.f32 0.0, %v1542
        %1544 = vmatmul.f32.gmra.mxu0 %v1505
        %v1545 = vpop.f32.mrf.mxu0
        %v1546 = vadd.f32 0.0, %v1545
        %1547 = vdwg.mxu0
        %v1548 = vadd.f32 %v1449, %v1525
        %v1549 = vadd.f32 %v1452, %v1528
        %v1550 = vadd.f32 %v1455, %v1531
        %v1551 = vadd.f32 %v1458, %v1534
        %v1552 = vadd.f32 %v1461, %v1537
        %v1553 = vadd.f32 %v1464, %v1540
        %v1554 = vadd.f32 %v1467, %v1543
        %v1555 = vadd.f32 %v1470, %v1546
        %v1556 = vld [vmem:[%s3 + $0x18] sm:$0xff]
        %vm1557 = vcmask 1044480
        %v1558 = vrot.slane %v1319, 3
        %v1559 = vrot.slane %v1320, 3
        %v1560 = vsel %vm1557, %v1558, %v1559
        %v1561 = vrot.slane %v1321, 3
        %v1562 = vsel %vm1557, %v1559, %v1561
        %v1563 = vrot.slane %v1322, 3
        %v1564 = vsel %vm1557, %v1561, %v1563
        %v1565 = vrot.slane %v1323, 3
        %v1566 = vsel %vm1557, %v1563, %v1565
        %v1567 = vrot.slane %v1324, 3
        %v1568 = vsel %vm1557, %v1565, %v1567
        %v1569 = vrot.slane %v1325, 3
        %v1570 = vsel %vm1557, %v1567, %v1569
        %v1571 = vrot.slane %v1326, 3
        %v1572 = vsel %vm1557, %v1569, %v1571
        %v1573 = vrot.slane %v1327, 3
        %v1574 = vsel %vm1557, %v1571, %v1573
        %v1575 = vsel %vm1357, %v1560, 0
        %v1577 = vsel %vm1357, %v1562, 0
        %v1579 = vsel %vm1357, %v1564, 0
        %v1581 = vsel %vm1357, %v1566, 0
        %v1583 = vsel %vm1357, %v1568, 0
        %v1585 = vsel %vm1357, %v1570, 0
        %v1587 = vsel %vm1357, %v1572, 0
        %v1589 = vsel %vm1357, %v1574, 0
        %1591 = vmatpush.msra.mxu0 0.0
        %1592 = vmatpush.msra.mxu0 0.0
        %1593 = vmatpush.msra.mxu0 0.0
        %1594 = vmatpush.msra.mxu0 0.0
        %1595 = vmatpush.msra.mxu0 0.0
        %1596 = vmatpush.msra.mxu0 0.0
        %1597 = vmatpush.msra.mxu0 0.0
        %1598 = vmatpush.msra.mxu0 0.0
        %1599 = vmatpush.msra.mxu0 0.0
        %1600 = vmatpush.msra.mxu0 0.0
        %1601 = vmatpush.msra.mxu0 0.0
        %1602 = vmatpush.msra.mxu0 0.0
        %1603 = vmatpush.msra.mxu0 0.0
        %1604 = vmatpush.msra.mxu0 0.0
        %1605 = vmatpush.msra.mxu0 0.0
        %1606 = vmatpush.msra.mxu0 %v1556
        %1607 = vmatmul.f32.gmra.mxu0 %v1575
        %v1608 = vpop.f32.mrf.mxu0
        %v1609 = vadd.f32 0.0, %v1608
        %1610 = vmatmul.f32.gmra.mxu0 %v1577
        %v1611 = vpop.f32.mrf.mxu0
        %v1612 = vadd.f32 0.0, %v1611
        %1613 = vmatmul.f32.gmra.mxu0 %v1579
        %v1614 = vpop.f32.mrf.mxu0
        %v1615 = vadd.f32 0.0, %v1614
        %1616 = vmatmul.f32.gmra.mxu0 %v1581
        %v1617 = vpop.f32.mrf.mxu0
        %v1618 = vadd.f32 0.0, %v1617
        %1619 = vmatmul.f32.gmra.mxu0 %v1583
        %v1620 = vpop.f32.mrf.mxu0
        %v1621 = vadd.f32 0.0, %v1620
        %1622 = vmatmul.f32.gmra.mxu0 %v1585
        %v1623 = vpop.f32.mrf.mxu0
        %v1624 = vadd.f32 0.0, %v1623
        %1625 = vmatmul.f32.gmra.mxu0 %v1587
        %v1626 = vpop.f32.mrf.mxu0
        %v1627 = vadd.f32 0.0, %v1626
        %1628 = vmatmul.f32.gmra.mxu0 %v1589
        %v1629 = vpop.f32.mrf.mxu0
        %v1630 = vadd.f32 0.0, %v1629
        %1631 = vdwg.mxu0
        %v1632 = vadd.f32 %v1548, %v1609
        %v1633 = vadd.f32 %v1549, %v1612
        %v1634 = vadd.f32 %v1550, %v1615
        %v1635 = vadd.f32 %v1551, %v1618
        %v1636 = vadd.f32 %v1552, %v1621
        %v1637 = vadd.f32 %v1553, %v1624
        %v1638 = vadd.f32 %v1554, %v1627
        %v1639 = vadd.f32 %v1555, %v1630
        %v1640 = vld [vmem:[%s3 + $0x20] sm:$0xff]
        %vm1641 = vcmask 1043456
        %v1642 = vrot.slane %v1319, 4
        %v1643 = vrot.slane %v1320, 4
        %v1644 = vsel %vm1641, %v1642, %v1643
        %v1645 = vrot.slane %v1321, 4
        %v1646 = vsel %vm1641, %v1643, %v1645
        %v1647 = vrot.slane %v1322, 4
        %v1648 = vsel %vm1641, %v1645, %v1647
        %v1649 = vrot.slane %v1323, 4
        %v1650 = vsel %vm1641, %v1647, %v1649
        %v1651 = vrot.slane %v1324, 4
        %v1652 = vsel %vm1641, %v1649, %v1651
        %v1653 = vrot.slane %v1325, 4
        %v1654 = vsel %vm1641, %v1651, %v1653
        %v1655 = vrot.slane %v1326, 4
        %v1656 = vsel %vm1641, %v1653, %v1655
        %v1657 = vrot.slane %v1327, 4
        %v1658 = vsel %vm1641, %v1655, %v1657
        %v1659 = vsel %vm1357, %v1644, 0
        %v1661 = vsel %vm1357, %v1646, 0
        %v1663 = vsel %vm1357, %v1648, 0
        %v1665 = vsel %vm1357, %v1650, 0
        %v1667 = vsel %vm1357, %v1652, 0
        %v1669 = vsel %vm1357, %v1654, 0
        %v1671 = vsel %vm1357, %v1656, 0
        %v1673 = vsel %vm1357, %v1658, 0
        %1675 = vmatpush.msra.mxu0 0.0
        %1676 = vmatpush.msra.mxu0 0.0
        %1677 = vmatpush.msra.mxu0 0.0
        %1678 = vmatpush.msra.mxu0 0.0
        %1679 = vmatpush.msra.mxu0 0.0
        %1680 = vmatpush.msra.mxu0 0.0
        %1681 = vmatpush.msra.mxu0 0.0
        %1682 = vmatpush.msra.mxu0 0.0
        %1683 = vmatpush.msra.mxu0 0.0
        %1684 = vmatpush.msra.mxu0 0.0
        %1685 = vmatpush.msra.mxu0 0.0
        %1686 = vmatpush.msra.mxu0 0.0
        %1687 = vmatpush.msra.mxu0 0.0
        %1688 = vmatpush.msra.mxu0 0.0
        %1689 = vmatpush.msra.mxu0 0.0
        %1690 = vmatpush.msra.mxu0 %v1640
        %1691 = vmatmul.f32.gmra.mxu0 %v1659
        %v1692 = vpop.f32.mrf.mxu0
        %v1693 = vadd.f32 0.0, %v1692
        %1694 = vmatmul.f32.gmra.mxu0 %v1661
        %v1695 = vpop.f32.mrf.mxu0
        %v1696 = vadd.f32 0.0, %v1695
        %1697 = vmatmul.f32.gmra.mxu0 %v1663
        %v1698 = vpop.f32.mrf.mxu0
        %v1699 = vadd.f32 0.0, %v1698
        %1700 = vmatmul.f32.gmra.mxu0 %v1665
        %v1701 = vpop.f32.mrf.mxu0
        %v1702 = vadd.f32 0.0, %v1701
        %1703 = vmatmul.f32.gmra.mxu0 %v1667
        %v1704 = vpop.f32.mrf.mxu0
        %v1705 = vadd.f32 0.0, %v1704
        %1706 = vmatmul.f32.gmra.mxu0 %v1669
        %v1707 = vpop.f32.mrf.mxu0
        %v1708 = vadd.f32 0.0, %v1707
        %1709 = vmatmul.f32.gmra.mxu0 %v1671
        %v1710 = vpop.f32.mrf.mxu0
        %v1711 = vadd.f32 0.0, %v1710
        %1712 = vmatmul.f32.gmra.mxu0 %v1673
        %v1713 = vpop.f32.mrf.mxu0
        %v1714 = vadd.f32 0.0, %v1713
        %1715 = vdwg.mxu0
        %v1716 = vadd.f32 %v1632, %v1693
        %v1717 = vadd.f32 %v1633, %v1696
        %v1718 = vadd.f32 %v1634, %v1699
        %v1719 = vadd.f32 %v1635, %v1702
        %v1720 = vadd.f32 %v1636, %v1705
        %v1721 = vadd.f32 %v1637, %v1708
        %v1722 = vadd.f32 %v1638, %v1711
        %v1723 = vadd.f32 %v1639, %v1714
        %v1724 = vld [vmem:[%s3 + $0x28] sm:$0xff]
        %vm1725 = vcmask 1042432
        %v1726 = vrot.slane %v1319, 5
        %v1727 = vrot.slane %v1320, 5
        %v1728 = vsel %vm1725, %v1726, %v1727
        %v1729 = vrot.slane %v1321, 5
        %v1730 = vsel %vm1725, %v1727, %v1729
        %v1731 = vrot.slane %v1322, 5
        %v1732 = vsel %vm1725, %v1729, %v1731
        %v1733 = vrot.slane %v1323, 5
        %v1734 = vsel %vm1725, %v1731, %v1733
        %v1735 = vrot.slane %v1324, 5
        %v1736 = vsel %vm1725, %v1733, %v1735
        %v1737 = vrot.slane %v1325, 5
        %v1738 = vsel %vm1725, %v1735, %v1737
        %v1739 = vrot.slane %v1326, 5
        %v1740 = vsel %vm1725, %v1737, %v1739
        %v1741 = vrot.slane %v1327, 5
        %v1742 = vsel %vm1725, %v1739, %v1741
        %v1743 = vsel %vm1357, %v1728, 0
        %v1745 = vsel %vm1357, %v1730, 0
        %v1747 = vsel %vm1357, %v1732, 0
        %v1749 = vsel %vm1357, %v1734, 0
        %v1751 = vsel %vm1357, %v1736, 0
        %v1753 = vsel %vm1357, %v1738, 0
        %v1755 = vsel %vm1357, %v1740, 0
        %v1757 = vsel %vm1357, %v1742, 0
        %1759 = vmatpush.msra.mxu0 0.0
        %1760 = vmatpush.msra.mxu0 0.0
        %1761 = vmatpush.msra.mxu0 0.0
        %1762 = vmatpush.msra.mxu0 0.0
        %1763 = vmatpush.msra.mxu0 0.0
        %1764 = vmatpush.msra.mxu0 0.0
        %1765 = vmatpush.msra.mxu0 0.0
        %1766 = vmatpush.msra.mxu0 0.0
        %1767 = vmatpush.msra.mxu0 0.0
        %1768 = vmatpush.msra.mxu0 0.0
        %1769 = vmatpush.msra.mxu0 0.0
        %1770 = vmatpush.msra.mxu0 0.0
        %1771 = vmatpush.msra.mxu0 0.0
        %1772 = vmatpush.msra.mxu0 0.0
        %1773 = vmatpush.msra.mxu0 0.0
        %1774 = vmatpush.msra.mxu0 %v1724
        %1775 = vmatmul.f32.gmra.mxu0 %v1743
        %v1776 = vpop.f32.mrf.mxu0
        %v1777 = vadd.f32 0.0, %v1776
        %1778 = vmatmul.f32.gmra.mxu0 %v1745
        %v1779 = vpop.f32.mrf.mxu0
        %v1780 = vadd.f32 0.0, %v1779
        %1781 = vmatmul.f32.gmra.mxu0 %v1747
        %v1782 = vpop.f32.mrf.mxu0
        %v1783 = vadd.f32 0.0, %v1782
        %1784 = vmatmul.f32.gmra.mxu0 %v1749
        %v1785 = vpop.f32.mrf.mxu0
        %v1786 = vadd.f32 0.0, %v1785
        %1787 = vmatmul.f32.gmra.mxu0 %v1751
        %v1788 = vpop.f32.mrf.mxu0
        %v1789 = vadd.f32 0.0, %v1788
        %1790 = vmatmul.f32.gmra.mxu0 %v1753
        %v1791 = vpop.f32.mrf.mxu0
        %v1792 = vadd.f32 0.0, %v1791
        %1793 = vmatmul.f32.gmra.mxu0 %v1755
        %v1794 = vpop.f32.mrf.mxu0
        %v1795 = vadd.f32 0.0, %v1794
        %1796 = vmatmul.f32.gmra.mxu0 %v1757
        %v1797 = vpop.f32.mrf.mxu0
        %v1798 = vadd.f32 0.0, %v1797
        %1799 = vdwg.mxu0
        %v1800 = vadd.f32 %v1716, %v1777
        %v1801 = vadd.f32 %v1717, %v1780
        %v1802 = vadd.f32 %v1718, %v1783
        %v1803 = vadd.f32 %v1719, %v1786
        %v1804 = vadd.f32 %v1720, %v1789
        %v1805 = vadd.f32 %v1721, %v1792
        %v1806 = vadd.f32 %v1722, %v1795
        %v1807 = vadd.f32 %v1723, %v1798
        %v1808 = vld [vmem:[%s3 + $0x30] sm:$0xff]
        %vm1809 = vcmask 1041408
        %v1810 = vrot.slane %v1319, 6
        %v1811 = vrot.slane %v1320, 6
        %v1812 = vsel %vm1809, %v1810, %v1811
        %v1813 = vrot.slane %v1321, 6
        %v1814 = vsel %vm1809, %v1811, %v1813
        %v1815 = vrot.slane %v1322, 6
        %v1816 = vsel %vm1809, %v1813, %v1815
        %v1817 = vrot.slane %v1323, 6
        %v1818 = vsel %vm1809, %v1815, %v1817
        %v1819 = vrot.slane %v1324, 6
        %v1820 = vsel %vm1809, %v1817, %v1819
        %v1821 = vrot.slane %v1325, 6
        %v1822 = vsel %vm1809, %v1819, %v1821
        %v1823 = vrot.slane %v1326, 6
        %v1824 = vsel %vm1809, %v1821, %v1823
        %v1825 = vrot.slane %v1327, 6
        %v1826 = vsel %vm1809, %v1823, %v1825
        %v1827 = vsel %vm1357, %v1812, 0
        %v1829 = vsel %vm1357, %v1814, 0
        %v1831 = vsel %vm1357, %v1816, 0
        %v1833 = vsel %vm1357, %v1818, 0
        %v1835 = vsel %vm1357, %v1820, 0
        %v1837 = vsel %vm1357, %v1822, 0
        %v1839 = vsel %vm1357, %v1824, 0
        %v1841 = vsel %vm1357, %v1826, 0
        %1843 = vmatpush.msra.mxu0 0.0
        %1844 = vmatpush.msra.mxu0 0.0
        %1845 = vmatpush.msra.mxu0 0.0
        %1846 = vmatpush.msra.mxu0 0.0
        %1847 = vmatpush.msra.mxu0 0.0
        %1848 = vmatpush.msra.mxu0 0.0
        %1849 = vmatpush.msra.mxu0 0.0
        %1850 = vmatpush.msra.mxu0 0.0
        %1851 = vmatpush.msra.mxu0 0.0
        %1852 = vmatpush.msra.mxu0 0.0
        %1853 = vmatpush.msra.mxu0 0.0
        %1854 = vmatpush.msra.mxu0 0.0
        %1855 = vmatpush.msra.mxu0 0.0
        %1856 = vmatpush.msra.mxu0 0.0
        %1857 = vmatpush.msra.mxu0 0.0
        %1858 = vmatpush.msra.mxu0 %v1808
        %1859 = vmatmul.f32.gmra.mxu0 %v1827
        %v1860 = vpop.f32.mrf.mxu0
        %v1861 = vadd.f32 0.0, %v1860
        %1862 = vmatmul.f32.gmra.mxu0 %v1829
        %v1863 = vpop.f32.mrf.mxu0
        %v1864 = vadd.f32 0.0, %v1863
        %1865 = vmatmul.f32.gmra.mxu0 %v1831
        %v1866 = vpop.f32.mrf.mxu0
        %v1867 = vadd.f32 0.0, %v1866
        %1868 = vmatmul.f32.gmra.mxu0 %v1833
        %v1869 = vpop.f32.mrf.mxu0
        %v1870 = vadd.f32 0.0, %v1869
        %1871 = vmatmul.f32.gmra.mxu0 %v1835
        %v1872 = vpop.f32.mrf.mxu0
        %v1873 = vadd.f32 0.0, %v1872
        %1874 = vmatmul.f32.gmra.mxu0 %v1837
        %v1875 = vpop.f32.mrf.mxu0
        %v1876 = vadd.f32 0.0, %v1875
        %1877 = vmatmul.f32.gmra.mxu0 %v1839
        %v1878 = vpop.f32.mrf.mxu0
        %v1879 = vadd.f32 0.0, %v1878
        %1880 = vmatmul.f32.gmra.mxu0 %v1841
        %v1881 = vpop.f32.mrf.mxu0
        %v1882 = vadd.f32 0.0, %v1881
        %1883 = vdwg.mxu0
        %v1884 = vadd.f32 %v1800, %v1861
        %v1885 = vadd.f32 %v1801, %v1864
        %v1886 = vadd.f32 %v1802, %v1867
        %v1887 = vadd.f32 %v1803, %v1870
        %v1888 = vadd.f32 %v1804, %v1873
        %v1889 = vadd.f32 %v1805, %v1876
        %v1890 = vadd.f32 %v1806, %v1879
        %v1891 = vadd.f32 %v1807, %v1882
        %v1892 = vld [vmem:[%s3 + $0x38] sm:$0xff]
        %vm1893 = vcmask 1040384
        %v1894 = vrot.slane %v1319, 7
        %v1895 = vrot.slane %v1320, 7
        %v1896 = vsel %vm1893, %v1894, %v1895
        %v1897 = vrot.slane %v1321, 7
        %v1898 = vsel %vm1893, %v1895, %v1897
        %v1899 = vrot.slane %v1322, 7
        %v1900 = vsel %vm1893, %v1897, %v1899
        %v1901 = vrot.slane %v1323, 7
        %v1902 = vsel %vm1893, %v1899, %v1901
        %v1903 = vrot.slane %v1324, 7
        %v1904 = vsel %vm1893, %v1901, %v1903
        %v1905 = vrot.slane %v1325, 7
        %v1906 = vsel %vm1893, %v1903, %v1905
        %v1907 = vrot.slane %v1326, 7
        %v1908 = vsel %vm1893, %v1905, %v1907
        %v1909 = vrot.slane %v1327, 7
        %v1910 = vsel %vm1893, %v1907, %v1909
        %v1911 = vsel %vm1357, %v1896, 0
        %v1913 = vsel %vm1357, %v1898, 0
        %v1915 = vsel %vm1357, %v1900, 0
        %v1917 = vsel %vm1357, %v1902, 0
        %v1919 = vsel %vm1357, %v1904, 0
        %v1921 = vsel %vm1357, %v1906, 0
        %v1923 = vsel %vm1357, %v1908, 0
        %v1925 = vsel %vm1357, %v1910, 0
        %1927 = vmatpush.msra.mxu0 0.0
        %1928 = vmatpush.msra.mxu0 0.0
        %1929 = vmatpush.msra.mxu0 0.0
        %1930 = vmatpush.msra.mxu0 0.0
        %1931 = vmatpush.msra.mxu0 0.0
        %1932 = vmatpush.msra.mxu0 0.0
        %1933 = vmatpush.msra.mxu0 0.0
        %1934 = vmatpush.msra.mxu0 0.0
        %1935 = vmatpush.msra.mxu0 0.0
        %1936 = vmatpush.msra.mxu0 0.0
        %1937 = vmatpush.msra.mxu0 0.0
        %1938 = vmatpush.msra.mxu0 0.0
        %1939 = vmatpush.msra.mxu0 0.0
        %1940 = vmatpush.msra.mxu0 0.0
        %1941 = vmatpush.msra.mxu0 0.0
        %1942 = vmatpush.msra.mxu0 %v1892
        %1943 = vmatmul.f32.gmra.mxu0 %v1911
        %v1944 = vpop.f32.mrf.mxu0
        %v1945 = vadd.f32 0.0, %v1944
        %1946 = vmatmul.f32.gmra.mxu0 %v1913
        %v1947 = vpop.f32.mrf.mxu0
        %v1948 = vadd.f32 0.0, %v1947
        %1949 = vmatmul.f32.gmra.mxu0 %v1915
        %v1950 = vpop.f32.mrf.mxu0
        %v1951 = vadd.f32 0.0, %v1950
        %1952 = vmatmul.f32.gmra.mxu0 %v1917
        %v1953 = vpop.f32.mrf.mxu0
        %v1954 = vadd.f32 0.0, %v1953
        %1955 = vmatmul.f32.gmra.mxu0 %v1919
        %v1956 = vpop.f32.mrf.mxu0
        %v1957 = vadd.f32 0.0, %v1956
        %1958 = vmatmul.f32.gmra.mxu0 %v1921
        %v1959 = vpop.f32.mrf.mxu0
        %v1960 = vadd.f32 0.0, %v1959
        %1961 = vmatmul.f32.gmra.mxu0 %v1923
        %v1962 = vpop.f32.mrf.mxu0
        %v1963 = vadd.f32 0.0, %v1962
        %1964 = vmatmul.f32.gmra.mxu0 %v1925
        %v1965 = vpop.f32.mrf.mxu0
        %v1966 = vadd.f32 0.0, %v1965
        %1967 = vdwg.mxu0
        %v1968 = vadd.f32 %v1884, %v1945
        %v1969 = vadd.f32 %v1885, %v1948
        %v1970 = vadd.f32 %v1886, %v1951
        %v1971 = vadd.f32 %v1887, %v1954
        %v1972 = vadd.f32 %v1888, %v1957
        %v1973 = vadd.f32 %v1889, %v1960
        %v1974 = vadd.f32 %v1890, %v1963
        %v1975 = vadd.f32 %v1891, %v1966
        %v1976 = vld [vmem:[%s5] sm:$0x1]
        %v1978 = vperm.slane %v1976, 0
        %v1980 = vadd.f32 %v1968, %v1978
        %v1981 = vadd.f32 %v1969, %v1978
        %v1982 = vadd.f32 %v1970, %v1978
        %v1983 = vadd.f32 %v1971, %v1978
        %v1984 = vadd.f32 %v1972, %v1978
        %v1985 = vadd.f32 %v1973, %v1978
        %v1986 = vadd.f32 %v1974, %v1978
        %v1987 = vadd.f32 %v1975, %v1978
        %v1988 = vmax.f32 %v1980, 0.0
        %v1989 = vmax.f32 %v1981, 0.0
        %v1990 = vmax.f32 %v1982, 0.0
        %v1991 = vmax.f32 %v1983, 0.0
        %v1992 = vmax.f32 %v1984, 0.0
        %v1993 = vmax.f32 %v1985, 0.0
        %v1994 = vmax.f32 %v1986, 0.0
        %v1995 = vmax.f32 %v1987, 0.0
        %v1996 = vrot.slane %v1988, 1
        %v1997 = vrot.slane %v1989, 1
        %v1998 = vrot.slane %v1990, 1
        %v1999 = vrot.slane %v1991, 1
        %v2000 = vrot.slane %v1992, 1
        %v2001 = vrot.slane %v1993, 1
        %v2002 = vrot.slane %v1994, 1
        %v2003 = vrot.slane %v1995, 1
        %v2004 = vlaneseq
        %v2005 = vshrl.u32 %v2004, 7
        %vm2006 = vcmp.lt.s32.totalorder %v2005, 7
        %v2007 = vsel %vm2006, %v2002, %v2003
        %v2008 = vsel %vm2006, %v2001, %v2002
        %v2009 = vsel %vm2006, %v2000, %v2001
        %v2010 = vsel %vm2006, %v1999, %v2000
        %v2011 = vsel %vm2006, %v1998, %v1999
        %v2012 = vsel %vm2006, %v1997, %v1998
        %v2013 = vsel %vm2006, %v1996, %v1997
        %v2014 = vsel %vm2006, %v2003, %v1996
        %v2015 = vmax.f32 %v1988, %v2013
        %v2016 = vmax.f32 %v1989, %v2012
        %v2017 = vmax.f32 %v1990, %v2011
        %v2018 = vmax.f32 %v1991, %v2010
        %v2019 = vmax.f32 %v1992, %v2009
        %v2020 = vmax.f32 %v1993, %v2008
        %v2021 = vmax.f32 %v1994, %v2007
        %v2022 = vmax.f32 %v1995, %v2014
        %v2023 = vadd.s32 %v2005, 8
        %v2024 = vadd.s32 %v2005, 16
        %v2025 = vadd.s32 %v2005, 24
        %v2026 = vlaneseq
        %v2027 = vand.u32 %v2026, 127
        %v2028 = vmul.u32 %v2005, 2
        %v2029 = vmul.u32 %v2023, 2
        %v2030 = vmul.u32 %v2024, 2
        %v2031 = vmul.u32 %v2025, 2
        %vm2032 = vcmp.eq.s32.totalorder %v2027, %v2028
        %vm2033 = vcmp.eq.s32.totalorder %v2027, %v2029
        %vm2034 = vcmp.eq.s32.totalorder %v2027, %v2030
        %vm2035 = vcmp.eq.s32.totalorder %v2027, %v2031
        %v2036 = vsel %vm2032, 1, 0
        %v2037 = vsel %vm2033, 1, 0
        %v2038 = vsel %vm2034, 1, 0
        %v2039 = vsel %vm2035, 1, 0
        %v2040 = vcvt.s32.f32 %v2036
        %v2041 = vcvt.s32.f32 %v2037
        %v2042 = vcvt.s32.f32 %v2038
        %v2043 = vcvt.s32.f32 %v2039
        %vm2044 = vcmask 523264
        %v2046 = vsel %vm2044, %v2040, 0
        %v2049 = vsel %vm2044, %v2041, 0
        %v2052 = vsel %vm2044, %v2042, 0
        %v2055 = vsel %vm2044, %v2043, 0
        %2057 = vmatpush.msra.mxu0 0.0
        %2058 = vmatpush.msra.mxu0 0.0
        %2059 = vmatpush.msra.mxu0 0.0
        %2060 = vmatpush.msra.mxu0 0.0
        %2061 = vmatpush.msra.mxu0 0.0
        %2062 = vmatpush.msra.mxu0 0.0
        %2063 = vmatpush.msra.mxu0 0.0
        %2064 = vmatpush.msra.mxu0 0.0
        %2065 = vmatpush.msra.mxu0 %v2022
        %2066 = vmatpush.msra.mxu0 %v2021
        %2067 = vmatpush.msra.mxu0 %v2020
        %2068 = vmatpush.msra.mxu0 %v2019
        %2069 = vmatpush.msra.mxu0 %v2018
        %2070 = vmatpush.msra.mxu0 %v2017
        %2071 = vmatpush.msra.mxu0 %v2016
        %2072 = vmatpush.msra.mxu0 %v2015
        %2073 = vmatmul.f32.gmra.mxu0 %v2046
        %v2074 = vpop.f32.mrf.mxu0
        %v2075 = vadd.f32 0.0, %v2074
        %2076 = vmatmul.f32.gmra.mxu0 %v2049
        %v2077 = vpop.f32.mrf.mxu0
        %v2078 = vadd.f32 0.0, %v2077
        %2079 = vmatmul.f32.gmra.mxu0 %v2052
        %v2080 = vpop.f32.mrf.mxu0
        %v2081 = vadd.f32 0.0, %v2080
        %2082 = vmatmul.f32.gmra.mxu0 %v2055
        %v2083 = vpop.f32.mrf.mxu0
        %v2084 = vadd.f32 0.0, %v2083
        %2085 = vdwg.mxu0
        %v2086 = vld [vmem:[#allocation2] sm:$0x7f]
        %v2087 = vrot.slane %v2075, 5
        %v2088 = vrot.slane %v2078, 5
        %v2089 = vrot.slane %v2081, 5
        %v2090 = vrot.slane %v2084, 5
        %vm2091 = vcmp.lt.s32.totalorder %v2005, 3
        %v2092 = vsel %vm2091, %v2089, %v2090
        %v2093 = vsel %vm2091, %v2088, %v2089
        %v2094 = vsel %vm2091, %v2087, %v2088
        %v2095 = vsel %vm2091, %v2090, %v2087
        %v2096 = vadd.s32 %v2005, 4294967293
        %v2097 = vadd.s32 %v2023, 4294967293
        %v2098 = vadd.s32 %v2024, 4294967293
        %v2099 = vadd.s32 %v2025, 4294967293
        %vm2100 = vcmp.ge.s32.totalorder %v2096, 0
        %vm2101 = vcmp.ge.s32.totalorder %v2097, 0
        %vm2102 = vcmp.ge.s32.totalorder %v2098, 0
        %vm2103 = vcmp.ge.s32.totalorder %v2099, 0
        %vm2104 = vcmp.lt.s32.totalorder %v2096, 32
        %vm2105 = vcmp.lt.s32.totalorder %v2097, 32
        %vm2106 = vcmp.lt.s32.totalorder %v2098, 32
        %vm2107 = vcmp.lt.s32.totalorder %v2099, 32
        %vm2108 = vmand %vm2100, %vm2104
        %vm2109 = vmand %vm2101, %vm2105
        %vm2110 = vmand %vm2102, %vm2106
        %vm2111 = vmand %vm2103, %vm2107
        %v2112 = vsel %vm2108, 1, 0
        %v2113 = vsel %vm2109, 1, 0
        %v2114 = vsel %vm2110, 1, 0
        %v2115 = vsel %vm2111, 1, 0
        %v2116 = vcvt.s32.f32 %v2112
        %v2117 = vcvt.s32.f32 %v2113
        %v2118 = vcvt.s32.f32 %v2114
        %v2119 = vcvt.s32.f32 %v2115
        %v2120 = vmul.f32 %v2095, %v2116
        %v2121 = vmul.f32 %v2094, %v2117
        %v2122 = vmul.f32 %v2093, %v2118
        %v2123 = vmul.f32 %v2092, %v2119
        %v2124 = vperm.slane %v2086, 0
        %v2125 = vmul.f32 %v2120, %v2124
        %v2126 = vmul.f32 %v2121, %v2124
        %v2127 = vmul.f32 %v2122, %v2124
        %v2128 = vmul.f32 %v2123, %v2124
        %v2129 = vadd.f32 %v2125, 0.0
        %v2130 = vadd.f32 %v2126, 0.0
        %v2131 = vadd.f32 %v2127, 0.0
        %v2132 = vadd.f32 %v2128, 0.0
        %v2133 = vrot.slane %v2075, 6
        %v2134 = vrot.slane %v2078, 6
        %v2135 = vrot.slane %v2081, 6
        %v2136 = vrot.slane %v2084, 6
        %vm2137 = vcmp.lt.s32.totalorder %v2005, 2
        %v2138 = vsel %vm2137, %v2135, %v2136
        %v2139 = vsel %vm2137, %v2134, %v2135
        %v2140 = vsel %vm2137, %v2133, %v2134
        %v2141 = vsel %vm2137, %v2136, %v2133
        %v2142 = vadd.s32 %v2005, 4294967294
        %v2143 = vadd.s32 %v2023, 4294967294
        %v2144 = vadd.s32 %v2024, 4294967294
        %v2145 = vadd.s32 %v2025, 4294967294
        %vm2146 = vcmp.ge.s32.totalorder %v2142, 0
        %vm2147 = vcmp.ge.s32.totalorder %v2143, 0
        %vm2148 = vcmp.ge.s32.totalorder %v2144, 0
        %vm2149 = vcmp.ge.s32.totalorder %v2145, 0
        %vm2150 = vcmp.lt.s32.totalorder %v2142, 32
        %vm2151 = vcmp.lt.s32.totalorder %v2143, 32
        %vm2152 = vcmp.lt.s32.totalorder %v2144, 32
        %vm2153 = vcmp.lt.s32.totalorder %v2145, 32
        %vm2154 = vmand %vm2146, %vm2150
        %vm2155 = vmand %vm2147, %vm2151
        %vm2156 = vmand %vm2148, %vm2152
        %vm2157 = vmand %vm2149, %vm2153
        %v2158 = vsel %vm2154, 1, 0
        %v2159 = vsel %vm2155, 1, 0
        %v2160 = vsel %vm2156, 1, 0
        %v2161 = vsel %vm2157, 1, 0
        %v2162 = vcvt.s32.f32 %v2158
        %v2163 = vcvt.s32.f32 %v2159
        %v2164 = vcvt.s32.f32 %v2160
        %v2165 = vcvt.s32.f32 %v2161
        %v2166 = vmul.f32 %v2141, %v2162
        %v2167 = vmul.f32 %v2140, %v2163
        %v2168 = vmul.f32 %v2139, %v2164
        %v2169 = vmul.f32 %v2138, %v2165
        %v2170 = vperm.slane %v2086, 1
        %v2171 = vmul.f32 %v2166, %v2170
        %v2172 = vmul.f32 %v2167, %v2170
        %v2173 = vmul.f32 %v2168, %v2170
        %v2174 = vmul.f32 %v2169, %v2170
        %v2175 = vadd.f32 %v2129, %v2171
        %v2176 = vadd.f32 %v2130, %v2172
        %v2177 = vadd.f32 %v2131, %v2173
        %v2178 = vadd.f32 %v2132, %v2174
        %v2179 = vrot.slane %v2075, 7
        %v2180 = vrot.slane %v2078, 7
        %v2181 = vrot.slane %v2081, 7
        %v2182 = vrot.slane %v2084, 7
        %vm2183 = vcmp.lt.s32.totalorder %v2005, 1
        %v2184 = vsel %vm2183, %v2181, %v2182
        %v2185 = vsel %vm2183, %v2180, %v2181
        %v2186 = vsel %vm2183, %v2179, %v2180
        %v2187 = vsel %vm2183, %v2182, %v2179
        %v2188 = vadd.s32 %v2005, 4294967295
        %v2189 = vadd.s32 %v2023, 4294967295
        %v2190 = vadd.s32 %v2024, 4294967295
        %v2191 = vadd.s32 %v2025, 4294967295
        %vm2192 = vcmp.ge.s32.totalorder %v2188, 0
        %vm2193 = vcmp.ge.s32.totalorder %v2189, 0
        %vm2194 = vcmp.ge.s32.totalorder %v2190, 0
        %vm2195 = vcmp.ge.s32.totalorder %v2191, 0
        %vm2196 = vcmp.lt.s32.totalorder %v2188, 32
        %vm2197 = vcmp.lt.s32.totalorder %v2189, 32
        %vm2198 = vcmp.lt.s32.totalorder %v2190, 32
        %vm2199 = vcmp.lt.s32.totalorder %v2191, 32
        %vm2200 = vmand %vm2192, %vm2196
        %vm2201 = vmand %vm2193, %vm2197
        %vm2202 = vmand %vm2194, %vm2198
        %vm2203 = vmand %vm2195, %vm2199
        %v2204 = vsel %vm2200, 1, 0
        %v2205 = vsel %vm2201, 1, 0
        %v2206 = vsel %vm2202, 1, 0
        %v2207 = vsel %vm2203, 1, 0
        %v2208 = vcvt.s32.f32 %v2204
        %v2209 = vcvt.s32.f32 %v2205
        %v2210 = vcvt.s32.f32 %v2206
        %v2211 = vcvt.s32.f32 %v2207
        %v2212 = vmul.f32 %v2187, %v2208
        %v2213 = vmul.f32 %v2186, %v2209
        %v2214 = vmul.f32 %v2185, %v2210
        %v2215 = vmul.f32 %v2184, %v2211
        %v2216 = vperm.slane %v2086, 2
        %v2217 = vmul.f32 %v2212, %v2216
        %v2218 = vmul.f32 %v2213, %v2216
        %v2219 = vmul.f32 %v2214, %v2216
        %v2220 = vmul.f32 %v2215, %v2216
        %v2221 = vadd.f32 %v2175, %v2217
        %v2222 = vadd.f32 %v2176, %v2218
        %v2223 = vadd.f32 %v2177, %v2219
        %v2224 = vadd.f32 %v2178, %v2220
        %v2225 = vperm.slane %v2086, 3
        %v2226 = vmul.f32 %v2075, %v2225
        %v2227 = vmul.f32 %v2078, %v2225
        %v2228 = vmul.f32 %v2081, %v2225
        %v2229 = vmul.f32 %v2084, %v2225
        %v2230 = vadd.f32 %v2221, %v2226
        %v2231 = vadd.f32 %v2222, %v2227
        %v2232 = vadd.f32 %v2223, %v2228
        %v2233 = vadd.f32 %v2224, %v2229
        %v2234 = vrot.slane %v2075, 1
        %v2235 = vrot.slane %v2078, 1
        %v2236 = vrot.slane %v2081, 1
        %v2237 = vrot.slane %v2084, 1
        %v2238 = vsel %vm2006, %v2236, %v2237
        %v2239 = vsel %vm2006, %v2235, %v2236
        %v2240 = vsel %vm2006, %v2234, %v2235
        %v2241 = vsel %vm2006, %v2237, %v2234
        %v2242 = vadd.s32 %v2005, 1
        %v2243 = vadd.s32 %v2023, 1
        %v2244 = vadd.s32 %v2024, 1
        %v2245 = vadd.s32 %v2025, 1
        %vm2246 = vcmp.ge.s32.totalorder %v2242, 0
        %vm2247 = vcmp.ge.s32.totalorder %v2243, 0
        %vm2248 = vcmp.ge.s32.totalorder %v2244, 0
        %vm2249 = vcmp.ge.s32.totalorder %v2245, 0
        %vm2250 = vcmp.lt.s32.totalorder %v2242, 32
        %vm2251 = vcmp.lt.s32.totalorder %v2243, 32
        %vm2252 = vcmp.lt.s32.totalorder %v2244, 32
        %vm2253 = vcmp.lt.s32.totalorder %v2245, 32
        %vm2254 = vmand %vm2246, %vm2250
        %vm2255 = vmand %vm2247, %vm2251
        %vm2256 = vmand %vm2248, %vm2252
        %vm2257 = vmand %vm2249, %vm2253
        %v2258 = vsel %vm2254, 1, 0
        %v2259 = vsel %vm2255, 1, 0
        %v2260 = vsel %vm2256, 1, 0
        %v2261 = vsel %vm2257, 1, 0
        %v2262 = vcvt.s32.f32 %v2258
        %v2263 = vcvt.s32.f32 %v2259
        %v2264 = vcvt.s32.f32 %v2260
        %v2265 = vcvt.s32.f32 %v2261
        %v2266 = vmul.f32 %v2240, %v2262
        %v2267 = vmul.f32 %v2239, %v2263
        %v2268 = vmul.f32 %v2238, %v2264
        %v2269 = vmul.f32 %v2241, %v2265
        %v2270 = vperm.slane %v2086, 4
        %v2271 = vmul.f32 %v2266, %v2270
        %v2272 = vmul.f32 %v2267, %v2270
        %v2273 = vmul.f32 %v2268, %v2270
        %v2274 = vmul.f32 %v2269, %v2270
        %v2275 = vadd.f32 %v2230, %v2271
        %v2276 = vadd.f32 %v2231, %v2272
        %v2277 = vadd.f32 %v2232, %v2273
        %v2278 = vadd.f32 %v2233, %v2274
        %v2279 = vrot.slane %v2075, 2
        %v2280 = vrot.slane %v2078, 2
        %v2281 = vrot.slane %v2081, 2
        %v2282 = vrot.slane %v2084, 2
        %vm2283 = vcmp.lt.s32.totalorder %v2005, 6
        %v2284 = vsel %vm2283, %v2281, %v2282
        %v2285 = vsel %vm2283, %v2280, %v2281
        %v2286 = vsel %vm2283, %v2279, %v2280
        %v2287 = vsel %vm2283, %v2282, %v2279
        %v2288 = vadd.s32 %v2005, 2
        %v2289 = vadd.s32 %v2023, 2
        %v2290 = vadd.s32 %v2024, 2
        %v2291 = vadd.s32 %v2025, 2
        %vm2292 = vcmp.ge.s32.totalorder %v2288, 0
        %vm2293 = vcmp.ge.s32.totalorder %v2289, 0
        %vm2294 = vcmp.ge.s32.totalorder %v2290, 0
        %vm2295 = vcmp.ge.s32.totalorder %v2291, 0
        %vm2296 = vcmp.lt.s32.totalorder %v2288, 32
        %vm2297 = vcmp.lt.s32.totalorder %v2289, 32
        %vm2298 = vcmp.lt.s32.totalorder %v2290, 32
        %vm2299 = vcmp.lt.s32.totalorder %v2291, 32
        %vm2300 = vmand %vm2292, %vm2296
        %vm2301 = vmand %vm2293, %vm2297
        %vm2302 = vmand %vm2294, %vm2298
        %vm2303 = vmand %vm2295, %vm2299
        %v2304 = vsel %vm2300, 1, 0
        %v2305 = vsel %vm2301, 1, 0
        %v2306 = vsel %vm2302, 1, 0
        %v2307 = vsel %vm2303, 1, 0
        %v2308 = vcvt.s32.f32 %v2304
        %v2309 = vcvt.s32.f32 %v2305
        %v2310 = vcvt.s32.f32 %v2306
        %v2311 = vcvt.s32.f32 %v2307
        %v2312 = vmul.f32 %v2286, %v2308
        %v2313 = vmul.f32 %v2285, %v2309
        %v2314 = vmul.f32 %v2284, %v2310
        %v2315 = vmul.f32 %v2287, %v2311
        %v2316 = vperm.slane %v2086, 5
        %v2317 = vmul.f32 %v2312, %v2316
        %v2318 = vmul.f32 %v2313, %v2316
        %v2319 = vmul.f32 %v2314, %v2316
        %v2320 = vmul.f32 %v2315, %v2316
        %v2321 = vadd.f32 %v2275, %v2317
        %v2322 = vadd.f32 %v2276, %v2318
        %v2323 = vadd.f32 %v2277, %v2319
        %v2324 = vadd.f32 %v2278, %v2320
        %v2325 = vrot.slane %v2075, 3
        %v2326 = vrot.slane %v2078, 3
        %v2327 = vrot.slane %v2081, 3
        %v2328 = vrot.slane %v2084, 3
        %vm2329 = vcmp.lt.s32.totalorder %v2005, 5
        %v2330 = vsel %vm2329, %v2327, %v2328
        %v2331 = vsel %vm2329, %v2326, %v2327
        %v2332 = vsel %vm2329, %v2325, %v2326
        %v2333 = vsel %vm2329, %v2328, %v2325
        %v2334 = vadd.s32 %v2005, 3
        %v2335 = vadd.s32 %v2023, 3
        %v2336 = vadd.s32 %v2024, 3
        %v2337 = vadd.s32 %v2025, 3
        %vm2338 = vcmp.ge.s32.totalorder %v2334, 0
        %vm2339 = vcmp.ge.s32.totalorder %v2335, 0
        %vm2340 = vcmp.ge.s32.totalorder %v2336, 0
        %vm2341 = vcmp.ge.s32.totalorder %v2337, 0
        %vm2342 = vcmp.lt.s32.totalorder %v2334, 32
        %vm2343 = vcmp.lt.s32.totalorder %v2335, 32
        %vm2344 = vcmp.lt.s32.totalorder %v2336, 32
        %vm2345 = vcmp.lt.s32.totalorder %v2337, 32
        %vm2346 = vmand %vm2338, %vm2342
        %vm2347 = vmand %vm2339, %vm2343
        %vm2348 = vmand %vm2340, %vm2344
        %vm2349 = vmand %vm2341, %vm2345
        %v2350 = vsel %vm2346, 1, 0
        %v2351 = vsel %vm2347, 1, 0
        %v2352 = vsel %vm2348, 1, 0
        %v2353 = vsel %vm2349, 1, 0
        %v2354 = vcvt.s32.f32 %v2350
        %v2355 = vcvt.s32.f32 %v2351
        %v2356 = vcvt.s32.f32 %v2352
        %v2357 = vcvt.s32.f32 %v2353
        %v2358 = vmul.f32 %v2332, %v2354
        %v2359 = vmul.f32 %v2331, %v2355
        %v2360 = vmul.f32 %v2330, %v2356
        %v2361 = vmul.f32 %v2333, %v2357
        %v2362 = vperm.slane %v2086, 6
        %v2363 = vmul.f32 %v2358, %v2362
        %v2364 = vmul.f32 %v2359, %v2362
        %v2365 = vmul.f32 %v2360, %v2362
        %v2366 = vmul.f32 %v2361, %v2362
        %v2367 = vadd.f32 %v2321, %v2363
        %v2368 = vadd.f32 %v2322, %v2364
        %v2369 = vadd.f32 %v2323, %v2365
        %v2370 = vadd.f32 %v2324, %v2366
        %v2371 = vld [vmem:[#allocation5] sm:$0x1]
        %v2373 = vperm.slane %v2371, 0
        %v2375 = vadd.f32 %v2367, %v2373
        %v2376 = vadd.f32 %v2368, %v2373
        %v2377 = vadd.f32 %v2369, %v2373
        %v2378 = vadd.f32 %v2370, %v2373
        %v2379 = vmax.f32 %v2375, 0.0
        %v2380 = vmax.f32 %v2376, 0.0
        %v2381 = vmax.f32 %v2377, 0.0
        %v2382 = vmax.f32 %v2378, 0.0
        %v2383 = vld [vmem:[%s11] sm:$0xff]
        %v2384 = vld [vmem:[%s11 + $0x8] sm:$0xff]
        %v2385 = vld [vmem:[%s11 + $0x10] sm:$0xff]
        %v2386 = vld [vmem:[%s11 + $0x18] sm:$0xff]
        %v2387 = vld [vmem:[%s11 + $0x20] sm:$0xff]
        %v2388 = vld [vmem:[%s11 + $0x28] sm:$0xff]
        %v2389 = vld [vmem:[%s11 + $0x30] sm:$0xff]
        %v2390 = vld [vmem:[%s11 + $0x38] sm:$0xff]
        %v2391 = vld [vmem:[%s11 + $0x40] sm:$0xff]
        %v2392 = vld [vmem:[%s11 + $0x48] sm:$0xff]
        %v2393 = vld [vmem:[%s11 + $0x50] sm:$0xff]
        %v2394 = vld [vmem:[%s11 + $0x58] sm:$0xff]
        %v2395 = vld [vmem:[%s11 + $0x60] sm:$0xff]
        %v2396 = vld [vmem:[%s11 + $0x68] sm:$0xff]
        %v2397 = vld [vmem:[%s11 + $0x70] sm:$0xff]
        %v2398 = vld [vmem:[%s11 + $0x78] sm:$0xff]
        %v2399 = vld [vmem:[#allocation7] sm:$0x1]
        %v2401 = vperm.slane %v2399, 0
        %2403 = vmatpush.msra.mxu0 %v2398
        %2404 = vmatpush.msra.mxu0 %v2397
        %2405 = vmatpush.msra.mxu0 %v2396
        %2406 = vmatpush.msra.mxu0 %v2395
        %2407 = vmatpush.msra.mxu0 %v2394
        %2408 = vmatpush.msra.mxu0 %v2393
        %2409 = vmatpush.msra.mxu0 %v2392
        %2410 = vmatpush.msra.mxu0 %v2391
        %2411 = vmatpush.msra.mxu0 %v2390
        %2412 = vmatpush.msra.mxu0 %v2389
        %2413 = vmatpush.msra.mxu0 %v2388
        %2414 = vmatpush.msra.mxu0 %v2387
        %2415 = vmatpush.msra.mxu0 %v2386
        %2416 = vmatpush.msra.mxu0 %v2385
        %2417 = vmatpush.msra.mxu0 %v2384
        %2418 = vmatpush.msra.mxu0 %v2383
        %2419 = vmatmul.f32.gmra.mxu0 %v2379
        %v2420 = vpop.f32.mrf.mxu0
        %v2421 = vadd.f32 %v2401, %v2420
        %2422 = vmatmul.f32.gmra.mxu0 %v2380
        %v2423 = vpop.f32.mrf.mxu0
        %v2424 = vadd.f32 %v2401, %v2423
        %2425 = vmatmul.f32.gmra.mxu0 %v2381
        %v2426 = vpop.f32.mrf.mxu0
        %v2427 = vadd.f32 %v2401, %v2426
        %2428 = vmatmul.f32.gmra.mxu0 %v2382
        %v2429 = vpop.f32.mrf.mxu0
        %v2430 = vadd.f32 %v2401, %v2429
        %2431 = vdwg.mxu0
        %v2432 = vmax.f32 %v2421, 0.0
        %v2433 = vmax.f32 %v2424, 0.0
        %v2434 = vmax.f32 %v2427, 0.0
        %v2435 = vmax.f32 %v2430, 0.0
        %v2436 = vld [vmem:[#allocation8] sm:$0x7f]
        %v2437 = vrot.slane %v2432, 5
        %v2438 = vrot.slane %v2433, 5
        %v2439 = vrot.slane %v2434, 5
        %v2440 = vrot.slane %v2435, 5
        %v2441 = vsel %vm2091, %v2439, %v2440
        %v2442 = vsel %vm2091, %v2438, %v2439
        %v2443 = vsel %vm2091, %v2437, %v2438
        %v2444 = vsel %vm2091, %v2440, %v2437
        %v2445 = vmul.f32 %v2444, %v2116
        %v2446 = vmul.f32 %v2443, %v2117
        %v2447 = vmul.f32 %v2442, %v2118
        %v2448 = vmul.f32 %v2441, %v2119
        %v2449 = vperm.slane %v2436, 0
        %v2450 = vmul.f32 %v2445, %v2449
        %v2451 = vmul.f32 %v2446, %v2449
        %v2452 = vmul.f32 %v2447, %v2449
        %v2453 = vmul.f32 %v2448, %v2449
        %v2454 = vadd.f32 %v2450, 0.0
        %v2455 = vadd.f32 %v2451, 0.0
        %v2456 = vadd.f32 %v2452, 0.0
        %v2457 = vadd.f32 %v2453, 0.0
        %v2458 = vrot.slane %v2432, 6
        %v2459 = vrot.slane %v2433, 6
        %v2460 = vrot.slane %v2434, 6
        %v2461 = vrot.slane %v2435, 6
        %v2462 = vsel %vm2137, %v2460, %v2461
        %v2463 = vsel %vm2137, %v2459, %v2460
        %v2464 = vsel %vm2137, %v2458, %v2459
        %v2465 = vsel %vm2137, %v2461, %v2458
        %v2466 = vmul.f32 %v2465, %v2162
        %v2467 = vmul.f32 %v2464, %v2163
        %v2468 = vmul.f32 %v2463, %v2164
        %v2469 = vmul.f32 %v2462, %v2165
        %v2470 = vperm.slane %v2436, 1
        %v2471 = vmul.f32 %v2466, %v2470
        %v2472 = vmul.f32 %v2467, %v2470
        %v2473 = vmul.f32 %v2468, %v2470
        %v2474 = vmul.f32 %v2469, %v2470
        %v2475 = vadd.f32 %v2454, %v2471
        %v2476 = vadd.f32 %v2455, %v2472
        %v2477 = vadd.f32 %v2456, %v2473
        %v2478 = vadd.f32 %v2457, %v2474
        %v2479 = vrot.slane %v2432, 7
        %v2480 = vrot.slane %v2433, 7
        %v2481 = vrot.slane %v2434, 7
        %v2482 = vrot.slane %v2435, 7
        %v2483 = vsel %vm2183, %v2481, %v2482
        %v2484 = vsel %vm2183, %v2480, %v2481
        %v2485 = vsel %vm2183, %v2479, %v2480
        %v2486 = vsel %vm2183, %v2482, %v2479
        %v2487 = vmul.f32 %v2486, %v2208
        %v2488 = vmul.f32 %v2485, %v2209
        %v2489 = vmul.f32 %v2484, %v2210
        %v2490 = vmul.f32 %v2483, %v2211
        %v2491 = vperm.slane %v2436, 2
        %v2492 = vmul.f32 %v2487, %v2491
        %v2493 = vmul.f32 %v2488, %v2491
        %v2494 = vmul.f32 %v2489, %v2491
        %v2495 = vmul.f32 %v2490, %v2491
        %v2496 = vadd.f32 %v2475, %v2492
        %v2497 = vadd.f32 %v2476, %v2493
        %v2498 = vadd.f32 %v2477, %v2494
        %v2499 = vadd.f32 %v2478, %v2495
        %v2500 = vperm.slane %v2436, 3
        %v2501 = vmul.f32 %v2432, %v2500
        %v2502 = vmul.f32 %v2433, %v2500
        %v2503 = vmul.f32 %v2434, %v2500
        %v2504 = vmul.f32 %v2435, %v2500
        %v2505 = vadd.f32 %v2496, %v2501
        %v2506 = vadd.f32 %v2497, %v2502
        %v2507 = vadd.f32 %v2498, %v2503
        %v2508 = vadd.f32 %v2499, %v2504
        %v2509 = vrot.slane %v2432, 1
        %v2510 = vrot.slane %v2433, 1
        %v2511 = vrot.slane %v2434, 1
        %v2512 = vrot.slane %v2435, 1
        %v2513 = vsel %vm2006, %v2511, %v2512
        %v2514 = vsel %vm2006, %v2510, %v2511
        %v2515 = vsel %vm2006, %v2509, %v2510
        %v2516 = vsel %vm2006, %v2512, %v2509
        %v2517 = vmul.f32 %v2515, %v2262
        %v2518 = vmul.f32 %v2514, %v2263
        %v2519 = vmul.f32 %v2513, %v2264
        %v2520 = vmul.f32 %v2516, %v2265
        %v2521 = vperm.slane %v2436, 4
        %v2522 = vmul.f32 %v2517, %v2521
        %v2523 = vmul.f32 %v2518, %v2521
        %v2524 = vmul.f32 %v2519, %v2521
        %v2525 = vmul.f32 %v2520, %v2521
        %v2526 = vadd.f32 %v2505, %v2522
        %v2527 = vadd.f32 %v2506, %v2523
        %v2528 = vadd.f32 %v2507, %v2524
        %v2529 = vadd.f32 %v2508, %v2525
        %v2530 = vrot.slane %v2432, 2
        %v2531 = vrot.slane %v2433, 2
        %v2532 = vrot.slane %v2434, 2
        %v2533 = vrot.slane %v2435, 2
        %v2534 = vsel %vm2283, %v2532, %v2533
        %v2535 = vsel %vm2283, %v2531, %v2532
        %v2536 = vsel %vm2283, %v2530, %v2531
        %v2537 = vsel %vm2283, %v2533, %v2530
        %v2538 = vmul.f32 %v2536, %v2308
        %v2539 = vmul.f32 %v2535, %v2309
        %v2540 = vmul.f32 %v2534, %v2310
        %v2541 = vmul.f32 %v2537, %v2311
        %v2542 = vperm.slane %v2436, 5
        %v2543 = vmul.f32 %v2538, %v2542
        %v2544 = vmul.f32 %v2539, %v2542
        %v2545 = vmul.f32 %v2540, %v2542
        %v2546 = vmul.f32 %v2541, %v2542
        %v2547 = vadd.f32 %v2526, %v2543
        %v2548 = vadd.f32 %v2527, %v2544
        %v2549 = vadd.f32 %v2528, %v2545
        %v2550 = vadd.f32 %v2529, %v2546
        %v2551 = vrot.slane %v2432, 3
        %v2552 = vrot.slane %v2433, 3
        %v2553 = vrot.slane %v2434, 3
        %v2554 = vrot.slane %v2435, 3
        %v2555 = vsel %vm2329, %v2553, %v2554
        %v2556 = vsel %vm2329, %v2552, %v2553
        %v2557 = vsel %vm2329, %v2551, %v2552
        %v2558 = vsel %vm2329, %v2554, %v2551
        %v2559 = vmul.f32 %v2557, %v2354
        %v2560 = vmul.f32 %v2556, %v2355
        %v2561 = vmul.f32 %v2555, %v2356
        %v2562 = vmul.f32 %v2558, %v2357
        %v2563 = vperm.slane %v2436, 6
        %v2564 = vmul.f32 %v2559, %v2563
        %v2565 = vmul.f32 %v2560, %v2563
        %v2566 = vmul.f32 %v2561, %v2563
        %v2567 = vmul.f32 %v2562, %v2563
        %v2568 = vadd.f32 %v2547, %v2564
        %v2569 = vadd.f32 %v2548, %v2565
        %v2570 = vadd.f32 %v2549, %v2566
        %v2571 = vadd.f32 %v2550, %v2567
        %v2572 = vld [vmem:[#allocation10] sm:$0x1]
        %v2574 = vperm.slane %v2572, 0
        %v2576 = vadd.f32 %v2568, %v2574
        %v2577 = vadd.f32 %v2569, %v2574
        %v2578 = vadd.f32 %v2570, %v2574
        %v2579 = vadd.f32 %v2571, %v2574
        %v2580 = vmax.f32 %v2576, 0.0
        %v2581 = vmax.f32 %v2577, 0.0
        %v2582 = vmax.f32 %v2578, 0.0
        %v2583 = vmax.f32 %v2579, 0.0
        %v2584 = vld [vmem:[#allocation11] sm:$0xff]
        %v2585 = vld [vmem:[#allocation11 + $0x8] sm:$0xff]
        %v2586 = vld [vmem:[#allocation11 + $0x10] sm:$0xff]
        %v2587 = vld [vmem:[#allocation11 + $0x18] sm:$0xff]
        %v2588 = vld [vmem:[#allocation11 + $0x20] sm:$0xff]
        %v2589 = vld [vmem:[#allocation11 + $0x28] sm:$0xff]
        %v2590 = vld [vmem:[#allocation11 + $0x30] sm:$0xff]
        %v2591 = vld [vmem:[#allocation11 + $0x38] sm:$0xff]
        %v2592 = vld [vmem:[#allocation11 + $0x40] sm:$0xff]
        %v2593 = vld [vmem:[#allocation11 + $0x48] sm:$0xff]
        %v2594 = vld [vmem:[#allocation11 + $0x50] sm:$0xff]
        %v2595 = vld [vmem:[#allocation11 + $0x58] sm:$0xff]
        %v2596 = vld [vmem:[#allocation11 + $0x60] sm:$0xff]
        %v2597 = vld [vmem:[#allocation11 + $0x68] sm:$0xff]
        %v2598 = vld [vmem:[#allocation11 + $0x70] sm:$0xff]
        %v2599 = vld [vmem:[#allocation11 + $0x78] sm:$0xff]
        %v2600 = vld [vmem:[#allocation13] sm:$0x1]
        %v2602 = vperm.slane %v2600, 0
        %2604 = vmatpush.msra.mxu0 %v2599
        %2605 = vmatpush.msra.mxu0 %v2598
        %2606 = vmatpush.msra.mxu0 %v2597
        %2607 = vmatpush.msra.mxu0 %v2596
        %2608 = vmatpush.msra.mxu0 %v2595
        %2609 = vmatpush.msra.mxu0 %v2594
        %2610 = vmatpush.msra.mxu0 %v2593
        %2611 = vmatpush.msra.mxu0 %v2592
        %2612 = vmatpush.msra.mxu0 %v2591
        %2613 = vmatpush.msra.mxu0 %v2590
        %2614 = vmatpush.msra.mxu0 %v2589
        %2615 = vmatpush.msra.mxu0 %v2588
        %2616 = vmatpush.msra.mxu0 %v2587
        %2617 = vmatpush.msra.mxu0 %v2586
        %2618 = vmatpush.msra.mxu0 %v2585
        %2619 = vmatpush.msra.mxu0 %v2584
        %2620 = vmatmul.f32.gmra.mxu0 %v2580
        %v2621 = vpop.f32.mrf.mxu0
        %v2622 = vadd.f32 %v2602, %v2621
        %2623 = vmatmul.f32.gmra.mxu0 %v2581
        %v2624 = vpop.f32.mrf.mxu0
        %v2625 = vadd.f32 %v2602, %v2624
        %2626 = vmatmul.f32.gmra.mxu0 %v2582
        %v2627 = vpop.f32.mrf.mxu0
        %v2628 = vadd.f32 %v2602, %v2627
        %2629 = vmatmul.f32.gmra.mxu0 %v2583
        %v2630 = vpop.f32.mrf.mxu0
        %v2631 = vadd.f32 %v2602, %v2630
        %2632 = vdwg.mxu0
        %v2633 = vmax.f32 %v2622, 0.0
        %v2634 = vmax.f32 %v2625, 0.0
        %v2635 = vmax.f32 %v2628, 0.0
        %v2636 = vmax.f32 %v2631, 0.0
        %v2637 = vrot.slane %v2633, 1
        %v2638 = vrot.slane %v2634, 1
        %v2639 = vrot.slane %v2635, 1
        %v2640 = vrot.slane %v2636, 1
        %v2641 = vsel %vm2006, %v2639, %v2640
        %v2642 = vsel %vm2006, %v2638, %v2639
        %v2643 = vsel %vm2006, %v2637, %v2638
        %v2644 = vsel %vm2006, %v2640, %v2637
        %v2645 = vmax.f32 %v2633, %v2643
        %v2646 = vmax.f32 %v2634, %v2642
        %v2647 = vmax.f32 %v2635, %v2641
        %v2648 = vmax.f32 %v2636, %v2644
        %vm2649 = vcmask 261120
        %v2650 = vsel %vm2649, %v2040, 0
        %v2652 = vsel %vm2649, %v2041, 0
        %2654 = vmatpush.msra.mxu0 0.0
        %2655 = vmatpush.msra.mxu0 0.0
        %2656 = vmatpush.msra.mxu0 0.0
        %2657 = vmatpush.msra.mxu0 0.0
        %2658 = vmatpush.msra.mxu0 0.0
        %2659 = vmatpush.msra.mxu0 0.0
        %2660 = vmatpush.msra.mxu0 0.0
        %2661 = vmatpush.msra.mxu0 0.0
        %2662 = vmatpush.msra.mxu0 0.0
        %2663 = vmatpush.msra.mxu0 0.0
        %2664 = vmatpush.msra.mxu0 0.0
        %2665 = vmatpush.msra.mxu0 0.0
        %2666 = vmatpush.msra.mxu0 %v2648
        %2667 = vmatpush.msra.mxu0 %v2647
        %2668 = vmatpush.msra.mxu0 %v2646
        %2669 = vmatpush.msra.mxu0 %v2645
        %2670 = vmatmul.f32.gmra.mxu0 %v2650
        %v2671 = vpop.f32.mrf.mxu0
        %v2672 = vadd.f32 0.0, %v2671
        %2673 = vmatmul.f32.gmra.mxu0 %v2652
        %v2674 = vpop.f32.mrf.mxu0
        %v2675 = vadd.f32 0.0, %v2674
        %2676 = vdwg.mxu0
        %v2677 = vld [vmem:[#allocation14] sm:$0x7f]
        %v2678 = vrot.slane %v2672, 5
        %v2679 = vrot.slane %v2675, 5
        %v2680 = vsel %vm2091, %v2678, %v2679
        %v2681 = vsel %vm2091, %v2679, %v2678
        %vm2682 = vcmp.lt.s32.totalorder %v2096, 16
        %vm2683 = vcmp.lt.s32.totalorder %v2097, 16
        %vm2684 = vmand %vm2100, %vm2682
        %vm2685 = vmand %vm2101, %vm2683
        %v2686 = vsel %vm2684, 1, 0
        %v2687 = vsel %vm2685, 1, 0
        %v2688 = vcvt.s32.f32 %v2686
        %v2689 = vcvt.s32.f32 %v2687
        %v2690 = vmul.f32 %v2681, %v2688
        %v2691 = vmul.f32 %v2680, %v2689
        %v2692 = vperm.slane %v2677, 0
        %v2693 = vmul.f32 %v2690, %v2692
        %v2694 = vmul.f32 %v2691, %v2692
        %v2695 = vadd.f32 %v2693, 0.0
        %v2696 = vadd.f32 %v2694, 0.0
        %v2697 = vrot.slane %v2672, 6
        %v2698 = vrot.slane %v2675, 6
        %v2699 = vsel %vm2137, %v2697, %v2698
        %v2700 = vsel %vm2137, %v2698, %v2697
        %vm2701 = vcmp.lt.s32.totalorder %v2142, 16
        %vm2702 = vcmp.lt.s32.totalorder %v2143, 16
        %vm2703 = vmand %vm2146, %vm2701
        %vm2704 = vmand %vm2147, %vm2702
        %v2705 = vsel %vm2703, 1, 0
        %v2706 = vsel %vm2704, 1, 0
        %v2707 = vcvt.s32.f32 %v2705
        %v2708 = vcvt.s32.f32 %v2706
        %v2709 = vmul.f32 %v2700, %v2707
        %v2710 = vmul.f32 %v2699, %v2708
        %v2711 = vperm.slane %v2677, 1
        %v2712 = vmul.f32 %v2709, %v2711
        %v2713 = vmul.f32 %v2710, %v2711
        %v2714 = vadd.f32 %v2695, %v2712
        %v2715 = vadd.f32 %v2696, %v2713
        %v2716 = vrot.slane %v2672, 7
        %v2717 = vrot.slane %v2675, 7
        %v2718 = vsel %vm2183, %v2716, %v2717
        %v2719 = vsel %vm2183, %v2717, %v2716
        %vm2720 = vcmp.lt.s32.totalorder %v2188, 16
        %vm2721 = vcmp.lt.s32.totalorder %v2189, 16
        %vm2722 = vmand %vm2192, %vm2720
        %vm2723 = vmand %vm2193, %vm2721
        %v2724 = vsel %vm2722, 1, 0
        %v2725 = vsel %vm2723, 1, 0
        %v2726 = vcvt.s32.f32 %v2724
        %v2727 = vcvt.s32.f32 %v2725
        %v2728 = vmul.f32 %v2719, %v2726
        %v2729 = vmul.f32 %v2718, %v2727
        %v2730 = vperm.slane %v2677, 2
        %v2731 = vmul.f32 %v2728, %v2730
        %v2732 = vmul.f32 %v2729, %v2730
        %v2733 = vadd.f32 %v2714, %v2731
        %v2734 = vadd.f32 %v2715, %v2732
        %v2735 = vperm.slane %v2677, 3
        %v2736 = vmul.f32 %v2672, %v2735
        %v2737 = vmul.f32 %v2675, %v2735
        %v2738 = vadd.f32 %v2733, %v2736
        %v2739 = vadd.f32 %v2734, %v2737
        %v2740 = vrot.slane %v2672, 1
        %v2741 = vrot.slane %v2675, 1
        %v2742 = vsel %vm2006, %v2740, %v2741
        %v2743 = vsel %vm2006, %v2741, %v2740
        %vm2744 = vcmp.lt.s32.totalorder %v2242, 16
        %vm2745 = vcmp.lt.s32.totalorder %v2243, 16
        %vm2746 = vmand %vm2246, %vm2744
        %vm2747 = vmand %vm2247, %vm2745
        %v2748 = vsel %vm2746, 1, 0
        %v2749 = vsel %vm2747, 1, 0
        %v2750 = vcvt.s32.f32 %v2748
        %v2751 = vcvt.s32.f32 %v2749
        %v2752 = vmul.f32 %v2742, %v2750
        %v2753 = vmul.f32 %v2743, %v2751
        %v2754 = vperm.slane %v2677, 4
        %v2755 = vmul.f32 %v2752, %v2754
        %v2756 = vmul.f32 %v2753, %v2754
        %v2757 = vadd.f32 %v2738, %v2755
        %v2758 = vadd.f32 %v2739, %v2756
        %v2759 = vrot.slane %v2672, 2
        %v2760 = vrot.slane %v2675, 2
        %v2761 = vsel %vm2283, %v2759, %v2760
        %v2762 = vsel %vm2283, %v2760, %v2759
        %vm2763 = vcmp.lt.s32.totalorder %v2288, 16
        %vm2764 = vcmp.lt.s32.totalorder %v2289, 16
        %vm2765 = vmand %vm2292, %vm2763
        %vm2766 = vmand %vm2293, %vm2764
        %v2767 = vsel %vm2765, 1, 0
        %v2768 = vsel %vm2766, 1, 0
        %v2769 = vcvt.s32.f32 %v2767
        %v2770 = vcvt.s32.f32 %v2768
        %v2771 = vmul.f32 %v2761, %v2769
        %v2772 = vmul.f32 %v2762, %v2770
        %v2773 = vperm.slane %v2677, 5
        %v2774 = vmul.f32 %v2771, %v2773
        %v2775 = vmul.f32 %v2772, %v2773
        %v2776 = vadd.f32 %v2757, %v2774
        %v2777 = vadd.f32 %v2758, %v2775
        %v2778 = vrot.slane %v2672, 3
        %v2779 = vrot.slane %v2675, 3
        %v2780 = vsel %vm2329, %v2778, %v2779
        %v2781 = vsel %vm2329, %v2779, %v2778
        %vm2782 = vcmp.lt.s32.totalorder %v2334, 16
        %vm2783 = vcmp.lt.s32.totalorder %v2335, 16
        %vm2784 = vmand %vm2338, %vm2782
        %vm2785 = vmand %vm2339, %vm2783
        %v2786 = vsel %vm2784, 1, 0
        %v2787 = vsel %vm2785, 1, 0
        %v2788 = vcvt.s32.f32 %v2786
        %v2789 = vcvt.s32.f32 %v2787
        %v2790 = vmul.f32 %v2780, %v2788
        %v2791 = vmul.f32 %v2781, %v2789
        %v2792 = vperm.slane %v2677, 6
        %v2793 = vmul.f32 %v2790, %v2792
        %v2794 = vmul.f32 %v2791, %v2792
        %v2795 = vadd.f32 %v2776, %v2793
        %v2796 = vadd.f32 %v2777, %v2794
        %v2797 = vld [vmem:[#allocation16] sm:$0x1]
        %v2799 = vperm.slane %v2797, 0
        %v2801 = vadd.f32 %v2795, %v2799
        %v2802 = vadd.f32 %v2796, %v2799
        %v2803 = vmax.f32 %v2801, 0.0
        %v2804 = vmax.f32 %v2802, 0.0
        %v2805 = vld [vmem:[#allocation17] sm:$0xff]
        %v2806 = vld [vmem:[#allocation17 + $0x8] sm:$0xff]
        %v2807 = vld [vmem:[#allocation17 + $0x10] sm:$0xff]
        %v2808 = vld [vmem:[#allocation17 + $0x18] sm:$0xff]
        %v2809 = vld [vmem:[#allocation17 + $0x20] sm:$0xff]
        %v2810 = vld [vmem:[#allocation17 + $0x28] sm:$0xff]
        %v2811 = vld [vmem:[#allocation17 + $0x30] sm:$0xff]
        %v2812 = vld [vmem:[#allocation17 + $0x38] sm:$0xff]
        %v2813 = vld [vmem:[#allocation17 + $0x40] sm:$0xff]
        %v2814 = vld [vmem:[#allocation17 + $0x48] sm:$0xff]
        %v2815 = vld [vmem:[#allocation17 + $0x50] sm:$0xff]
        %v2816 = vld [vmem:[#allocation17 + $0x58] sm:$0xff]
        %v2817 = vld [vmem:[#allocation17 + $0x60] sm:$0xff]
        %v2818 = vld [vmem:[#allocation17 + $0x68] sm:$0xff]
        %v2819 = vld [vmem:[#allocation17 + $0x70] sm:$0xff]
        %v2820 = vld [vmem:[#allocation17 + $0x78] sm:$0xff]
        %v2821 = vld [vmem:[#allocation19] sm:$0x1]
        %v2823 = vperm.slane %v2821, 0
        %2825 = vmatpush.msra.mxu0 %v2820
        %2826 = vmatpush.msra.mxu0 %v2819
        %2827 = vmatpush.msra.mxu0 %v2818
        %2828 = vmatpush.msra.mxu0 %v2817
        %2829 = vmatpush.msra.mxu0 %v2816
        %2830 = vmatpush.msra.mxu0 %v2815
        %2831 = vmatpush.msra.mxu0 %v2814
        %2832 = vmatpush.msra.mxu0 %v2813
        %2833 = vmatpush.msra.mxu0 %v2812
        %2834 = vmatpush.msra.mxu0 %v2811
        %2835 = vmatpush.msra.mxu0 %v2810
        %2836 = vmatpush.msra.mxu0 %v2809
        %2837 = vmatpush.msra.mxu0 %v2808
        %2838 = vmatpush.msra.mxu0 %v2807
        %2839 = vmatpush.msra.mxu0 %v2806
        %2840 = vmatpush.msra.mxu0 %v2805
        %2841 = vmatmul.f32.gmra.mxu0 %v2803
        %v2842 = vpop.f32.mrf.mxu0
        %v2843 = vadd.f32 %v2823, %v2842
        %2844 = vmatmul.f32.gmra.mxu0 %v2804
        %v2845 = vpop.f32.mrf.mxu0
        %v2846 = vadd.f32 %v2823, %v2845
        %2847 = vdwg.mxu0
        %v2848 = vmax.f32 %v2843, 0.0
        %v2849 = vmax.f32 %v2846, 0.0
        %v2850 = vld [vmem:[#allocation20] sm:$0x7f]
        %v2851 = vrot.slane %v2848, 5
        %v2852 = vrot.slane %v2849, 5
        %v2853 = vsel %vm2091, %v2851, %v2852
        %v2854 = vsel %vm2091, %v2852, %v2851
        %v2855 = vmul.f32 %v2854, %v2688
        %v2856 = vmul.f32 %v2853, %v2689
        %v2857 = vperm.slane %v2850, 0
        %v2858 = vmul.f32 %v2855, %v2857
        %v2859 = vmul.f32 %v2856, %v2857
        %v2860 = vadd.f32 %v2858, 0.0
        %v2861 = vadd.f32 %v2859, 0.0
        %v2862 = vrot.slane %v2848, 6
        %v2863 = vrot.slane %v2849, 6
        %v2864 = vsel %vm2137, %v2862, %v2863
        %v2865 = vsel %vm2137, %v2863, %v2862
        %v2866 = vmul.f32 %v2865, %v2707
        %v2867 = vmul.f32 %v2864, %v2708
        %v2868 = vperm.slane %v2850, 1
        %v2869 = vmul.f32 %v2866, %v2868
        %v2870 = vmul.f32 %v2867, %v2868
        %v2871 = vadd.f32 %v2860, %v2869
        %v2872 = vadd.f32 %v2861, %v2870
        %v2873 = vrot.slane %v2848, 7
        %v2874 = vrot.slane %v2849, 7
        %v2875 = vsel %vm2183, %v2873, %v2874
        %v2876 = vsel %vm2183, %v2874, %v2873
        %v2877 = vmul.f32 %v2876, %v2726
        %v2878 = vmul.f32 %v2875, %v2727
        %v2879 = vperm.slane %v2850, 2
        %v2880 = vmul.f32 %v2877, %v2879
        %v2881 = vmul.f32 %v2878, %v2879
        %v2882 = vadd.f32 %v2871, %v2880
        %v2883 = vadd.f32 %v2872, %v2881
        %v2884 = vperm.slane %v2850, 3
        %v2885 = vmul.f32 %v2848, %v2884
        %v2886 = vmul.f32 %v2849, %v2884
        %v2887 = vadd.f32 %v2882, %v2885
        %v2888 = vadd.f32 %v2883, %v2886
        %v2889 = vrot.slane %v2848, 1
        %v2890 = vrot.slane %v2849, 1
        %v2891 = vsel %vm2006, %v2889, %v2890
        %v2892 = vsel %vm2006, %v2890, %v2889
        %v2893 = vmul.f32 %v2891, %v2750
        %v2894 = vmul.f32 %v2892, %v2751
        %v2895 = vperm.slane %v2850, 4
        %v2896 = vmul.f32 %v2893, %v2895
        %v2897 = vmul.f32 %v2894, %v2895
        %v2898 = vadd.f32 %v2887, %v2896
        %v2899 = vadd.f32 %v2888, %v2897
        %v2900 = vrot.slane %v2848, 2
        %v2901 = vrot.slane %v2849, 2
        %v2902 = vsel %vm2283, %v2900, %v2901
        %v2903 = vsel %vm2283, %v2901, %v2900
        %v2904 = vmul.f32 %v2902, %v2769
        %v2905 = vmul.f32 %v2903, %v2770
        %v2906 = vperm.slane %v2850, 5
        %v2907 = vmul.f32 %v2904, %v2906
        %v2908 = vmul.f32 %v2905, %v2906
        %v2909 = vadd.f32 %v2898, %v2907
        %v2910 = vadd.f32 %v2899, %v2908
        %v2911 = vrot.slane %v2848, 3
        %v2912 = vrot.slane %v2849, 3
        %v2913 = vsel %vm2329, %v2911, %v2912
        %v2914 = vsel %vm2329, %v2912, %v2911
        %v2915 = vmul.f32 %v2913, %v2788
        %v2916 = vmul.f32 %v2914, %v2789
        %v2917 = vperm.slane %v2850, 6
        %v2918 = vmul.f32 %v2915, %v2917
        %v2919 = vmul.f32 %v2916, %v2917
        %v2920 = vadd.f32 %v2909, %v2918
        %v2921 = vadd.f32 %v2910, %v2919
        %v2922 = vld [vmem:[#allocation22] sm:$0x1]
        %v2924 = vperm.slane %v2922, 0
        %v2926 = vadd.f32 %v2920, %v2924
        %v2927 = vadd.f32 %v2921, %v2924
        %v2928 = vmax.f32 %v2926, 0.0
        %v2929 = vmax.f32 %v2927, 0.0
        %v2930 = vld [vmem:[#allocation23] sm:$0xff]
        %v2931 = vld [vmem:[#allocation23 + $0x8] sm:$0xff]
        %v2932 = vld [vmem:[#allocation23 + $0x10] sm:$0xff]
        %v2933 = vld [vmem:[#allocation23 + $0x18] sm:$0xff]
        %v2934 = vld [vmem:[#allocation23 + $0x20] sm:$0xff]
        %v2935 = vld [vmem:[#allocation23 + $0x28] sm:$0xff]
        %v2936 = vld [vmem:[#allocation23 + $0x30] sm:$0xff]
        %v2937 = vld [vmem:[#allocation23 + $0x38] sm:$0xff]
        %v2938 = vld [vmem:[#allocation23 + $0x40] sm:$0xff]
        %v2939 = vld [vmem:[#allocation23 + $0x48] sm:$0xff]
        %v2940 = vld [vmem:[#allocation23 + $0x50] sm:$0xff]
        %v2941 = vld [vmem:[#allocation23 + $0x58] sm:$0xff]
        %v2942 = vld [vmem:[#allocation23 + $0x60] sm:$0xff]
        %v2943 = vld [vmem:[#allocation23 + $0x68] sm:$0xff]
        %v2944 = vld [vmem:[#allocation23 + $0x70] sm:$0xff]
        %v2945 = vld [vmem:[#allocation23 + $0x78] sm:$0xff]
        %v2946 = vld [vmem:[#allocation25] sm:$0x1]
        %v2948 = vperm.slane %v2946, 0
        %2950 = vmatpush.msra.mxu0 %v2945
        %2951 = vmatpush.msra.mxu0 %v2944
        %2952 = vmatpush.msra.mxu0 %v2943
        %2953 = vmatpush.msra.mxu0 %v2942
        %2954 = vmatpush.msra.mxu0 %v2941
        %2955 = vmatpush.msra.mxu0 %v2940
        %2956 = vmatpush.msra.mxu0 %v2939
        %2957 = vmatpush.msra.mxu0 %v2938
        %2958 = vmatpush.msra.mxu0 %v2937
        %2959 = vmatpush.msra.mxu0 %v2936
        %2960 = vmatpush.msra.mxu0 %v2935
        %2961 = vmatpush.msra.mxu0 %v2934
        %2962 = vmatpush.msra.mxu0 %v2933
        %2963 = vmatpush.msra.mxu0 %v2932
        %2964 = vmatpush.msra.mxu0 %v2931
        %2965 = vmatpush.msra.mxu0 %v2930
        %2966 = vmatmul.f32.gmra.mxu0 %v2928
        %v2967 = vpop.f32.mrf.mxu0
        %v2968 = vadd.f32 %v2948, %v2967
        %2969 = vmatmul.f32.gmra.mxu0 %v2929
        %v2970 = vpop.f32.mrf.mxu0
        %v2971 = vadd.f32 %v2948, %v2970
        %2972 = vdwg.mxu0
        %v2973 = vmax.f32 %v2968, 0.0
        %v2974 = vmax.f32 %v2971, 0.0
        %v2975 = vrot.slane %v2973, 1
        %v2976 = vrot.slane %v2974, 1
        %v2977 = vsel %vm2006, %v2975, %v2976
        %v2978 = vsel %vm2006, %v2976, %v2975
        %v2979 = vmax.f32 %v2973, %v2977
        %v2980 = vmax.f32 %v2974, %v2978
        %vm2981 = vcmask 130048
        %v2982 = vsel %vm2981, %v2040, 0
        %2984 = vmatpush.msra.mxu0 0.0
        %2985 = vmatpush.msra.mxu0 0.0
        %2986 = vmatpush.msra.mxu0 0.0
        %2987 = vmatpush.msra.mxu0 0.0
        %2988 = vmatpush.msra.mxu0 0.0
        %2989 = vmatpush.msra.mxu0 0.0
        %2990 = vmatpush.msra.mxu0 0.0
        %2991 = vmatpush.msra.mxu0 0.0
        %2992 = vmatpush.msra.mxu0 0.0
        %2993 = vmatpush.msra.mxu0 0.0
        %2994 = vmatpush.msra.mxu0 0.0
        %2995 = vmatpush.msra.mxu0 0.0
        %2996 = vmatpush.msra.mxu0 0.0
        %2997 = vmatpush.msra.mxu0 0.0
        %2998 = vmatpush.msra.mxu0 %v2980
        %2999 = vmatpush.msra.mxu0 %v2979
        %3000 = vmatmul.f32.gmra.mxu0 %v2982
        %v3001 = vpop.f32.mrf.mxu0
        %v3002 = vadd.f32 0.0, %v3001
        %3003 = vdwg.mxu0
        %v3004 = vld [vmem:[#allocation26] sm:$0x7f]
        %v3005 = vrot.slane %v3002, 5
        %vm3006 = vcmp.lt.s32.totalorder %v2096, 8
        %vm3007 = vmand %vm2100, %vm3006
        %v3008 = vsel %vm3007, 1, 0
        %v3009 = vcvt.s32.f32 %v3008
        %v3010 = vmul.f32 %v3005, %v3009
        %v3011 = vperm.slane %v3004, 0
        %v3012 = vmul.f32 %v3010, %v3011
        %v3013 = vadd.f32 %v3012, 0.0
        %v3014 = vrot.slane %v3002, 6
        %vm3015 = vcmp.lt.s32.totalorder %v2142, 8
        %vm3016 = vmand %vm2146, %vm3015
        %v3017 = vsel %vm3016, 1, 0
        %v3018 = vcvt.s32.f32 %v3017
        %v3019 = vmul.f32 %v3014, %v3018
        %v3020 = vperm.slane %v3004, 1
        %v3021 = vmul.f32 %v3019, %v3020
        %v3022 = vadd.f32 %v3013, %v3021
        %v3023 = vrot.slane %v3002, 7
        %vm3024 = vcmp.lt.s32.totalorder %v2188, 8
        %vm3025 = vmand %vm2192, %vm3024
        %v3026 = vsel %vm3025, 1, 0
        %v3027 = vcvt.s32.f32 %v3026
        %v3028 = vmul.f32 %v3023, %v3027
        %v3029 = vperm.slane %v3004, 2
        %v3030 = vmul.f32 %v3028, %v3029
        %v3031 = vadd.f32 %v3022, %v3030
        %v3032 = vperm.slane %v3004, 3
        %v3033 = vmul.f32 %v3002, %v3032
        %v3034 = vadd.f32 %v3031, %v3033
        %v3035 = vrot.slane %v3002, 1
        %vm3036 = vcmp.lt.s32.totalorder %v2242, 8
        %vm3037 = vmand %vm2246, %vm3036
        %v3038 = vsel %vm3037, 1, 0
        %v3039 = vcvt.s32.f32 %v3038
        %v3040 = vmul.f32 %v3035, %v3039
        %v3041 = vperm.slane %v3004, 4
        %v3042 = vmul.f32 %v3040, %v3041
        %v3043 = vadd.f32 %v3034, %v3042
        %v3044 = vrot.slane %v3002, 2
        %vm3045 = vcmp.lt.s32.totalorder %v2288, 8
        %vm3046 = vmand %vm2292, %vm3045
        %v3047 = vsel %vm3046, 1, 0
        %v3048 = vcvt.s32.f32 %v3047
        %v3049 = vmul.f32 %v3044, %v3048
        %v3050 = vperm.slane %v3004, 5
        %v3051 = vmul.f32 %v3049, %v3050
        %v3052 = vadd.f32 %v3043, %v3051
        %v3053 = vrot.slane %v3002, 3
        %vm3054 = vcmp.lt.s32.totalorder %v2334, 8
        %vm3055 = vmand %vm2338, %vm3054
        %v3056 = vsel %vm3055, 1, 0
        %v3057 = vcvt.s32.f32 %v3056
        %v3058 = vmul.f32 %v3053, %v3057
        %v3059 = vperm.slane %v3004, 6
        %v3060 = vmul.f32 %v3058, %v3059
        %v3061 = vadd.f32 %v3052, %v3060
        %v3062 = vld [vmem:[#allocation28] sm:$0x1]
        %v3064 = vperm.slane %v3062, 0
        %v3066 = vadd.f32 %v3061, %v3064
        %v3067 = vmax.f32 %v3066, 0.0
        %v3068 = vld [vmem:[#allocation29] sm:$0xff]
        %v3069 = vld [vmem:[#allocation29 + $0x8] sm:$0xff]
        %v3070 = vld [vmem:[#allocation29 + $0x10] sm:$0xff]
        %v3071 = vld [vmem:[#allocation29 + $0x18] sm:$0xff]
        %v3072 = vld [vmem:[#allocation29 + $0x20] sm:$0xff]
        %v3073 = vld [vmem:[#allocation29 + $0x28] sm:$0xff]
        %v3074 = vld [vmem:[#allocation29 + $0x30] sm:$0xff]
        %v3075 = vld [vmem:[#allocation29 + $0x38] sm:$0xff]
        %v3076 = vld [vmem:[#allocation29 + $0x40] sm:$0xff]
        %v3077 = vld [vmem:[#allocation29 + $0x48] sm:$0xff]
        %v3078 = vld [vmem:[#allocation29 + $0x50] sm:$0xff]
        %v3079 = vld [vmem:[#allocation29 + $0x58] sm:$0xff]
        %v3080 = vld [vmem:[#allocation29 + $0x60] sm:$0xff]
        %v3081 = vld [vmem:[#allocation29 + $0x68] sm:$0xff]
        %v3082 = vld [vmem:[#allocation29 + $0x70] sm:$0xff]
        %v3083 = vld [vmem:[#allocation29 + $0x78] sm:$0xff]
        %v3084 = vld [vmem:[#allocation29 + $0x80] sm:$0xff]
        %v3085 = vld [vmem:[#allocation29 + $0x88] sm:$0xff]
        %v3086 = vld [vmem:[#allocation29 + $0x90] sm:$0xff]
        %v3087 = vld [vmem:[#allocation29 + $0x98] sm:$0xff]
        %v3088 = vld [vmem:[#allocation29 + $0xa0] sm:$0xff]
        %v3089 = vld [vmem:[#allocation29 + $0xa8] sm:$0xff]
        %v3090 = vld [vmem:[#allocation29 + $0xb0] sm:$0xff]
        %v3091 = vld [vmem:[#allocation29 + $0xb8] sm:$0xff]
        %v3092 = vld [vmem:[#allocation29 + $0xc0] sm:$0xff]
        %v3093 = vld [vmem:[#allocation29 + $0xc8] sm:$0xff]
        %v3094 = vld [vmem:[#allocation29 + $0xd0] sm:$0xff]
        %v3095 = vld [vmem:[#allocation29 + $0xd8] sm:$0xff]
        %v3096 = vld [vmem:[#allocation29 + $0xe0] sm:$0xff]
        %v3097 = vld [vmem:[#allocation29 + $0xe8] sm:$0xff]
        %v3098 = vld [vmem:[#allocation29 + $0xf0] sm:$0xff]
        %v3099 = vld [vmem:[#allocation29 + $0xf8] sm:$0xff]
        %v3100 = vld [vmem:[#allocation31] sm:$0x3]
        %v3102 = vperm.slane %v3100, 0
        %v3103 = vperm.slane %v3100, 1
        %3106 = vmatpush.msra.mxu0 %v3098
        %3107 = vmatpush.msra.mxu0 %v3096
        %3108 = vmatpush.msra.mxu0 %v3094
        %3109 = vmatpush.msra.mxu0 %v3092
        %3110 = vmatpush.msra.mxu0 %v3090
        %3111 = vmatpush.msra.mxu0 %v3088
        %3112 = vmatpush.msra.mxu0 %v3086
        %3113 = vmatpush.msra.mxu0 %v3084
        %3114 = vmatpush.msra.mxu0 %v3082
        %3115 = vmatpush.msra.mxu0 %v3080
        %3116 = vmatpush.msra.mxu0 %v3078
        %3117 = vmatpush.msra.mxu0 %v3076
        %3118 = vmatpush.msra.mxu0 %v3074
        %3119 = vmatpush.msra.mxu0 %v3072
        %3120 = vmatpush.msra.mxu0 %v3070
        %3121 = vmatpush.msra.mxu0 %v3068
        %3122 = vmatmul.f32.gmra.mxu0 %v3067
        %v3123 = vpop.f32.mrf.mxu0
        %v3124 = vadd.f32 %v3102, %v3123
        %3125 = vdwg.mxu0
        %3126 = vmatpush.msra.mxu0 %v3099
        %3127 = vmatpush.msra.mxu0 %v3097
        %3128 = vmatpush.msra.mxu0 %v3095
        %3129 = vmatpush.msra.mxu0 %v3093
        %3130 = vmatpush.msra.mxu0 %v3091
        %3131 = vmatpush.msra.mxu0 %v3089
        %3132 = vmatpush.msra.mxu0 %v3087
        %3133 = vmatpush.msra.mxu0 %v3085
        %3134 = vmatpush.msra.mxu0 %v3083
        %3135 = vmatpush.msra.mxu0 %v3081
        %3136 = vmatpush.msra.mxu0 %v3079
        %3137 = vmatpush.msra.mxu0 %v3077
        %3138 = vmatpush.msra.mxu0 %v3075
        %3139 = vmatpush.msra.mxu0 %v3073
        %3140 = vmatpush.msra.mxu0 %v3071
        %3141 = vmatpush.msra.mxu0 %v3069
        %3142 = vmatmul.f32.gmra.mxu0 %v3067
        %v3143 = vpop.f32.mrf.mxu0
        %v3144 = vadd.f32 %v3103, %v3143
        %3145 = vdwg.mxu0
        %v3146 = vmax.f32 %v3124, 0.0
        %v3147 = vmax.f32 %v3144, 0.0
        %v3148 = vld [vmem:[%s47] sm:$0x7f]
        %v3149 = vld [vmem:[%s47 + $0x8] sm:$0x7f]
        %v3150 = vrot.slane %v3146, 5
        %v3151 = vrot.slane %v3147, 5
        %v3152 = vmul.f32 %v3150, %v3009
        %v3153 = vmul.f32 %v3151, %v3009
        %v3154 = vperm.slane %v3148, 0
        %v3155 = vperm.slane %v3149, 0
        %v3156 = vmul.f32 %v3152, %v3154
        %v3157 = vmul.f32 %v3153, %v3155
        %v3158 = vadd.f32 %v3156, 0.0
        %v3159 = vadd.f32 %v3157, 0.0
        %v3160 = vrot.slane %v3146, 6
        %v3161 = vrot.slane %v3147, 6
        %v3162 = vmul.f32 %v3160, %v3018
        %v3163 = vmul.f32 %v3161, %v3018
        %v3164 = vperm.slane %v3148, 1
        %v3165 = vperm.slane %v3149, 1
        %v3166 = vmul.f32 %v3162, %v3164
        %v3167 = vmul.f32 %v3163, %v3165
        %v3168 = vadd.f32 %v3158, %v3166
        %v3169 = vadd.f32 %v3159, %v3167
        %v3170 = vrot.slane %v3146, 7
        %v3171 = vrot.slane %v3147, 7
        %v3172 = vmul.f32 %v3170, %v3027
        %v3173 = vmul.f32 %v3171, %v3027
        %v3174 = vperm.slane %v3148, 2
        %v3175 = vperm.slane %v3149, 2
        %v3176 = vmul.f32 %v3172, %v3174
        %v3177 = vmul.f32 %v3173, %v3175
        %v3178 = vadd.f32 %v3168, %v3176
        %v3179 = vadd.f32 %v3169, %v3177
        %v3180 = vperm.slane %v3148, 3
        %v3181 = vperm.slane %v3149, 3
        %v3182 = vmul.f32 %v3146, %v3180
        %v3183 = vmul.f32 %v3147, %v3181
        %v3184 = vadd.f32 %v3178, %v3182
        %v3185 = vadd.f32 %v3179, %v3183
        %v3186 = vrot.slane %v3146, 1
        %v3187 = vrot.slane %v3147, 1
        %v3188 = vmul.f32 %v3186, %v3039
        %v3189 = vmul.f32 %v3187, %v3039
        %v3190 = vperm.slane %v3148, 4
        %v3191 = vperm.slane %v3149, 4
        %v3192 = vmul.f32 %v3188, %v3190
        %v3193 = vmul.f32 %v3189, %v3191
        %v3194 = vadd.f32 %v3184, %v3192
        %v3195 = vadd.f32 %v3185, %v3193
        %v3196 = vrot.slane %v3146, 2
        %v3197 = vrot.slane %v3147, 2
        %v3198 = vmul.f32 %v3196, %v3048
        %v3199 = vmul.f32 %v3197, %v3048
        %v3200 = vperm.slane %v3148, 5
        %v3201 = vperm.slane %v3149, 5
        %v3202 = vmul.f32 %v3198, %v3200
        %v3203 = vmul.f32 %v3199, %v3201
        %v3204 = vadd.f32 %v3194, %v3202
        %v3205 = vadd.f32 %v3195, %v3203
        %v3206 = vrot.slane %v3146, 3
        %v3207 = vrot.slane %v3147, 3
        %v3208 = vmul.f32 %v3206, %v3057
        %v3209 = vmul.f32 %v3207, %v3057
        %v3210 = vperm.slane %v3148, 6
        %v3211 = vperm.slane %v3149, 6
        %v3212 = vmul.f32 %v3208, %v3210
        %v3213 = vmul.f32 %v3209, %v3211
        %v3214 = vadd.f32 %v3204, %v3212
        %v3215 = vadd.f32 %v3205, %v3213
        %v3216 = vld [vmem:[#allocation32] sm:$0x3]
        %v3218 = vperm.slane %v3216, 0
        %v3219 = vperm.slane %v3216, 1
        %v3222 = vadd.f32 %v3214, %v3218
        %v3223 = vadd.f32 %v3215, %v3219
        %v3224 = vmax.f32 %v3222, 0.0
        %v3225 = vmax.f32 %v3223, 0.0
        %v3226 = vld [vmem:[#allocation34] sm:$0xff]
        %v3227 = vld [vmem:[#allocation34 + $0x8] sm:$0xff]
        %v3228 = vld [vmem:[#allocation34 + $0x10] sm:$0xff]
        %v3229 = vld [vmem:[#allocation34 + $0x18] sm:$0xff]
        %v3230 = vld [vmem:[#allocation34 + $0x20] sm:$0xff]
        %v3231 = vld [vmem:[#allocation34 + $0x28] sm:$0xff]
        %v3232 = vld [vmem:[#allocation34 + $0x30] sm:$0xff]
        %v3233 = vld [vmem:[#allocation34 + $0x38] sm:$0xff]
        %v3234 = vld [vmem:[#allocation34 + $0x40] sm:$0xff]
        %v3235 = vld [vmem:[#allocation34 + $0x48] sm:$0xff]
        %v3236 = vld [vmem:[#allocation34 + $0x50] sm:$0xff]
        %v3237 = vld [vmem:[#allocation34 + $0x58] sm:$0xff]
        %v3238 = vld [vmem:[#allocation34 + $0x60] sm:$0xff]
        %v3239 = vld [vmem:[#allocation34 + $0x68] sm:$0xff]
        %v3240 = vld [vmem:[#allocation34 + $0x70] sm:$0xff]
        %v3241 = vld [vmem:[#allocation34 + $0x78] sm:$0xff]
        %v3242 = vld [vmem:[#allocation34 + $0x80] sm:$0xff]
        %v3243 = vld [vmem:[#allocation34 + $0x88] sm:$0xff]
        %v3244 = vld [vmem:[#allocation34 + $0x90] sm:$0xff]
        %v3245 = vld [vmem:[#allocation34 + $0x98] sm:$0xff]
        %v3246 = vld [vmem:[#allocation34 + $0xa0] sm:$0xff]
        %v3247 = vld [vmem:[#allocation34 + $0xa8] sm:$0xff]
        %v3248 = vld [vmem:[#allocation34 + $0xb0] sm:$0xff]
        %v3249 = vld [vmem:[#allocation34 + $0xb8] sm:$0xff]
        %v3250 = vld [vmem:[#allocation34 + $0xc0] sm:$0xff]
        %v3251 = vld [vmem:[#allocation34 + $0xc8] sm:$0xff]
        %v3252 = vld [vmem:[#allocation34 + $0xd0] sm:$0xff]
        %v3253 = vld [vmem:[#allocation34 + $0xd8] sm:$0xff]
        %v3254 = vld [vmem:[#allocation34 + $0xe0] sm:$0xff]
        %v3255 = vld [vmem:[#allocation34 + $0xe8] sm:$0xff]
        %v3256 = vld [vmem:[#allocation34 + $0xf0] sm:$0xff]
        %v3257 = vld [vmem:[#allocation34 + $0xf8] sm:$0xff]
        %v3258 = vld [vmem:[#allocation34 + $0x100] sm:$0xff]
        %v3259 = vld [vmem:[#allocation34 + $0x108] sm:$0xff]
        %v3260 = vld [vmem:[#allocation34 + $0x110] sm:$0xff]
        %v3261 = vld [vmem:[#allocation34 + $0x118] sm:$0xff]
        %v3262 = vld [vmem:[#allocation34 + $0x120] sm:$0xff]
        %v3263 = vld [vmem:[#allocation34 + $0x128] sm:$0xff]
        %v3264 = vld [vmem:[#allocation34 + $0x130] sm:$0xff]
        %v3265 = vld [vmem:[#allocation34 + $0x138] sm:$0xff]
        %v3266 = vld [vmem:[#allocation34 + $0x140] sm:$0xff]
        %v3267 = vld [vmem:[#allocation34 + $0x148] sm:$0xff]
        %v3268 = vld [vmem:[#allocation34 + $0x150] sm:$0xff]
        %v3269 = vld [vmem:[#allocation34 + $0x158] sm:$0xff]
        %v3270 = vld [vmem:[#allocation34 + $0x160] sm:$0xff]
        %v3271 = vld [vmem:[#allocation34 + $0x168] sm:$0xff]
        %v3272 = vld [vmem:[#allocation34 + $0x170] sm:$0xff]
        %v3273 = vld [vmem:[#allocation34 + $0x178] sm:$0xff]
        %v3274 = vld [vmem:[#allocation34 + $0x180] sm:$0xff]
        %v3275 = vld [vmem:[#allocation34 + $0x188] sm:$0xff]
        %v3276 = vld [vmem:[#allocation34 + $0x190] sm:$0xff]
        %v3277 = vld [vmem:[#allocation34 + $0x198] sm:$0xff]
        %v3278 = vld [vmem:[#allocation34 + $0x1a0] sm:$0xff]
        %v3279 = vld [vmem:[#allocation34 + $0x1a8] sm:$0xff]
        %v3280 = vld [vmem:[#allocation34 + $0x1b0] sm:$0xff]
        %v3281 = vld [vmem:[#allocation34 + $0x1b8] sm:$0xff]
        %v3282 = vld [vmem:[#allocation34 + $0x1c0] sm:$0xff]
        %v3283 = vld [vmem:[#allocation34 + $0x1c8] sm:$0xff]
        %v3284 = vld [vmem:[#allocation34 + $0x1d0] sm:$0xff]
        %v3285 = vld [vmem:[#allocation34 + $0x1d8] sm:$0xff]
        %v3286 = vld [vmem:[#allocation34 + $0x1e0] sm:$0xff]
        %v3287 = vld [vmem:[#allocation34 + $0x1e8] sm:$0xff]
        %v3288 = vld [vmem:[#allocation34 + $0x1f0] sm:$0xff]
        %v3289 = vld [vmem:[#allocation34 + $0x1f8] sm:$0xff]
        %v3290 = vld [vmem:[#allocation35] sm:$0x3]
        %v3292 = vperm.slane %v3290, 0
        %v3293 = vperm.slane %v3290, 1
        %3296 = vmatpush.msra.mxu0 %v3256
        %3297 = vmatpush.msra.mxu0 %v3254
        %3298 = vmatpush.msra.mxu0 %v3252
        %3299 = vmatpush.msra.mxu0 %v3250
        %3300 = vmatpush.msra.mxu0 %v3248
        %3301 = vmatpush.msra.mxu0 %v3246
        %3302 = vmatpush.msra.mxu0 %v3244
        %3303 = vmatpush.msra.mxu0 %v3242
        %3304 = vmatpush.msra.mxu0 %v3240
        %3305 = vmatpush.msra.mxu0 %v3238
        %3306 = vmatpush.msra.mxu0 %v3236
        %3307 = vmatpush.msra.mxu0 %v3234
        %3308 = vmatpush.msra.mxu0 %v3232
        %3309 = vmatpush.msra.mxu0 %v3230
        %3310 = vmatpush.msra.mxu0 %v3228
        %3311 = vmatpush.msra.mxu0 %v3226
        %3312 = vmatmul.f32.gmra.mxu0 %v3224
        %v3313 = vpop.f32.mrf.mxu0
        %v3314 = vadd.f32 %v3292, %v3313
        %3315 = vdwg.mxu0
        %3316 = vmatpush.msra.mxu0 %v3288
        %3317 = vmatpush.msra.mxu0 %v3286
        %3318 = vmatpush.msra.mxu0 %v3284
        %3319 = vmatpush.msra.mxu0 %v3282
        %3320 = vmatpush.msra.mxu0 %v3280
        %3321 = vmatpush.msra.mxu0 %v3278
        %3322 = vmatpush.msra.mxu0 %v3276
        %3323 = vmatpush.msra.mxu0 %v3274
        %3324 = vmatpush.msra.mxu0 %v3272
        %3325 = vmatpush.msra.mxu0 %v3270
        %3326 = vmatpush.msra.mxu0 %v3268
        %3327 = vmatpush.msra.mxu0 %v3266
        %3328 = vmatpush.msra.mxu0 %v3264
        %3329 = vmatpush.msra.mxu0 %v3262
        %3330 = vmatpush.msra.mxu0 %v3260
        %3331 = vmatpush.msra.mxu0 %v3258
        %3332 = vmatmul.f32.gmra.mxu0 %v3225
        %v3333 = vpop.f32.mrf.mxu0
        %v3334 = vadd.f32 %v3314, %v3333
        %3335 = vdwg.mxu0
        %3336 = vmatpush.msra.mxu0 %v3257
        %3337 = vmatpush.msra.mxu0 %v3255
        %3338 = vmatpush.msra.mxu0 %v3253
        %3339 = vmatpush.msra.mxu0 %v3251
        %3340 = vmatpush.msra.mxu0 %v3249
        %3341 = vmatpush.msra.mxu0 %v3247
        %3342 = vmatpush.msra.mxu0 %v3245
        %3343 = vmatpush.msra.mxu0 %v3243
        %3344 = vmatpush.msra.mxu0 %v3241
        %3345 = vmatpush.msra.mxu0 %v3239
        %3346 = vmatpush.msra.mxu0 %v3237
        %3347 = vmatpush.msra.mxu0 %v3235
        %3348 = vmatpush.msra.mxu0 %v3233
        %3349 = vmatpush.msra.mxu0 %v3231
        %3350 = vmatpush.msra.mxu0 %v3229
        %3351 = vmatpush.msra.mxu0 %v3227
        %3352 = vmatmul.f32.gmra.mxu0 %v3224
        %v3353 = vpop.f32.mrf.mxu0
        %v3354 = vadd.f32 %v3293, %v3353
        %3355 = vdwg.mxu0
        %3356 = vmatpush.msra.mxu0 %v3289
        %3357 = vmatpush.msra.mxu0 %v3287
        %3358 = vmatpush.msra.mxu0 %v3285
        %3359 = vmatpush.msra.mxu0 %v3283
        %3360 = vmatpush.msra.mxu0 %v3281
        %3361 = vmatpush.msra.mxu0 %v3279
        %3362 = vmatpush.msra.mxu0 %v3277
        %3363 = vmatpush.msra.mxu0 %v3275
        %3364 = vmatpush.msra.mxu0 %v3273
        %3365 = vmatpush.msra.mxu0 %v3271
        %3366 = vmatpush.msra.mxu0 %v3269
        %3367 = vmatpush.msra.mxu0 %v3267
        %3368 = vmatpush.msra.mxu0 %v3265
        %3369 = vmatpush.msra.mxu0 %v3263
        %3370 = vmatpush.msra.mxu0 %v3261
        %3371 = vmatpush.msra.mxu0 %v3259
        %3372 = vmatmul.f32.gmra.mxu0 %v3225
        %v3373 = vpop.f32.mrf.mxu0
        %v3374 = vadd.f32 %v3354, %v3373
        %3375 = vdwg.mxu0
        %v3376 = vmax.f32 %v3334, 0.0
        %v3377 = vmax.f32 %v3374, 0.0
        %v3378 = vrot.slane %v3376, 4
        %v3379 = vadd.f32 %v3376, %v3378
        %v3380 = vrot.slane %v3379, 2
        %v3381 = vadd.f32 %v3379, %v3380
        %v3382 = vrot.slane %v3381, 1
        %v3383 = vadd.f32 %v3381, %v3382
        %v3384 = vrot.slane %v3377, 4
        %v3385 = vadd.f32 %v3377, %v3384
        %v3386 = vrot.slane %v3385, 2
        %v3387 = vadd.f32 %v3385, %v3386
        %v3388 = vrot.slane %v3387, 1
        %v3389 = vadd.f32 %v3387, %v3388
        %v3390 = vrcp.pop 8.0
        %v3391 = vmul.f32 8.0, %v3390
        %v3392 = vsub.f32 1.0, %v3391
        %v3393 = vmul.f32 %v3390, %v3392
        %v3394 = vadd.f32 %v3390, %v3393
        %vm3395 = vweird.f32 %v3390
        %v3396 = vsel %vm3395, %v3390, %v3394
        %v3397 = vmul.f32 %v3383, %v3396
        %v3398 = vmul.f32 %v3389, %v3396
        %v3399 = vld [vmem:[#allocation37] sm:$0xff]
        %v3400 = vld [vmem:[#allocation37 + $0x8] sm:$0xff]
        %v3401 = vld [vmem:[#allocation37 + $0x10] sm:$0xff]
        %v3402 = vld [vmem:[#allocation37 + $0x18] sm:$0xff]
        %v3403 = vld [vmem:[#allocation37 + $0x20] sm:$0xff]
        %v3404 = vld [vmem:[#allocation37 + $0x28] sm:$0xff]
        %v3405 = vld [vmem:[#allocation37 + $0x30] sm:$0xff]
        %v3406 = vld [vmem:[#allocation37 + $0x38] sm:$0xff]
        %v3407 = vld [vmem:[#allocation37 + $0x40] sm:$0xff]
        %v3408 = vld [vmem:[#allocation37 + $0x48] sm:$0xff]
        %v3409 = vld [vmem:[#allocation37 + $0x50] sm:$0xff]
        %v3410 = vld [vmem:[#allocation37 + $0x58] sm:$0xff]
        %v3411 = vld [vmem:[#allocation37 + $0x60] sm:$0xff]
        %v3412 = vld [vmem:[#allocation37 + $0x68] sm:$0xff]
        %v3413 = vld [vmem:[#allocation37 + $0x70] sm:$0xff]
        %v3414 = vld [vmem:[#allocation37 + $0x78] sm:$0xff]
        %v3415 = vld [vmem:[#allocation37 + $0x80] sm:$0xff]
        %v3416 = vld [vmem:[#allocation37 + $0x88] sm:$0xff]
        %v3417 = vld [vmem:[#allocation37 + $0x90] sm:$0xff]
        %v3418 = vld [vmem:[#allocation37 + $0x98] sm:$0xff]
        %v3419 = vld [vmem:[#allocation37 + $0xa0] sm:$0xff]
        %v3420 = vld [vmem:[#allocation37 + $0xa8] sm:$0xff]
        %v3421 = vld [vmem:[#allocation37 + $0xb0] sm:$0xff]
        %v3422 = vld [vmem:[#allocation37 + $0xb8] sm:$0xff]
        %v3423 = vld [vmem:[#allocation37 + $0xc0] sm:$0xff]
        %v3424 = vld [vmem:[#allocation37 + $0xc8] sm:$0xff]
        %v3425 = vld [vmem:[#allocation37 + $0xd0] sm:$0xff]
        %v3426 = vld [vmem:[#allocation37 + $0xd8] sm:$0xff]
        %v3427 = vld [vmem:[#allocation37 + $0xe0] sm:$0xff]
        %v3428 = vld [vmem:[#allocation37 + $0xe8] sm:$0xff]
        %v3429 = vld [vmem:[#allocation37 + $0xf0] sm:$0xff]
        %v3430 = vld [vmem:[#allocation37 + $0xf8] sm:$0xff]
        %v3431 = vld [vmem:[%s57] sm:$0x1]
        %3432 = vmatpush.msra.mxu0 %v3414
        %3433 = vmatpush.msra.mxu0 %v3413
        %3434 = vmatpush.msra.mxu0 %v3412
        %3435 = vmatpush.msra.mxu0 %v3411
        %3436 = vmatpush.msra.mxu0 %v3410
        %3437 = vmatpush.msra.mxu0 %v3409
        %3438 = vmatpush.msra.mxu0 %v3408
        %3439 = vmatpush.msra.mxu0 %v3407
        %3440 = vmatpush.msra.mxu0 %v3406
        %3441 = vmatpush.msra.mxu0 %v3405
        %3442 = vmatpush.msra.mxu0 %v3404
        %3443 = vmatpush.msra.mxu0 %v3403
        %3444 = vmatpush.msra.mxu0 %v3402
        %3445 = vmatpush.msra.mxu0 %v3401
        %3446 = vmatpush.msra.mxu0 %v3400
        %3447 = vmatpush.msra.mxu0 %v3399
        %3448 = vmatmul.f32.gmra.mxu0 %v3397
        %v3449 = vpop.f32.mrf.mxu0
        %v3450 = vadd.f32 %v3431, %v3449
        %3451 = vdwg.mxu0
        %3452 = vmatpush.msra.mxu0 %v3430
        %3453 = vmatpush.msra.mxu0 %v3429
        %3454 = vmatpush.msra.mxu0 %v3428
        %3455 = vmatpush.msra.mxu0 %v3427
        %3456 = vmatpush.msra.mxu0 %v3426
        %3457 = vmatpush.msra.mxu0 %v3425
        %3458 = vmatpush.msra.mxu0 %v3424
        %3459 = vmatpush.msra.mxu0 %v3423
        %3460 = vmatpush.msra.mxu0 %v3422
        %3461 = vmatpush.msra.mxu0 %v3421
        %3462 = vmatpush.msra.mxu0 %v3420
        %3463 = vmatpush.msra.mxu0 %v3419
        %3464 = vmatpush.msra.mxu0 %v3418
        %3465 = vmatpush.msra.mxu0 %v3417
        %3466 = vmatpush.msra.mxu0 %v3416
        %3467 = vmatpush.msra.mxu0 %v3415
        %3468 = vmatmul.f32.gmra.mxu0 %v3398
        %v3469 = vpop.f32.mrf.mxu0
        %v3470 = vadd.f32 %v3450, %v3469
        %3471 = vdwg.mxu0
        %v3472 = vmax.f32 %v3470, 0.0
        %v3473 = vld [vmem:[#allocation38] sm:$0xff]
        %v3474 = vld [vmem:[#allocation38 + $0x8] sm:$0xff]
        %v3475 = vld [vmem:[#allocation38 + $0x10] sm:$0xff]
        %v3476 = vld [vmem:[#allocation38 + $0x18] sm:$0xff]
        %v3477 = vld [vmem:[#allocation38 + $0x20] sm:$0xff]
        %v3478 = vld [vmem:[#allocation38 + $0x28] sm:$0xff]
        %v3479 = vld [vmem:[#allocation38 + $0x30] sm:$0xff]
        %v3480 = vld [vmem:[#allocation38 + $0x38] sm:$0xff]
        %v3481 = vld [vmem:[#allocation38 + $0x40] sm:$0xff]
        %v3482 = vld [vmem:[#allocation38 + $0x48] sm:$0xff]
        %v3483 = vld [vmem:[#allocation38 + $0x50] sm:$0xff]
        %v3484 = vld [vmem:[#allocation38 + $0x58] sm:$0xff]
        %v3485 = vld [vmem:[#allocation38 + $0x60] sm:$0xff]
        %v3486 = vld [vmem:[#allocation38 + $0x68] sm:$0xff]
        %v3487 = vld [vmem:[#allocation38 + $0x70] sm:$0xff]
        %v3488 = vld [vmem:[#allocation38 + $0x78] sm:$0xff]
        %v3489 = vld [vmem:[%s61] sm:$0x1]
        %3490 = vmatpush.msra.mxu0 %v3488
        %3491 = vmatpush.msra.mxu0 %v3487
        %3492 = vmatpush.msra.mxu0 %v3486
        %3493 = vmatpush.msra.mxu0 %v3485
        %3494 = vmatpush.msra.mxu0 %v3484
        %3495 = vmatpush.msra.mxu0 %v3483
        %3496 = vmatpush.msra.mxu0 %v3482
        %3497 = vmatpush.msra.mxu0 %v3481
        %3498 = vmatpush.msra.mxu0 %v3480
        %3499 = vmatpush.msra.mxu0 %v3479
        %3500 = vmatpush.msra.mxu0 %v3478
        %3501 = vmatpush.msra.mxu0 %v3477
        %3502 = vmatpush.msra.mxu0 %v3476
        %3503 = vmatpush.msra.mxu0 %v3475
        %3504 = vmatpush.msra.mxu0 %v3474
        %3505 = vmatpush.msra.mxu0 %v3473
        %3506 = vmatmul.f32.gmra.mxu0 %v3472
        %v3507 = vpop.f32.mrf.mxu0
        %v3508 = vadd.f32 %v3489, %v3507
        %3509 = vdwg.mxu0
        %3510 = vst [vmem:[%s1313] sm:$0x1] %v3508
        %s3511 = sand.u32 %s754, 1
        %s3512 = scalar_lea.sflag [#allocation4], %s3511
        %s3513 = sand.u32 %s754, 1
        %s3514 = scalar_lea.vmem [#allocation40], %s3513
        // Predicated region
        $region241: #{lnrnet_v2_forward.1} parent=143 // pred_check
          %p3515 = pneg %p764
        $region242: #{lnrnet_v2_forward.1} parent=143 // pred_check_branch
          %3517 = sbr.rel (%p3515) target = $region244
        $region243: #{lnrnet_v2_forward.1} parent=143 // pred_region
          %3519 = vsyncadd %s3512, 0
          %s3520 = scalar_lea.hbm %s63, %s90
          %s3522 = sshll.u32 %s3514, 4
          %s3523 = int_to_ptr.vmem [resolvable:$true] %s3522
          %s3524 = sshll.u32 %s3520, 4
          %s3525 = int_to_ptr.hbm [resolvable:$true] %s3524
          %3527 = dma.vmem_to_hbm [thread:$0]  %s3523, 16, %s3525, %s3512
        $region244: #{lnrnet_v2_forward.1} parent=143 // pred_fallthru
          _
      $region144: #{lnrnet_v2_forward.1} parent=5 // pred_fallthru
        _
      %p3528 = scmp.le.s32.totalorder 2, %s85
      // Predicated region
      $region245: #{lnrnet_v2_forward.1} parent=5 // pred_check
        %p3529 = pneg %p3528
      $region246: #{lnrnet_v2_forward.1} parent=5 // pred_check_branch
        %3531 = sbr.rel (%p3529) target = $region248
      $region247: #{lnrnet_v2_forward.1} parent=5 // pred_region
        %s3532 = ssub.s32 %s85, 2
        // Predicated region
        $region249: #{lnrnet_v2_forward.1} parent=247 // pred_check
          %p3533 = pneg %p770
        $region250: #{lnrnet_v2_forward.1} parent=247 // pred_check_branch
          %3535 = sbr.rel (%p3533) target = $region252
        $region251: #{lnrnet_v2_forward.1} parent=247 // pred_region
          %s3536 = sand.u32 %s755, 1
          %s3537 = scalar_lea.sflag [#allocation4], %s3536
          %s3538 = sand.u32 %s755, 1
          %s3539 = scalar_lea.vmem [#allocation40], %s3538
          %3541 = dma.done %s3537, 16
        $region252: #{lnrnet_v2_forward.1} parent=247 // pred_fallthru
          _
      $region248: #{lnrnet_v2_forward.1} parent=5 // pred_fallthru
        _
    $region6: #{lnrnet_v2_forward.1} parent=1 // loop_footer
      %s89 = sadd.s32 1, %s85
    $region7: #{lnrnet_v2_forward.1} parent=1 // loop_footer_branch
      %84 = sbr.rel target = $region3
    $region8: #{lnrnet_v2_forward.1} parent=1 // loop_exit
      _
    %3542 = vsyncpa [#allocation3], 1
    %s3543 = scalar_lea.sflag [#allocation3], 1
    %3544 = vsyncpa %s3543, 1
    %3545 = vsyncpa [#allocation6], 1
    %3546 = vsyncpa [#allocation9], 1
    %3547 = vsyncpa [#allocation12], 1
    %3548 = vsyncpa [#allocation15], 1
    %3549 = vsyncpa [#allocation18], 1
    %3550 = vsyncpa [#allocation21], 1
    %3551 = vsyncpa [#allocation24], 1
    %3552 = vsyncpa [#allocation27], 1
    %3553 = vsyncpa [#allocation30], 1
    %3554 = vsyncpa [#allocation33], 1
    %3555 = vsyncpa [#allocation36], 1
    %3556 = vsyncpa [#allocation39], 1
    %3557 = vsyncpa [#allocation4], 1
    %s3558 = scalar_lea.sflag [#allocation4], 1
    %3559 = vsyncpa %s3558, 1

</llo_original>
